<compile_context>
chip_gen: v7x
topology: tpu7x:2x2x1
jax: 0.10.0
libtpu: 0.0.40
codegen_flags: <defaults>
</compile_context>

<pallas_src>
import math
from functools import partial

import jax
import jax.numpy as jnp
from jax import lax
from jax.experimental import pallas as pl
from jax.experimental.pallas import tpu as pltpu


def mab_kernel(num_heads, set_size, b_blk, ln_eps, sm_eps,
               lengths_ref,                       # scalar-prefetch (SMEM), (B_pad,)
               x_ref,                             # (BN, DQ+DK)   matmul dtype
               wqkv_ref,                          # (DQ+DK, 3DV)  matmul dtype
               wo_ref,                            # (DV, DV)      matmul dtype
               vec_ref,                           # (8, 3DV) f32  packed vectors
               out_ref):                          # (BN, OUT_LANES) f32
    blk = pl.program_id(0)
    N = set_size
    H = num_heads
    BN = x_ref.shape[0]                            # b_blk * N
    DV = wo_ref.shape[0]
    ds = DV // H
    mm = wqkv_ref.dtype                            # MXU compute dtype
    scale = 1.0 / math.sqrt(DV)                    # sqrt(dim_V), matches PyTorch MAB

    # ---- packed bias / LayerNorm vectors -------------------------------------
    b_qkv = vec_ref[0:1, :]                        # (1, 3DV)
    b_o = vec_ref[1:2, :DV]
    g0 = vec_ref[2:3, :DV]
    b0 = vec_ref[3:4, :DV]
    g1 = vec_ref[4:5, :DV]
    b1 = vec_ref[5:6, :DV]

    # ---- fused Q|K|V projection: one MXU matmul, f32 accumulation ------------
    proj = jnp.dot(x_ref[...], wqkv_ref[...],
                   preferred_element_type=jnp.float32) + b_qkv
    qp = proj[:, :DV]
    kp = proj[:, DV:2 * DV]
    vp = proj[:, 2 * DV:3 * DV]

    # ---- masks ----------------------------------------------------------------
    # Per-row set length from SMEM scalars (overwrite trick: one compare+select
    # per set).  Set-start offsets are structural (bit ops for power-of-two N).
    r = lax.broadcasted_iota(jnp.int32, (BN, 1), 0)
    c = lax.broadcasted_iota(jnp.int32, (1, BN), 1)
    len_row = jnp.zeros((BN, 1), jnp.int32)
    if N & (N - 1) == 0:
        lo = r - (r & (N - 1))                     # set start per row (structural)
        for j in range(b_blk):                     # b_blk small, unrolled
            Lj = lengths_ref[blk * b_blk + j]
            len_row = jnp.where(r >= j * N, Lj, len_row)
    else:
        lo = jnp.zeros((BN, 1), jnp.int32)
        for j in range(b_blk):
            Lj = lengths_ref[blk * b_blk + j]
            ge = r >= j * N
            len_row = jnp.where(ge, Lj, len_row)
            lo = jnp.where(ge, j * N, lo)

    valid_row = (r - lo) < len_row                 # (BN, 1) row within its set length
    # attention mask: row valid AND column inside [set_start, set_start + len)
    att = valid_row & (c >= lo) & (c < lo + len_row)          # (BN, BN)
    neg_mask = jnp.where(att, 0.0, -1e30).astype(jnp.float32)  # additive, pre-exp
    rmask_f = valid_row.astype(jnp.float32)

    # Only the residual needs the masked Q; K/V row masking is redundant because
    # invalid columns are excluded by neg_mask before exp.
    qm = qp * rmask_f                              # masked, UNscaled (residual)
    q_s = (qm * scale).astype(mm)
    k_c = kp.astype(mm)
    v_c = vp.astype(mm)

    # ---- per-head attention: lane masks, no transposes / concats / slices -----
    lane = lax.broadcasted_iota(jnp.int32, (1, DV), 1)
    acc = jnp.zeros((BN, DV), jnp.float32)
    for h in range(H):
        hm = ((lane >= h * ds) & (lane < (h + 1) * ds)).astype(mm)   # (1, DV)
        qh = q_s * hm
        # s[n, m] = sum_d qh[n, d] * k[m, d]; lanes outside head h are exact zeros.
        s = lax.dot_general(qh, k_c, (((1,), (1,)), ((), ())),
                            preferred_element_type=jnp.float32)       # (BN, BN)
        s = s + neg_mask                                               # mask pre-exp
        m = jnp.maximum(jnp.max(s, axis=-1, keepdims=True), 0.0)      # safe row max
        e = jnp.exp(s - m)                         # masked entries underflow to 0
        inv = 1.0 / (jnp.sum(e, axis=-1, keepdims=True) + sm_eps)
        a = (e * inv).astype(mm)
        # head-lane-masked V -> output lanes outside head h are exact zeros
        acc = acc + jnp.dot(a, v_c * hm, preferred_element_type=jnp.float32)

    o = qm + acc

    # ---- LayerNorm 0 -----------------------------------------------------------
    mu = jnp.mean(o, axis=-1, keepdims=True)
    var = jnp.mean((o - mu) ** 2, axis=-1, keepdims=True)
    o = (o - mu) * lax.rsqrt(var + ln_eps) * g0 + b0

    # ---- residual feed-forward -------------------------------------------------
    ff = jnp.dot(o.astype(mm), wo_ref[...], preferred_element_type=jnp.float32) + b_o
    o = o + jnp.maximum(ff, 0.0)

    # ---- LayerNorm 1 -----------------------------------------------------------
    mu = jnp.mean(o, axis=-1, keepdims=True)
    var = jnp.mean((o - mu) ** 2, axis=-1, keepdims=True)
    o = (o - mu) * lax.rsqrt(var + ln_eps) * g1 + b1

    # ---- lane-dense store: pad DV -> 128 lanes, wrapper slices [:, :DV] --------
    out_lanes = out_ref.shape[1]
    if out_lanes > DV:
        o = jnp.concatenate([o, jnp.zeros((BN, out_lanes - DV), jnp.float32)], axis=1)
    out_ref[...] = o.astype(out_ref.dtype)


def mab_forward(Q, K, lengths, params, num_heads,
                ln_eps=1e-5, sm_eps=1e-15, block_b=None,
                matmul_dtype=jnp.bfloat16):
    B, N, DQ = Q.shape
    _, _, DK = K.shape
    DV = params["wq"].shape[1]

    # ---- auto batch-block: target BN = 128 lane-dense tiles, grid >= 2 --------
    if block_b is None:
        bb = max(1, min(128 // N, B)) if N <= 128 else 1
        while bb > 1 and -(-B // bb) < 2:          # keep 2+ grid steps (v7x 2 TCs)
            bb //= 2
        block_b = max(1, bb)
    b_blk = block_b
    while (b_blk * N) % 8 != 0:                    # block rows must be sublane multiple
        b_blk += 1

    B_pad = -(-B // b_blk) * b_blk
    pad = B_pad - B
    if pad:
        Q = jnp.concatenate([Q, jnp.zeros((pad, N, DQ), Q.dtype)], axis=0)
        K = jnp.concatenate([K, jnp.zeros((pad, N, DK), K.dtype)], axis=0)
        lengths = jnp.concatenate([lengths, jnp.zeros((pad,), lengths.dtype)])
    lengths = lengths.astype(jnp.int32)

    # ---- fused input: [Q | K] rows, pre-cast to the MXU dtype ------------------
    X = jnp.concatenate([Q, K], axis=-1).reshape(B_pad * N, DQ + DK).astype(matmul_dtype)

    # ---- block-diagonal fused projection weight Wqkv = [[Wq,0,0],[0,Wk,Wv]] ----
    D3 = 3 * DV
    wqkv = jnp.zeros((DQ + DK, D3), jnp.float32)
    wqkv = wqkv.at[:DQ, :DV].set(params["wq"])
    wqkv = wqkv.at[DQ:, DV:2 * DV].set(params["wk"])
    wqkv = wqkv.at[DQ:, 2 * DV:].set(params["wv"])
    wqkv = wqkv.astype(matmul_dtype)
    wo = params["wo"].astype(matmul_dtype)

    # ---- pack the seven small vectors into one (8, 3DV) array ------------------
    def padv(v):
        v = v.astype(jnp.float32)
        return jnp.pad(v, ((0, 0), (0, D3 - v.shape[1])))
    vecs = jnp.concatenate([
        jnp.concatenate([params["bq"], params["bk"], params["bv"]], axis=1).astype(jnp.float32),
        padv(params["bo"]), padv(params["g0"]), padv(params["b0"]),
        padv(params["g1"]), padv(params["b1"]),
        jnp.zeros((2, D3), jnp.float32),
    ], axis=0)                                     # (8, 3DV)

    out_lanes = DV if DV % 128 == 0 else 128 * (-(-DV // 128))
    bn = b_blk * N
    grid = (B_pad // b_blk,)

    grid_spec = pltpu.PrefetchScalarGridSpec(
        num_scalar_prefetch=1,
        grid=grid,
        in_specs=[
            pl.BlockSpec((bn, DQ + DK), lambda b, lens: (b, 0)),
            pl.BlockSpec(wqkv.shape, lambda b, lens: (0, 0)),
            pl.BlockSpec(wo.shape, lambda b, lens: (0, 0)),
            pl.BlockSpec(vecs.shape, lambda b, lens: (0, 0)),
        ],
        out_specs=pl.BlockSpec((bn, out_lanes), lambda b, lens: (b, 0)),
    )

    kernel = partial(mab_kernel, num_heads, N, b_blk, ln_eps, sm_eps)

    out = pl.pallas_call(
        kernel,
        out_shape=jax.ShapeDtypeStruct((B_pad * N, out_lanes), jnp.float32),
        grid_spec=grid_spec,
        compiler_params=pltpu.CompilerParams(
            dimension_semantics=("parallel",),
            vmem_limit_bytes=32 * 1024 * 1024),
    )(lengths, X, wqkv, wo, vecs)

    return out[:, :DV].reshape(B_pad, N, DV)[:B]


# -------------------------- pure-JAX reference ------------------------------
def mab_reference(Q, K, lengths, params, num_heads, ln_eps=1e-5, sm_eps=1e-15):
    B, N, _ = Q.shape
    DV = params["wq"].shape[1]
    ds = DV // num_heads
    mask = (jnp.arange(N)[None, :] < lengths[:, None]).astype(jnp.float32)  # (B,N)

    qp = Q @ params["wq"] + params["bq"]
    kp = K @ params["wk"] + params["bk"]
    vp = K @ params["wv"] + params["bv"]
    qm = qp * mask[:, :, None]
    km = kp * mask[:, :, None]
    vm = vp * mask[:, :, None]

    def ln(x, g, b):
        mu = x.mean(-1, keepdims=True)
        var = ((x - mu) ** 2).mean(-1, keepdims=True)
        return (x - mu) / jnp.sqrt(var + ln_eps) * g + b

    outs = []
    for h in range(num_heads):
        qh = qm[:, :, h * ds:(h + 1) * ds]
        kh = km[:, :, h * ds:(h + 1) * ds]
        vh = vm[:, :, h * ds:(h + 1) * ds]
        s = jnp.einsum("bnd,bmd->bnm", qh, kh) / math.sqrt(DV)
        e = jnp.exp(s) * mask[:, :, None] * mask[:, None, :]
        a = e / (e.sum(-1, keepdims=True) + sm_eps)
        outs.append(qh + jnp.einsum("bnm,bmd->bnd", a, vh))
    o = jnp.concatenate(outs, axis=-1)
    o = ln(o, params["g0"], params["b0"])
    o = o + jnp.maximum(o @ params["wo"] + params["bo"], 0.0)
    o = ln(o, params["g1"], params["b1"])
    return o


if __name__ == "__main__":
    # B=30, N=8 -> auto b_blk=16 (BN=128 lane-dense tiles), grid=2, batch padding exercised.
    B, N = 30, 8
    dim_Q, dim_K, dim_V, num_heads = 32, 32, 32, 4

    key = jax.random.PRNGKey(0)
    keys = jax.random.split(key, 12)

    def init_w(k, fan_in, fan_out):
        bound = 1.0 / math.sqrt(fan_in)
        return jax.random.uniform(k, (fan_in, fan_out), jnp.float32, -bound, bound)

    def init_b(k, fan_in, fan_out):
        bound = 1.0 / math.sqrt(fan_in)
        return jax.random.uniform(k, (1, fan_out), jnp.float32, -bound, bound)

    params = {
        "wq": init_w(keys[0], dim_Q, dim_V), "bq": init_b(keys[1], dim_Q, dim_V),
        "wk": init_w(keys[2], dim_K, dim_V), "bk": init_b(keys[3], dim_K, dim_V),
        "wv": init_w(keys[4], dim_K, dim_V), "bv": init_b(keys[5], dim_K, dim_V),
        "wo": init_w(keys[6], dim_V, dim_V), "bo": init_b(keys[7], dim_V, dim_V),
        "g0": jnp.ones((1, dim_V), jnp.float32), "b0": jnp.zeros((1, dim_V), jnp.float32),
        "g1": jnp.ones((1, dim_V), jnp.float32), "b1": jnp.zeros((1, dim_V), jnp.float32),
    }

    Qx = jax.random.normal(keys[8], (B, N, dim_Q), jnp.float32)
    Kx = jax.random.normal(keys[9], (B, N, dim_K), jnp.float32)
    lengths = jax.random.randint(keys[10], (B,), 1, N + 1).astype(jnp.int32)

    ref = mab_reference(Qx, Kx, lengths, params, num_heads)

    # f32-matmul path: tight semantics check against the pure-JAX reference
    out_f32 = mab_forward(Qx, Kx, lengths, params, num_heads,
                          matmul_dtype=jnp.float32)
    out_f32 = jax.block_until_ready(out_f32)
    assert out_f32.shape == (B, N, dim_V)
    err32 = float(jnp.max(jnp.abs(out_f32 - ref)))
    assert err32 < 1e-3, f"f32-path max err {err32}"

    # bf16-MXU path (production config): loose sanity check vs f32 reference
    out_bf16 = mab_forward(Qx, Kx, lengths, params, num_heads,
                           matmul_dtype=jnp.bfloat16)
    out_bf16 = jax.block_until_ready(out_bf16)
    assert out_bf16.shape == (B, N, dim_V)
    err16 = float(jnp.max(jnp.abs(out_bf16 - ref)))
    assert err16 < 1e-1, f"bf16-path max err {err16}"

    print("KERNEL_OK")
</pallas_src>

<mosaic_0001>
module attributes {stable_mosaic.version = 11 : i64} {
  func.func @mab_kernel(%arg0: i32, %arg1: memref<32xi32, #tpu.memory_space<smem>>, %arg2: memref<128x64xf32, #tpu.memory_space<vmem>>, %arg3: memref<64x96xf32, #tpu.memory_space<vmem>>, %arg4: memref<32x32xf32, #tpu.memory_space<vmem>>, %arg5: memref<8x96xf32, #tpu.memory_space<vmem>>, %arg6: memref<128x128xf32, #tpu.memory_space<vmem>>) attributes {dimension_semantics = [#tpu.dimension_semantics<parallel>], iteration_bounds = array<i64: 2>, scalar_prefetch = 1 : i64, scratch_operands = 0 : i64, tpu.core_type = #tpu.core_type<tc>, window_params = [{transform_indices = @transform_0, window_bounds = array<i64: 128, 64>}, {pipeline_mode = #tpu.pipeline_mode<synchronous>, transform_indices = @transform_1, window_bounds = array<i64: 64, 96>}, {pipeline_mode = #tpu.pipeline_mode<synchronous>, transform_indices = @transform_2, window_bounds = array<i64: 32, 32>}, {pipeline_mode = #tpu.pipeline_mode<synchronous>, transform_indices = @transform_3, window_bounds = array<i64: 8, 96>}, {transform_indices = @transform_4, window_bounds = array<i64: 128, 128>}]} {
    %c0 = arith.constant 0 : index
    %c0_0 = arith.constant 0 : index
    %0 = vector.load %arg5[%c0, %c0_0] : memref<8x96xf32, #tpu.memory_space<vmem>>, vector<1x96xf32>
    %c1 = arith.constant 1 : index
    %c0_1 = arith.constant 0 : index
    %1 = vector.load %arg5[%c1, %c0_1] : memref<8x96xf32, #tpu.memory_space<vmem>>, vector<1x32xf32>
    %c2 = arith.constant 2 : index
    %c0_2 = arith.constant 0 : index
    %2 = vector.load %arg5[%c2, %c0_2] : memref<8x96xf32, #tpu.memory_space<vmem>>, vector<1x32xf32>
    %c3 = arith.constant 3 : index
    %c0_3 = arith.constant 0 : index
    %3 = vector.load %arg5[%c3, %c0_3] : memref<8x96xf32, #tpu.memory_space<vmem>>, vector<1x32xf32>
    %c4 = arith.constant 4 : index
    %c0_4 = arith.constant 0 : index
    %4 = vector.load %arg5[%c4, %c0_4] : memref<8x96xf32, #tpu.memory_space<vmem>>, vector<1x32xf32>
    %c5 = arith.constant 5 : index
    %c0_5 = arith.constant 0 : index
    %5 = vector.load %arg5[%c5, %c0_5] : memref<8x96xf32, #tpu.memory_space<vmem>>, vector<1x32xf32>
    %c0_6 = arith.constant 0 : index
    %c0_7 = arith.constant 0 : index
    %6 = vector.load %arg2[%c0_6, %c0_7] : memref<128x64xf32, #tpu.memory_space<vmem>>, vector<128x64xf32>
    %c0_8 = arith.constant 0 : index
    %c0_9 = arith.constant 0 : index
    %7 = vector.load %arg3[%c0_8, %c0_9] : memref<64x96xf32, #tpu.memory_space<vmem>>, vector<64x96xf32>
    %cst = arith.constant dense<0.000000e+00> : vector<128x96xf32>
    %8 = tpu.matmul %6, %7, %cst {dimension_numbers = #tpu.dot_dimension_numbers<[1], [0], [0], [1], [0, 0, 1, 1], [], []>} : vector<128x64xf32>, vector<64x96xf32>, vector<128x96xf32> -> vector<128x96xf32>
    %9 = vector.broadcast %0 : vector<1x96xf32> to vector<128x96xf32>
    %10 = arith.addf %8, %9 : vector<128x96xf32>
    %11 = vector.extract_strided_slice %10 {offsets = [0, 0], sizes = [128, 32], strides = [1, 1]} : vector<128x96xf32> to vector<128x32xf32>
    %12 = vector.extract_strided_slice %10 {offsets = [0, 32], sizes = [128, 32], strides = [1, 1]} : vector<128x96xf32> to vector<128x32xf32>
    %13 = vector.extract_strided_slice %10 {offsets = [0, 64], sizes = [128, 32], strides = [1, 1]} : vector<128x96xf32> to vector<128x32xf32>
    %14 = tpu.iota {dimensions = array<i32: 0>} : vector<128x1xi32>
    %15 = tpu.iota {dimensions = array<i32: 1>} : vector<1x128xi32>
    %c0_i32 = arith.constant 0 : i32
    %16 = vector.broadcast %c0_i32 : i32 to vector<128x1xi32>
    %c7_i32 = arith.constant 7 : i32
    %17 = vector.broadcast %c7_i32 : i32 to vector<128x1xi32>
    %18 = arith.andi %14, %17 : vector<128x1xi32>
    %19 = arith.subi %14, %18 : vector<128x1xi32>
    %c16_i32 = arith.constant 16 : i32
    %20 = arith.muli %arg0, %c16_i32 : i32
    %c0_i32_10 = arith.constant 0 : i32
    %21 = arith.addi %20, %c0_i32_10 : i32
    %22 = arith.index_cast %21 : i32 to index
    %23 = memref.load %arg1[%22] : memref<32xi32, #tpu.memory_space<smem>>
    %c0_i32_11 = arith.constant 0 : i32
    %24 = vector.broadcast %c0_i32_11 : i32 to vector<128x1xi32>
    %25 = arith.cmpi sge, %14, %24 : vector<128x1xi32>
    %26 = vector.broadcast %23 : i32 to vector<128x1xi32>
    %27 = arith.select %25, %26, %16 : vector<128x1xi1>, vector<128x1xi32>
    %c16_i32_12 = arith.constant 16 : i32
    %28 = arith.muli %arg0, %c16_i32_12 : i32
    %c1_i32 = arith.constant 1 : i32
    %29 = arith.addi %28, %c1_i32 : i32
    %30 = arith.index_cast %29 : i32 to index
    %31 = memref.load %arg1[%30] : memref<32xi32, #tpu.memory_space<smem>>
    %c8_i32 = arith.constant 8 : i32
    %32 = vector.broadcast %c8_i32 : i32 to vector<128x1xi32>
    %33 = arith.cmpi sge, %14, %32 : vector<128x1xi32>
    %34 = vector.broadcast %31 : i32 to vector<128x1xi32>
    %35 = arith.select %33, %34, %27 : vector<128x1xi1>, vector<128x1xi32>
    %c16_i32_13 = arith.constant 16 : i32
    %36 = arith.muli %arg0, %c16_i32_13 : i32
    %c2_i32 = arith.constant 2 : i32
    %37 = arith.addi %36, %c2_i32 : i32
    %38 = arith.index_cast %37 : i32 to index
    %39 = memref.load %arg1[%38] : memref<32xi32, #tpu.memory_space<smem>>
    %c16_i32_14 = arith.constant 16 : i32
    %40 = vector.broadcast %c16_i32_14 : i32 to vector<128x1xi32>
    %41 = arith.cmpi sge, %14, %40 : vector<128x1xi32>
    %42 = vector.broadcast %39 : i32 to vector<128x1xi32>
    %43 = arith.select %41, %42, %35 : vector<128x1xi1>, vector<128x1xi32>
    %c16_i32_15 = arith.constant 16 : i32
    %44 = arith.muli %arg0, %c16_i32_15 : i32
    %c3_i32 = arith.constant 3 : i32
    %45 = arith.addi %44, %c3_i32 : i32
    %46 = arith.index_cast %45 : i32 to index
    %47 = memref.load %arg1[%46] : memref<32xi32, #tpu.memory_space<smem>>
    %c24_i32 = arith.constant 24 : i32
    %48 = vector.broadcast %c24_i32 : i32 to vector<128x1xi32>
    %49 = arith.cmpi sge, %14, %48 : vector<128x1xi32>
    %50 = vector.broadcast %47 : i32 to vector<128x1xi32>
    %51 = arith.select %49, %50, %43 : vector<128x1xi1>, vector<128x1xi32>
    %c16_i32_16 = arith.constant 16 : i32
    %52 = arith.muli %arg0, %c16_i32_16 : i32
    %c4_i32 = arith.constant 4 : i32
    %53 = arith.addi %52, %c4_i32 : i32
    %54 = arith.index_cast %53 : i32 to index
    %55 = memref.load %arg1[%54] : memref<32xi32, #tpu.memory_space<smem>>
    %c32_i32 = arith.constant 32 : i32
    %56 = vector.broadcast %c32_i32 : i32 to vector<128x1xi32>
    %57 = arith.cmpi sge, %14, %56 : vector<128x1xi32>
    %58 = vector.broadcast %55 : i32 to vector<128x1xi32>
    %59 = arith.select %57, %58, %51 : vector<128x1xi1>, vector<128x1xi32>
    %c16_i32_17 = arith.constant 16 : i32
    %60 = arith.muli %arg0, %c16_i32_17 : i32
    %c5_i32 = arith.constant 5 : i32
    %61 = arith.addi %60, %c5_i32 : i32
    %62 = arith.index_cast %61 : i32 to index
    %63 = memref.load %arg1[%62] : memref<32xi32, #tpu.memory_space<smem>>
    %c40_i32 = arith.constant 40 : i32
    %64 = vector.broadcast %c40_i32 : i32 to vector<128x1xi32>
    %65 = arith.cmpi sge, %14, %64 : vector<128x1xi32>
    %66 = vector.broadcast %63 : i32 to vector<128x1xi32>
    %67 = arith.select %65, %66, %59 : vector<128x1xi1>, vector<128x1xi32>
    %c16_i32_18 = arith.constant 16 : i32
    %68 = arith.muli %arg0, %c16_i32_18 : i32
    %c6_i32 = arith.constant 6 : i32
    %69 = arith.addi %68, %c6_i32 : i32
    %70 = arith.index_cast %69 : i32 to index
    %71 = memref.load %arg1[%70] : memref<32xi32, #tpu.memory_space<smem>>
    %c48_i32 = arith.constant 48 : i32
    %72 = vector.broadcast %c48_i32 : i32 to vector<128x1xi32>
    %73 = arith.cmpi sge, %14, %72 : vector<128x1xi32>
    %74 = vector.broadcast %71 : i32 to vector<128x1xi32>
    %75 = arith.select %73, %74, %67 : vector<128x1xi1>, vector<128x1xi32>
    %c16_i32_19 = arith.constant 16 : i32
    %76 = arith.muli %arg0, %c16_i32_19 : i32
    %c7_i32_20 = arith.constant 7 : i32
    %77 = arith.addi %76, %c7_i32_20 : i32
    %78 = arith.index_cast %77 : i32 to index
    %79 = memref.load %arg1[%78] : memref<32xi32, #tpu.memory_space<smem>>
    %c56_i32 = arith.constant 56 : i32
    %80 = vector.broadcast %c56_i32 : i32 to vector<128x1xi32>
    %81 = arith.cmpi sge, %14, %80 : vector<128x1xi32>
    %82 = vector.broadcast %79 : i32 to vector<128x1xi32>
    %83 = arith.select %81, %82, %75 : vector<128x1xi1>, vector<128x1xi32>
    %c16_i32_21 = arith.constant 16 : i32
    %84 = arith.muli %arg0, %c16_i32_21 : i32
    %c8_i32_22 = arith.constant 8 : i32
    %85 = arith.addi %84, %c8_i32_22 : i32
    %86 = arith.index_cast %85 : i32 to index
    %87 = memref.load %arg1[%86] : memref<32xi32, #tpu.memory_space<smem>>
    %c64_i32 = arith.constant 64 : i32
    %88 = vector.broadcast %c64_i32 : i32 to vector<128x1xi32>
    %89 = arith.cmpi sge, %14, %88 : vector<128x1xi32>
    %90 = vector.broadcast %87 : i32 to vector<128x1xi32>
    %91 = arith.select %89, %90, %83 : vector<128x1xi1>, vector<128x1xi32>
    %c16_i32_23 = arith.constant 16 : i32
    %92 = arith.muli %arg0, %c16_i32_23 : i32
    %c9_i32 = arith.constant 9 : i32
    %93 = arith.addi %92, %c9_i32 : i32
    %94 = arith.index_cast %93 : i32 to index
    %95 = memref.load %arg1[%94] : memref<32xi32, #tpu.memory_space<smem>>
    %c72_i32 = arith.constant 72 : i32
    %96 = vector.broadcast %c72_i32 : i32 to vector<128x1xi32>
    %97 = arith.cmpi sge, %14, %96 : vector<128x1xi32>
    %98 = vector.broadcast %95 : i32 to vector<128x1xi32>
    %99 = arith.select %97, %98, %91 : vector<128x1xi1>, vector<128x1xi32>
    %c16_i32_24 = arith.constant 16 : i32
    %100 = arith.muli %arg0, %c16_i32_24 : i32
    %c10_i32 = arith.constant 10 : i32
    %101 = arith.addi %100, %c10_i32 : i32
    %102 = arith.index_cast %101 : i32 to index
    %103 = memref.load %arg1[%102] : memref<32xi32, #tpu.memory_space<smem>>
    %c80_i32 = arith.constant 80 : i32
    %104 = vector.broadcast %c80_i32 : i32 to vector<128x1xi32>
    %105 = arith.cmpi sge, %14, %104 : vector<128x1xi32>
    %106 = vector.broadcast %103 : i32 to vector<128x1xi32>
    %107 = arith.select %105, %106, %99 : vector<128x1xi1>, vector<128x1xi32>
    %c16_i32_25 = arith.constant 16 : i32
    %108 = arith.muli %arg0, %c16_i32_25 : i32
    %c11_i32 = arith.constant 11 : i32
    %109 = arith.addi %108, %c11_i32 : i32
    %110 = arith.index_cast %109 : i32 to index
    %111 = memref.load %arg1[%110] : memref<32xi32, #tpu.memory_space<smem>>
    %c88_i32 = arith.constant 88 : i32
    %112 = vector.broadcast %c88_i32 : i32 to vector<128x1xi32>
    %113 = arith.cmpi sge, %14, %112 : vector<128x1xi32>
    %114 = vector.broadcast %111 : i32 to vector<128x1xi32>
    %115 = arith.select %113, %114, %107 : vector<128x1xi1>, vector<128x1xi32>
    %c16_i32_26 = arith.constant 16 : i32
    %116 = arith.muli %arg0, %c16_i32_26 : i32
    %c12_i32 = arith.constant 12 : i32
    %117 = arith.addi %116, %c12_i32 : i32
    %118 = arith.index_cast %117 : i32 to index
    %119 = memref.load %arg1[%118] : memref<32xi32, #tpu.memory_space<smem>>
    %c96_i32 = arith.constant 96 : i32
    %120 = vector.broadcast %c96_i32 : i32 to vector<128x1xi32>
    %121 = arith.cmpi sge, %14, %120 : vector<128x1xi32>
    %122 = vector.broadcast %119 : i32 to vector<128x1xi32>
    %123 = arith.select %121, %122, %115 : vector<128x1xi1>, vector<128x1xi32>
    %c16_i32_27 = arith.constant 16 : i32
    %124 = arith.muli %arg0, %c16_i32_27 : i32
    %c13_i32 = arith.constant 13 : i32
    %125 = arith.addi %124, %c13_i32 : i32
    %126 = arith.index_cast %125 : i32 to index
    %127 = memref.load %arg1[%126] : memref<32xi32, #tpu.memory_space<smem>>
    %c104_i32 = arith.constant 104 : i32
    %128 = vector.broadcast %c104_i32 : i32 to vector<128x1xi32>
    %129 = arith.cmpi sge, %14, %128 : vector<128x1xi32>
    %130 = vector.broadcast %127 : i32 to vector<128x1xi32>
    %131 = arith.select %129, %130, %123 : vector<128x1xi1>, vector<128x1xi32>
    %c16_i32_28 = arith.constant 16 : i32
    %132 = arith.muli %arg0, %c16_i32_28 : i32
    %c14_i32 = arith.constant 14 : i32
    %133 = arith.addi %132, %c14_i32 : i32
    %134 = arith.index_cast %133 : i32 to index
    %135 = memref.load %arg1[%134] : memref<32xi32, #tpu.memory_space<smem>>
    %c112_i32 = arith.constant 112 : i32
    %136 = vector.broadcast %c112_i32 : i32 to vector<128x1xi32>
    %137 = arith.cmpi sge, %14, %136 : vector<128x1xi32>
    %138 = vector.broadcast %135 : i32 to vector<128x1xi32>
    %139 = arith.select %137, %138, %131 : vector<128x1xi1>, vector<128x1xi32>
    %c16_i32_29 = arith.constant 16 : i32
    %140 = arith.muli %arg0, %c16_i32_29 : i32
    %c15_i32 = arith.constant 15 : i32
    %141 = arith.addi %140, %c15_i32 : i32
    %142 = arith.index_cast %141 : i32 to index
    %143 = memref.load %arg1[%142] : memref<32xi32, #tpu.memory_space<smem>>
    %c120_i32 = arith.constant 120 : i32
    %144 = vector.broadcast %c120_i32 : i32 to vector<128x1xi32>
    %145 = arith.cmpi sge, %14, %144 : vector<128x1xi32>
    %146 = vector.broadcast %143 : i32 to vector<128x1xi32>
    %147 = arith.select %145, %146, %139 : vector<128x1xi1>, vector<128x1xi32>
    %148 = arith.subi %14, %19 : vector<128x1xi32>
    %149 = arith.cmpi slt, %148, %147 : vector<128x1xi32>
    %150 = vector.broadcast %15 : vector<1x128xi32> to vector<128x128xi32>
    %151 = vector.broadcast %19 : vector<128x1xi32> to vector<128x128xi32>
    %152 = arith.cmpi sge, %150, %151 : vector<128x128xi32>
    %153 = vector.broadcast %149 : vector<128x1xi1> to vector<128x128xi1>
    %154 = arith.andi %153, %152 : vector<128x128xi1>
    %155 = arith.addi %19, %147 : vector<128x1xi32>
    %156 = vector.broadcast %15 : vector<1x128xi32> to vector<128x128xi32>
    %157 = vector.broadcast %155 : vector<128x1xi32> to vector<128x128xi32>
    %158 = arith.cmpi slt, %156, %157 : vector<128x128xi32>
    %159 = arith.andi %154, %158 : vector<128x128xi1>
    %cst_30 = arith.constant 0.000000e+00 : f32
    %cst_31 = arith.constant -1.000000e+30 : f32
    %160 = vector.broadcast %cst_30 : f32 to vector<128x128xf32>
    %161 = vector.broadcast %cst_31 : f32 to vector<128x128xf32>
    %162 = arith.select %159, %160, %161 : vector<128x128xi1>, vector<128x128xf32>
    %163 = arith.extui %149 : vector<128x1xi1> to vector<128x1xi32>
    %164 = arith.sitofp %163 : vector<128x1xi32> to vector<128x1xf32>
    %165 = vector.broadcast %164 : vector<128x1xf32> to vector<128x32xf32>
    %166 = arith.mulf %11, %165 : vector<128x32xf32>
    %cst_32 = arith.constant 0.176776692 : f32
    %167 = vector.broadcast %cst_32 : f32 to vector<128x32xf32>
    %168 = arith.mulf %166, %167 : vector<128x32xf32>
    %169 = tpu.iota {dimensions = array<i32: 1>} : vector<1x32xi32>
    %cst_33 = arith.constant 0.000000e+00 : f32
    %170 = vector.broadcast %cst_33 : f32 to vector<128x32xf32>
    %c0_i32_34 = arith.constant 0 : i32
    %171 = vector.broadcast %c0_i32_34 : i32 to vector<1x32xi32>
    %172 = arith.cmpi sge, %169, %171 : vector<1x32xi32>
    %c8_i32_35 = arith.constant 8 : i32
    %173 = vector.broadcast %c8_i32_35 : i32 to vector<1x32xi32>
    %174 = arith.cmpi slt, %169, %173 : vector<1x32xi32>
    %175 = arith.andi %172, %174 : vector<1x32xi1>
    %176 = arith.extui %175 : vector<1x32xi1> to vector<1x32xi32>
    %177 = arith.sitofp %176 : vector<1x32xi32> to vector<1x32xf32>
    %178 = vector.broadcast %177 : vector<1x32xf32> to vector<128x32xf32>
    %179 = arith.mulf %168, %178 : vector<128x32xf32>
    %cst_36 = arith.constant dense<0.000000e+00> : vector<128x128xf32>
    %180 = tpu.matmul %179, %12, %cst_36 {dimension_numbers = #tpu.dot_dimension_numbers<[1], [1], [0], [0], [0, 0, 1, 0], [], []>} : vector<128x32xf32>, vector<128x32xf32>, vector<128x128xf32> -> vector<128x128xf32>
    %181 = arith.addf %180, %162 : vector<128x128xf32>
    %cst_37 = arith.constant dense<0xFF800000> : vector<128xf32>
    %182 = vector.multi_reduction <maximumf>, %181, %cst_37 [1] : vector<128x128xf32> to vector<128xf32>
    %183 = vector.shape_cast %182 : vector<128xf32> to vector<128x1xf32>
    %cst_38 = arith.constant 0.000000e+00 : f32
    %184 = vector.broadcast %cst_38 : f32 to vector<128x1xf32>
    %185 = arith.maximumf %183, %184 : vector<128x1xf32>
    %186 = vector.broadcast %185 : vector<128x1xf32> to vector<128x128xf32>
    %187 = arith.subf %181, %186 : vector<128x128xf32>
    %188 = math.exp %187 : vector<128x128xf32>
    %cst_39 = arith.constant dense<0.000000e+00> : vector<128xf32>
    %189 = vector.multi_reduction <add>, %188, %cst_39 [1] : vector<128x128xf32> to vector<128xf32>
    %190 = vector.shape_cast %189 : vector<128xf32> to vector<128x1xf32>
    %cst_40 = arith.constant 1.000000e-15 : f32
    %191 = vector.broadcast %cst_40 : f32 to vector<128x1xf32>
    %192 = arith.addf %190, %191 : vector<128x1xf32>
    %cst_41 = arith.constant 1.000000e+00 : f32
    %193 = vector.broadcast %cst_41 : f32 to vector<128x1xf32>
    %194 = arith.divf %193, %192 : vector<128x1xf32>
    %195 = vector.broadcast %194 : vector<128x1xf32> to vector<128x128xf32>
    %196 = arith.mulf %188, %195 : vector<128x128xf32>
    %197 = vector.broadcast %177 : vector<1x32xf32> to vector<128x32xf32>
    %198 = arith.mulf %13, %197 : vector<128x32xf32>
    %cst_42 = arith.constant dense<0.000000e+00> : vector<128x32xf32>
    %199 = tpu.matmul %196, %198, %cst_42 {dimension_numbers = #tpu.dot_dimension_numbers<[1], [0], [0], [1], [0, 0, 1, 1], [], []>} : vector<128x128xf32>, vector<128x32xf32>, vector<128x32xf32> -> vector<128x32xf32>
    %200 = arith.addf %170, %199 : vector<128x32xf32>
    %c8_i32_43 = arith.constant 8 : i32
    %201 = vector.broadcast %c8_i32_43 : i32 to vector<1x32xi32>
    %202 = arith.cmpi sge, %169, %201 : vector<1x32xi32>
    %c16_i32_44 = arith.constant 16 : i32
    %203 = vector.broadcast %c16_i32_44 : i32 to vector<1x32xi32>
    %204 = arith.cmpi slt, %169, %203 : vector<1x32xi32>
    %205 = arith.andi %202, %204 : vector<1x32xi1>
    %206 = arith.extui %205 : vector<1x32xi1> to vector<1x32xi32>
    %207 = arith.sitofp %206 : vector<1x32xi32> to vector<1x32xf32>
    %208 = vector.broadcast %207 : vector<1x32xf32> to vector<128x32xf32>
    %209 = arith.mulf %168, %208 : vector<128x32xf32>
    %cst_45 = arith.constant dense<0.000000e+00> : vector<128x128xf32>
    %210 = tpu.matmul %209, %12, %cst_45 {dimension_numbers = #tpu.dot_dimension_numbers<[1], [1], [0], [0], [0, 0, 1, 0], [], []>} : vector<128x32xf32>, vector<128x32xf32>, vector<128x128xf32> -> vector<128x128xf32>
    %211 = arith.addf %210, %162 : vector<128x128xf32>
    %cst_46 = arith.constant dense<0xFF800000> : vector<128xf32>
    %212 = vector.multi_reduction <maximumf>, %211, %cst_46 [1] : vector<128x128xf32> to vector<128xf32>
    %213 = vector.shape_cast %212 : vector<128xf32> to vector<128x1xf32>
    %cst_47 = arith.constant 0.000000e+00 : f32
    %214 = vector.broadcast %cst_47 : f32 to vector<128x1xf32>
    %215 = arith.maximumf %213, %214 : vector<128x1xf32>
    %216 = vector.broadcast %215 : vector<128x1xf32> to vector<128x128xf32>
    %217 = arith.subf %211, %216 : vector<128x128xf32>
    %218 = math.exp %217 : vector<128x128xf32>
    %cst_48 = arith.constant dense<0.000000e+00> : vector<128xf32>
    %219 = vector.multi_reduction <add>, %218, %cst_48 [1] : vector<128x128xf32> to vector<128xf32>
    %220 = vector.shape_cast %219 : vector<128xf32> to vector<128x1xf32>
    %cst_49 = arith.constant 1.000000e-15 : f32
    %221 = vector.broadcast %cst_49 : f32 to vector<128x1xf32>
    %222 = arith.addf %220, %221 : vector<128x1xf32>
    %cst_50 = arith.constant 1.000000e+00 : f32
    %223 = vector.broadcast %cst_50 : f32 to vector<128x1xf32>
    %224 = arith.divf %223, %222 : vector<128x1xf32>
    %225 = vector.broadcast %224 : vector<128x1xf32> to vector<128x128xf32>
    %226 = arith.mulf %218, %225 : vector<128x128xf32>
    %227 = vector.broadcast %207 : vector<1x32xf32> to vector<128x32xf32>
    %228 = arith.mulf %13, %227 : vector<128x32xf32>
    %cst_51 = arith.constant dense<0.000000e+00> : vector<128x32xf32>
    %229 = tpu.matmul %226, %228, %cst_51 {dimension_numbers = #tpu.dot_dimension_numbers<[1], [0], [0], [1], [0, 0, 1, 1], [], []>} : vector<128x128xf32>, vector<128x32xf32>, vector<128x32xf32> -> vector<128x32xf32>
    %230 = arith.addf %200, %229 : vector<128x32xf32>
    %c16_i32_52 = arith.constant 16 : i32
    %231 = vector.broadcast %c16_i32_52 : i32 to vector<1x32xi32>
    %232 = arith.cmpi sge, %169, %231 : vector<1x32xi32>
    %c24_i32_53 = arith.constant 24 : i32
    %233 = vector.broadcast %c24_i32_53 : i32 to vector<1x32xi32>
    %234 = arith.cmpi slt, %169, %233 : vector<1x32xi32>
    %235 = arith.andi %232, %234 : vector<1x32xi1>
    %236 = arith.extui %235 : vector<1x32xi1> to vector<1x32xi32>
    %237 = arith.sitofp %236 : vector<1x32xi32> to vector<1x32xf32>
    %238 = vector.broadcast %237 : vector<1x32xf32> to vector<128x32xf32>
    %239 = arith.mulf %168, %238 : vector<128x32xf32>
    %cst_54 = arith.constant dense<0.000000e+00> : vector<128x128xf32>
    %240 = tpu.matmul %239, %12, %cst_54 {dimension_numbers = #tpu.dot_dimension_numbers<[1], [1], [0], [0], [0, 0, 1, 0], [], []>} : vector<128x32xf32>, vector<128x32xf32>, vector<128x128xf32> -> vector<128x128xf32>
    %241 = arith.addf %240, %162 : vector<128x128xf32>
    %cst_55 = arith.constant dense<0xFF800000> : vector<128xf32>
    %242 = vector.multi_reduction <maximumf>, %241, %cst_55 [1] : vector<128x128xf32> to vector<128xf32>
    %243 = vector.shape_cast %242 : vector<128xf32> to vector<128x1xf32>
    %cst_56 = arith.constant 0.000000e+00 : f32
    %244 = vector.broadcast %cst_56 : f32 to vector<128x1xf32>
    %245 = arith.maximumf %243, %244 : vector<128x1xf32>
    %246 = vector.broadcast %245 : vector<128x1xf32> to vector<128x128xf32>
    %247 = arith.subf %241, %246 : vector<128x128xf32>
    %248 = math.exp %247 : vector<128x128xf32>
    %cst_57 = arith.constant dense<0.000000e+00> : vector<128xf32>
    %249 = vector.multi_reduction <add>, %248, %cst_57 [1] : vector<128x128xf32> to vector<128xf32>
    %250 = vector.shape_cast %249 : vector<128xf32> to vector<128x1xf32>
    %cst_58 = arith.constant 1.000000e-15 : f32
    %251 = vector.broadcast %cst_58 : f32 to vector<128x1xf32>
    %252 = arith.addf %250, %251 : vector<128x1xf32>
    %cst_59 = arith.constant 1.000000e+00 : f32
    %253 = vector.broadcast %cst_59 : f32 to vector<128x1xf32>
    %254 = arith.divf %253, %252 : vector<128x1xf32>
    %255 = vector.broadcast %254 : vector<128x1xf32> to vector<128x128xf32>
    %256 = arith.mulf %248, %255 : vector<128x128xf32>
    %257 = vector.broadcast %237 : vector<1x32xf32> to vector<128x32xf32>
    %258 = arith.mulf %13, %257 : vector<128x32xf32>
    %cst_60 = arith.constant dense<0.000000e+00> : vector<128x32xf32>
    %259 = tpu.matmul %256, %258, %cst_60 {dimension_numbers = #tpu.dot_dimension_numbers<[1], [0], [0], [1], [0, 0, 1, 1], [], []>} : vector<128x128xf32>, vector<128x32xf32>, vector<128x32xf32> -> vector<128x32xf32>
    %260 = arith.addf %230, %259 : vector<128x32xf32>
    %c24_i32_61 = arith.constant 24 : i32
    %261 = vector.broadcast %c24_i32_61 : i32 to vector<1x32xi32>
    %262 = arith.cmpi sge, %169, %261 : vector<1x32xi32>
    %c32_i32_62 = arith.constant 32 : i32
    %263 = vector.broadcast %c32_i32_62 : i32 to vector<1x32xi32>
    %264 = arith.cmpi slt, %169, %263 : vector<1x32xi32>
    %265 = arith.andi %262, %264 : vector<1x32xi1>
    %266 = arith.extui %265 : vector<1x32xi1> to vector<1x32xi32>
    %267 = arith.sitofp %266 : vector<1x32xi32> to vector<1x32xf32>
    %268 = vector.broadcast %267 : vector<1x32xf32> to vector<128x32xf32>
    %269 = arith.mulf %168, %268 : vector<128x32xf32>
    %cst_63 = arith.constant dense<0.000000e+00> : vector<128x128xf32>
    %270 = tpu.matmul %269, %12, %cst_63 {dimension_numbers = #tpu.dot_dimension_numbers<[1], [1], [0], [0], [0, 0, 1, 0], [], []>} : vector<128x32xf32>, vector<128x32xf32>, vector<128x128xf32> -> vector<128x128xf32>
    %271 = arith.addf %270, %162 : vector<128x128xf32>
    %cst_64 = arith.constant dense<0xFF800000> : vector<128xf32>
    %272 = vector.multi_reduction <maximumf>, %271, %cst_64 [1] : vector<128x128xf32> to vector<128xf32>
    %273 = vector.shape_cast %272 : vector<128xf32> to vector<128x1xf32>
    %cst_65 = arith.constant 0.000000e+00 : f32
    %274 = vector.broadcast %cst_65 : f32 to vector<128x1xf32>
    %275 = arith.maximumf %273, %274 : vector<128x1xf32>
    %276 = vector.broadcast %275 : vector<128x1xf32> to vector<128x128xf32>
    %277 = arith.subf %271, %276 : vector<128x128xf32>
    %278 = math.exp %277 : vector<128x128xf32>
    %cst_66 = arith.constant dense<0.000000e+00> : vector<128xf32>
    %279 = vector.multi_reduction <add>, %278, %cst_66 [1] : vector<128x128xf32> to vector<128xf32>
    %280 = vector.shape_cast %279 : vector<128xf32> to vector<128x1xf32>
    %cst_67 = arith.constant 1.000000e-15 : f32
    %281 = vector.broadcast %cst_67 : f32 to vector<128x1xf32>
    %282 = arith.addf %280, %281 : vector<128x1xf32>
    %cst_68 = arith.constant 1.000000e+00 : f32
    %283 = vector.broadcast %cst_68 : f32 to vector<128x1xf32>
    %284 = arith.divf %283, %282 : vector<128x1xf32>
    %285 = vector.broadcast %284 : vector<128x1xf32> to vector<128x128xf32>
    %286 = arith.mulf %278, %285 : vector<128x128xf32>
    %287 = vector.broadcast %267 : vector<1x32xf32> to vector<128x32xf32>
    %288 = arith.mulf %13, %287 : vector<128x32xf32>
    %cst_69 = arith.constant dense<0.000000e+00> : vector<128x32xf32>
    %289 = tpu.matmul %286, %288, %cst_69 {dimension_numbers = #tpu.dot_dimension_numbers<[1], [0], [0], [1], [0, 0, 1, 1], [], []>} : vector<128x128xf32>, vector<128x32xf32>, vector<128x32xf32> -> vector<128x32xf32>
    %290 = arith.addf %260, %289 : vector<128x32xf32>
    %291 = arith.addf %166, %290 : vector<128x32xf32>
    %cst_70 = arith.constant dense<0.000000e+00> : vector<128xf32>
    %292 = vector.multi_reduction <add>, %291, %cst_70 [1] : vector<128x32xf32> to vector<128xf32>
    %293 = vector.shape_cast %292 : vector<128xf32> to vector<128x1xf32>
    %cst_71 = arith.constant 3.200000e+01 : f32
    %294 = vector.broadcast %cst_71 : f32 to vector<128x1xf32>
    %295 = arith.divf %293, %294 : vector<128x1xf32>
    %296 = vector.broadcast %295 : vector<128x1xf32> to vector<128x32xf32>
    %297 = arith.subf %291, %296 : vector<128x32xf32>
    %298 = arith.mulf %297, %297 : vector<128x32xf32>
    %cst_72 = arith.constant dense<0.000000e+00> : vector<128xf32>
    %299 = vector.multi_reduction <add>, %298, %cst_72 [1] : vector<128x32xf32> to vector<128xf32>
    %300 = vector.shape_cast %299 : vector<128xf32> to vector<128x1xf32>
    %cst_73 = arith.constant 3.200000e+01 : f32
    %301 = vector.broadcast %cst_73 : f32 to vector<128x1xf32>
    %302 = arith.divf %300, %301 : vector<128x1xf32>
    %303 = vector.broadcast %295 : vector<128x1xf32> to vector<128x32xf32>
    %304 = arith.subf %291, %303 : vector<128x32xf32>
    %cst_74 = arith.constant 9.99999974E-6 : f32
    %305 = vector.broadcast %cst_74 : f32 to vector<128x1xf32>
    %306 = arith.addf %302, %305 : vector<128x1xf32>
    %307 = math.rsqrt %306 : vector<128x1xf32>
    %308 = vector.broadcast %307 : vector<128x1xf32> to vector<128x32xf32>
    %309 = arith.mulf %304, %308 : vector<128x32xf32>
    %310 = vector.broadcast %2 : vector<1x32xf32> to vector<128x32xf32>
    %311 = arith.mulf %309, %310 : vector<128x32xf32>
    %312 = vector.broadcast %3 : vector<1x32xf32> to vector<128x32xf32>
    %313 = arith.addf %311, %312 : vector<128x32xf32>
    %c0_75 = arith.constant 0 : index
    %c0_76 = arith.constant 0 : index
    %314 = vector.load %arg4[%c0_75, %c0_76] : memref<32x32xf32, #tpu.memory_space<vmem>>, vector<32x32xf32>
    %cst_77 = arith.constant dense<0.000000e+00> : vector<128x32xf32>
    %315 = tpu.matmul %313, %314, %cst_77 {dimension_numbers = #tpu.dot_dimension_numbers<[1], [0], [0], [1], [0, 0, 1, 1], [], []>} : vector<128x32xf32>, vector<32x32xf32>, vector<128x32xf32> -> vector<128x32xf32>
    %316 = vector.broadcast %1 : vector<1x32xf32> to vector<128x32xf32>
    %317 = arith.addf %315, %316 : vector<128x32xf32>
    %cst_78 = arith.constant 0.000000e+00 : f32
    %318 = vector.broadcast %cst_78 : f32 to vector<128x32xf32>
    %319 = arith.maximumf %317, %318 : vector<128x32xf32>
    %320 = arith.addf %313, %319 : vector<128x32xf32>
    %cst_79 = arith.constant dense<0.000000e+00> : vector<128xf32>
    %321 = vector.multi_reduction <add>, %320, %cst_79 [1] : vector<128x32xf32> to vector<128xf32>
    %322 = vector.shape_cast %321 : vector<128xf32> to vector<128x1xf32>
    %cst_80 = arith.constant 3.200000e+01 : f32
    %323 = vector.broadcast %cst_80 : f32 to vector<128x1xf32>
    %324 = arith.divf %322, %323 : vector<128x1xf32>
    %325 = vector.broadcast %324 : vector<128x1xf32> to vector<128x32xf32>
    %326 = arith.subf %320, %325 : vector<128x32xf32>
    %327 = arith.mulf %326, %326 : vector<128x32xf32>
    %cst_81 = arith.constant dense<0.000000e+00> : vector<128xf32>
    %328 = vector.multi_reduction <add>, %327, %cst_81 [1] : vector<128x32xf32> to vector<128xf32>
    %329 = vector.shape_cast %328 : vector<128xf32> to vector<128x1xf32>
    %cst_82 = arith.constant 3.200000e+01 : f32
    %330 = vector.broadcast %cst_82 : f32 to vector<128x1xf32>
    %331 = arith.divf %329, %330 : vector<128x1xf32>
    %332 = vector.broadcast %324 : vector<128x1xf32> to vector<128x32xf32>
    %333 = arith.subf %320, %332 : vector<128x32xf32>
    %cst_83 = arith.constant 9.99999974E-6 : f32
    %334 = vector.broadcast %cst_83 : f32 to vector<128x1xf32>
    %335 = arith.addf %331, %334 : vector<128x1xf32>
    %336 = math.rsqrt %335 : vector<128x1xf32>
    %337 = vector.broadcast %336 : vector<128x1xf32> to vector<128x32xf32>
    %338 = arith.mulf %333, %337 : vector<128x32xf32>
    %339 = vector.broadcast %4 : vector<1x32xf32> to vector<128x32xf32>
    %340 = arith.mulf %338, %339 : vector<128x32xf32>
    %341 = vector.broadcast %5 : vector<1x32xf32> to vector<128x32xf32>
    %342 = arith.addf %340, %341 : vector<128x32xf32>
    %cst_84 = arith.constant 0.000000e+00 : f32
    %343 = vector.broadcast %cst_84 : f32 to vector<128x96xf32>
    %344 = tpu.concatenate %342, %343 in 1 : vector<128x32xf32>, vector<128x96xf32> -> vector<128x128xf32>
    %c0_85 = arith.constant 0 : index
    %c0_86 = arith.constant 0 : index
    %345 = vector.load %arg6[%c0_85, %c0_86] : memref<128x128xf32, #tpu.memory_space<vmem>>, vector<128x128xf32>
    tpu.vector_store %arg6[%c0_85, %c0_86], %344 {strides = array<i32>} : memref<128x128xf32, #tpu.memory_space<vmem>>, vector<128x128xf32>,
    return
  }
  func.func @transform_0(%arg0: i32, %arg1: memref<32xi32, #tpu.memory_space<smem>>) -> (i32, i32) {
    %c0_i32 = arith.constant 0 : i32
    %c0_i32_0 = arith.constant 0 : i32
    return %arg0, %c0_i32 : i32, i32
  }
  func.func @transform_1(%arg0: i32, %arg1: memref<32xi32, #tpu.memory_space<smem>>) -> (i32, i32) {
    %c0_i32 = arith.constant 0 : i32
    %c0_i32_0 = arith.constant 0 : i32
    %c0_i32_1 = arith.constant 0 : i32
    return %c0_i32, %c0_i32_0 : i32, i32
  }
  func.func @transform_2(%arg0: i32, %arg1: memref<32xi32, #tpu.memory_space<smem>>) -> (i32, i32) {
    %c0_i32 = arith.constant 0 : i32
    %c0_i32_0 = arith.constant 0 : i32
    %c0_i32_1 = arith.constant 0 : i32
    return %c0_i32, %c0_i32_0 : i32, i32
  }
  func.func @transform_3(%arg0: i32, %arg1: memref<32xi32, #tpu.memory_space<smem>>) -> (i32, i32) {
    %c0_i32 = arith.constant 0 : i32
    %c0_i32_0 = arith.constant 0 : i32
    %c0_i32_1 = arith.constant 0 : i32
    return %c0_i32, %c0_i32_0 : i32, i32
  }
  func.func @transform_4(%arg0: i32, %arg1: memref<32xi32, #tpu.memory_space<smem>>) -> (i32, i32) {
    %c0_i32 = arith.constant 0 : i32
    %c0_i32_0 = arith.constant 0 : i32
    return %arg0, %c0_i32 : i32, i32
  }
}

</mosaic_0001>

<llo_original>
// kernel: tpu_custom_call.1
$region0: #{tpu_custom_call.1}
  #allocation0 [shape = 'u32[]', space=smem, size = 0x4, offset = 0x4, fixed_abs, tag = 'smem constant byte address 0x4 - core index']
  #allocation1 [shape = 'u32[144,128]{1,0:T(1,128)}', space=vmem, size = 0x12000, scoped, tag = 'internal scratch']
  #allocation2 [shape = 's32[1]{0}', space=sflag, size = 0x4, scoped, tag = 'scoped memory for tpu_custom_call.1']
  #allocation3 [shape = 'u8[512]{0}', space=smem, size = 0x200, scoped, tag = 'prefetched SMEM operand 0']
  %s0 = inlined_call_operand.vmem [shape: s32[32], index: 0, kind: input, shape index: {}]
  %s1 = inlined_call_operand.vmem [shape: f32[256,64], index: 1, kind: input, shape index: {}]
  %s2 = inlined_call_operand.vmem [shape: f32[64,96], index: 2, kind: input, shape index: {}]
  %s3 = inlined_call_operand.vmem [shape: f32[32,32], index: 3, kind: input, shape index: {}]
  %s4 = inlined_call_operand.vmem [shape: f32[8,96], index: 4, kind: input, shape index: {}]
  %s5 = inlined_call_operand.hbm [shape: f32[256,128], index: 5, kind: output, shape index: {}]
  %s6 = sld [smem:[#allocation0]]
  $region49: #{tpu_custom_call.1} parent=0
    _
  %s8 = ssub.s32 1, %s6
  %s9 = scalar_select 0, %s8, %s6
  %s10 = sshll.u32 %s0, 4
  %s11 = int_to_ptr.vmem [resolvable:$true] %s10
  %13 = dma.vmem_to_smem %s11, 16, [#allocation3], [#allocation2]
  %14 = dma.done [#allocation2], 16
  %15 = sfence
  $region1: #{tpu_custom_call.1} parent=0
    #allocation4 [shape = 'u8[131072]{0}', space=vmem, size = 0x20000, scoped, tag = 'output window, operand 0']
    #allocation5 [shape = 's32[2]{0}', space=sflag, size = 0x8, scoped, tag = 'scoped memory for tpu_custom_call.1']
    %16 = vsyncpa [#allocation5], 0
    %s17 = scalar_lea.sflag [#allocation5], 1
    %18 = vsyncpa %s17, 0
    loop: start=0, step=1, limit=4
    $region2: #{tpu_custom_call.1} parent=1 // loop_pre_header
      _
    $region3: #{tpu_custom_call.1} parent=1 // loop_header
      %s20 = sphi 0, %s24
      %p21 = scmp.ge.s32.totalorder %s20, 4
      %s30 = sphi 0, %s32
      %s33 = sphi 0, %s30
      %s34 = sphi 0, %s33
      %s50 = sphi 0, %s34
      %s54 = sphi 0, %s54
      %s56 = sphi 0, %s54
      %s57 = sphi 0, %s56
      %s71 = sphi 0, %s57
      %s75 = sphi 0, %s75
      %s77 = sphi 0, %s75
      %s78 = sphi 0, %s77
      %s92 = sphi 0, %s78
      %s96 = sphi 0, %s96
      %s98 = sphi 0, %s96
      %s99 = sphi 0, %s98
      %s113 = sphi 0, %s99
      %s119 = sphi 0, %s121
      %s122 = sphi 0, %s119
      %s123 = sphi 0, %s122
      %s139 = sphi 0, %s123
    $region4: #{tpu_custom_call.1} parent=1 // loop_header_branch
      %23 = sbr.rel (%p21) target = $region8
    $region5: #{tpu_custom_call.1} parent=1 // loop_body
      %s25 = ssub.s32 %s20, 1
      %s26 = ssub.s32 %s20, 2
      %s27 = sadd.s32 %s20, 1
      %s28 = ssub.s32 %s20, %s27
      %p29 = scmp.eq.s32.totalorder %s28, 0
      %s31 = sadd.s32 %s30, 1
      %s32 = scalar_select %p29, %s30, %s31
      %p35 = pneg %p29
      %p36 = scmp.eq.s32.totalorder %s20, 1
      %p37 = por %p35, %p36
      %p38 = scmp.ne.s32.totalorder %s30, %s33
      %p39 = scmp.eq.s32.totalorder %s20, 0
      %p40 = por %p38, %p39
      %p41 = scmp.ne.s32.totalorder %s30, %s33
      %p42 = scmp.eq.s32.totalorder %s25, 1
      %p43 = por %p41, %p42
      %p44 = scmp.ne.s32.totalorder %s33, %s34
      %p45 = scmp.eq.s32.totalorder %s25, 0
      %p46 = por %p44, %p45
      %p47 = scmp.ne.s32.totalorder %s33, %s34
      %p48 = scmp.eq.s32.totalorder %s26, 1
      %p49 = por %p47, %p48
      %p51 = scmp.ne.s32.totalorder %s34, %s50
      %p52 = scmp.eq.s32.totalorder %s26, 0
      %p53 = por %p51, %p52
      %s55 = sadd.s32 %s54, 1
      %p58 = scmp.eq.s32.totalorder %s20, 1
      %p59 = scmp.ne.s32.totalorder %s54, %s56
      %p60 = scmp.eq.s32.totalorder %s20, 0
      %p61 = por %p59, %p60
      %p62 = scmp.ne.s32.totalorder %s54, %s56
      %p63 = scmp.eq.s32.totalorder %s25, 1
      %p64 = por %p62, %p63
      %p65 = scmp.ne.s32.totalorder %s56, %s57
      %p66 = scmp.eq.s32.totalorder %s25, 0
      %p67 = por %p65, %p66
      %p68 = scmp.ne.s32.totalorder %s56, %s57
      %p69 = scmp.eq.s32.totalorder %s26, 1
      %p70 = por %p68, %p69
      %p72 = scmp.ne.s32.totalorder %s57, %s71
      %p73 = scmp.eq.s32.totalorder %s26, 0
      %p74 = por %p72, %p73
      %s76 = sadd.s32 %s75, 1
      %p79 = scmp.eq.s32.totalorder %s20, 1
      %p80 = scmp.ne.s32.totalorder %s75, %s77
      %p81 = scmp.eq.s32.totalorder %s20, 0
      %p82 = por %p80, %p81
      %p83 = scmp.ne.s32.totalorder %s75, %s77
      %p84 = scmp.eq.s32.totalorder %s25, 1
      %p85 = por %p83, %p84
      %p86 = scmp.ne.s32.totalorder %s77, %s78
      %p87 = scmp.eq.s32.totalorder %s25, 0
      %p88 = por %p86, %p87
      %p89 = scmp.ne.s32.totalorder %s77, %s78
      %p90 = scmp.eq.s32.totalorder %s26, 1
      %p91 = por %p89, %p90
      %p93 = scmp.ne.s32.totalorder %s78, %s92
      %p94 = scmp.eq.s32.totalorder %s26, 0
      %p95 = por %p93, %p94
      %s97 = sadd.s32 %s96, 1
      %p100 = scmp.eq.s32.totalorder %s20, 1
      %p101 = scmp.ne.s32.totalorder %s96, %s98
      %p102 = scmp.eq.s32.totalorder %s20, 0
      %p103 = por %p101, %p102
      %p104 = scmp.ne.s32.totalorder %s96, %s98
      %p105 = scmp.eq.s32.totalorder %s25, 1
      %p106 = por %p104, %p105
      %p107 = scmp.ne.s32.totalorder %s98, %s99
      %p108 = scmp.eq.s32.totalorder %s25, 0
      %p109 = por %p107, %p108
      %p110 = scmp.ne.s32.totalorder %s98, %s99
      %p111 = scmp.eq.s32.totalorder %s26, 1
      %p112 = por %p110, %p111
      %p114 = scmp.ne.s32.totalorder %s99, %s113
      %p115 = scmp.eq.s32.totalorder %s26, 0
      %p116 = por %p114, %p115
      %s117 = ssub.s32 %s20, %s27
      %p118 = scmp.eq.s32.totalorder %s117, 0
      %s120 = sadd.s32 %s119, 1
      %s121 = scalar_select %p118, %s119, %s120
      %p124 = pneg %p118
      %p125 = scmp.eq.s32.totalorder %s20, 1
      %p126 = por %p124, %p125
      %p127 = scmp.ne.s32.totalorder %s119, %s122
      %p128 = scmp.eq.s32.totalorder %s20, 0
      %p129 = por %p127, %p128
      %p130 = scmp.ne.s32.totalorder %s119, %s122
      %p131 = scmp.eq.s32.totalorder %s25, 1
      %p132 = por %p130, %p131
      %p133 = scmp.ne.s32.totalorder %s122, %s123
      %p134 = scmp.eq.s32.totalorder %s25, 0
      %p135 = por %p133, %p134
      %p136 = scmp.ne.s32.totalorder %s122, %s123
      %p137 = scmp.eq.s32.totalorder %s26, 1
      %p138 = por %p136, %p137
      %p140 = scmp.ne.s32.totalorder %s123, %s139
      %p141 = scmp.eq.s32.totalorder %s26, 0
      %p142 = por %p140, %p141
      %p143 = scmp.le.s32.totalorder 1, %s20
      %p144 = scmp.lt.s32.totalorder %s20, 3
      %p145 = pnand %p143, %p144
      %p146 = pneg %p145
      // Predicated region
      $region9: #{tpu_custom_call.1} parent=5 // pred_check
        _
      $region10: #{tpu_custom_call.1} parent=5 // pred_check_branch
        %148 = sbr.rel (%p145) target = $region12
      $region11: #{tpu_custom_call.1} parent=5 // pred_region
        %s149 = ssub.s32 %s20, 1
        // Predicated region
        $region13: #{tpu_custom_call.1} parent=11 // pred_check
          %p150 = pneg %p67
        $region14: #{tpu_custom_call.1} parent=11 // pred_check_branch
          %152 = sbr.rel (%p150) target = $region16
        $region15: #{tpu_custom_call.1} parent=11 // pred_region
          _
        $region16: #{tpu_custom_call.1} parent=11 // pred_fallthru
          _
        // Predicated region
        $region17: #{tpu_custom_call.1} parent=11 // pred_check
          %p153 = pneg %p88
        $region18: #{tpu_custom_call.1} parent=11 // pred_check_branch
          %155 = sbr.rel (%p153) target = $region20
        $region19: #{tpu_custom_call.1} parent=11 // pred_region
          _
        $region20: #{tpu_custom_call.1} parent=11 // pred_fallthru
          _
        // Predicated region
        $region21: #{tpu_custom_call.1} parent=11 // pred_check
          %p156 = pneg %p109
        $region22: #{tpu_custom_call.1} parent=11 // pred_check_branch
          %158 = sbr.rel (%p156) target = $region24
        $region23: #{tpu_custom_call.1} parent=11 // pred_region
          _
        $region24: #{tpu_custom_call.1} parent=11 // pred_fallthru
          _
      $region12: #{tpu_custom_call.1} parent=5 // pred_fallthru
        _
      %p159 = scmp.lt.s32.totalorder %s20, 2
      // Predicated region
      $region25: #{tpu_custom_call.1} parent=5 // pred_check
        %p160 = pneg %p159
      $region26: #{tpu_custom_call.1} parent=5 // pred_check_branch
        %162 = sbr.rel (%p160) target = $region28
      $region27: #{tpu_custom_call.1} parent=5 // pred_region
        // Predicated region
        $region29: #{tpu_custom_call.1} parent=27 // pred_check
          %p163 = pneg %p40
        $region30: #{tpu_custom_call.1} parent=27 // pred_check_branch
          %165 = sbr.rel (%p163) target = $region32
        $region31: #{tpu_custom_call.1} parent=27 // pred_region
          %s166 = smul.u32 16, %s20
          %p167 = scmp.lt.s32.totalorder %s166, 31
          %s168 = scalar_select %p167, %s166, 31
          %s169 = smul.addr %s168, 8
          %s170 = scalar_lea.vmem %s1, %s169
          %s171 = smul.u32 16, %s20
        $region32: #{tpu_custom_call.1} parent=27 // pred_fallthru
          _
      $region28: #{tpu_custom_call.1} parent=5 // pred_fallthru
        _
      %p172 = scmp.le.s32.totalorder 1, %s20
      %p173 = scmp.lt.s32.totalorder %s20, 3
      %p174 = pnand %p172, %p173
      %p175 = pneg %p174
      // Predicated region
      $region33: #{tpu_custom_call.1} parent=5 // pred_check
        _
      $region34: #{tpu_custom_call.1} parent=5 // pred_check_branch
        %177 = sbr.rel (%p174) target = $region36
      $region35: #{tpu_custom_call.1} parent=5 // pred_region
        %s178 = ssub.s32 %s20, 1
        %s179 = smul.u32 16, %s25
        %p180 = scmp.lt.s32.totalorder %s179, 31
        %s181 = scalar_select %p180, %s179, 31
        %s182 = smul.addr %s181, 8
        %s183 = scalar_lea.vmem %s1, %s182
        %p184 = pneg %p46
        %p185 = pneg %p43
        %p186 = pneg %p67
        %p187 = pneg %p64
        %p188 = pneg %p88
        %p189 = pneg %p85
        %p190 = pneg %p109
        %p191 = pneg %p106
        %p192 = pneg %p135
        %p193 = pneg %p132
        %s194 = sand.u32 %s122, 1
        %s195 = scalar_lea.sflag [#allocation5], %s194
        %s196 = sand.u32 %s122, 1
        %s197 = smul.addr %s196, 128
        %s198 = scalar_lea.vmem [#allocation4], %s197
        %s199 = smul.u32 16, %s25
        %p200 = scmp.lt.s32.totalorder %s199, 31
        %s201 = scalar_select %p200, %s199, 31
        %s202 = smul.addr %s201, 8
        %s203 = scalar_lea.vmem %s1, %s202
        %s204 = smul.u32 16, %s25
        %s205 = smul.u32 16, %s25
        %v206 = vld [vmem:[%s4] sm:$0x1]
        %v207 = vld [vmem:[%s4 + $0x1] sm:$0x1]
        %v208 = vld [vmem:[%s4 + $0x2] sm:$0x1]
        %v209 = vld [vmem:[%s4 + $0x3] sm:$0x1]
        %v210 = vld [vmem:[%s4 + $0x4] sm:$0x1]
        %v211 = vld [vmem:[%s4 + $0x5] sm:$0x1]
        %v212 = vld [vmem:[%s203] sm:$0xff]
        %v213 = vld [vmem:[%s203 + $0x8] sm:$0xff]
        %v214 = vld [vmem:[%s203 + $0x10] sm:$0xff]
        %v215 = vld [vmem:[%s203 + $0x18] sm:$0xff]
        %v216 = vld [vmem:[%s203 + $0x20] sm:$0xff]
        %v217 = vld [vmem:[%s203 + $0x28] sm:$0xff]
        %v218 = vld [vmem:[%s203 + $0x30] sm:$0xff]
        %v219 = vld [vmem:[%s203 + $0x38] sm:$0xff]
        %v220 = vld [vmem:[%s203 + $0x40] sm:$0xff]
        %v221 = vld [vmem:[%s203 + $0x48] sm:$0xff]
        %v222 = vld [vmem:[%s203 + $0x50] sm:$0xff]
        %v223 = vld [vmem:[%s203 + $0x58] sm:$0xff]
        %v224 = vld [vmem:[%s203 + $0x60] sm:$0xff]
        %v225 = vld [vmem:[%s203 + $0x68] sm:$0xff]
        %v226 = vld [vmem:[%s203 + $0x70] sm:$0xff]
        %v227 = vld [vmem:[%s203 + $0x78] sm:$0xff]
        %v228 = vld [vmem:[%s2] sm:$0xff]
        %v229 = vld [vmem:[%s2 + $0x8] sm:$0xff]
        %v230 = vld [vmem:[%s2 + $0x10] sm:$0xff]
        %v231 = vld [vmem:[%s2 + $0x18] sm:$0xff]
        %v232 = vld [vmem:[%s2 + $0x20] sm:$0xff]
        %v233 = vld [vmem:[%s2 + $0x28] sm:$0xff]
        %v234 = vld [vmem:[%s2 + $0x30] sm:$0xff]
        %v235 = vld [vmem:[%s2 + $0x38] sm:$0xff]
        %v236 = vlaneseq
        %v237 = vshrl.u32 %v236, 7
        %v238 = vsub.s32 0, %v237
        %v239 = vrot.slane %v206, %v238
        %vm240 = vcmask 523264
        %v242 = vsel %vm240, %v212, 0
        %v245 = vsel %vm240, %v213, 0
        %v248 = vsel %vm240, %v214, 0
        %v251 = vsel %vm240, %v215, 0
        %v254 = vsel %vm240, %v216, 0
        %v257 = vsel %vm240, %v217, 0
        %v260 = vsel %vm240, %v218, 0
        %v263 = vsel %vm240, %v219, 0
        %v266 = vsel %vm240, %v220, 0
        %v269 = vsel %vm240, %v221, 0
        %v272 = vsel %vm240, %v222, 0
        %v275 = vsel %vm240, %v223, 0
        %v278 = vsel %vm240, %v224, 0
        %v281 = vsel %vm240, %v225, 0
        %v284 = vsel %vm240, %v226, 0
        %v287 = vsel %vm240, %v227, 0
        %289 = vmatprep.subr.mxu0 0.0
        %290 = vmatpush1.msra.mxu0 %v228
        %291 = vmatprep.subr.mxu0 0.0
        %292 = vmatpush1.msra.mxu0 %v229
        %293 = vmatprep.subr.mxu0 0.0
        %294 = vmatpush1.msra.mxu0 %v230
        %295 = vmatprep.subr.mxu0 0.0
        %296 = vmatpush1.msra.mxu0 %v231
        %297 = vmatprep.subr.mxu0 0.0
        %298 = vmatpush1.msra.mxu0 %v232
        %299 = vmatprep.subr.mxu0 0.0
        %300 = vmatpush1.msra.mxu0 %v233
        %301 = vmatprep.subr.mxu0 0.0
        %302 = vmatpush1.msra.mxu0 %v234
        %303 = vmatprep.subr.mxu0 0.0
        %304 = vmatpush1.msra.mxu0 %v235
        %305 = vmatprep.subr.mxu0 0.0
        %306 = vmatpush1.msra.mxu0 0.0
        %307 = vmatprep.subr.mxu0 0.0
        %308 = vmatpush1.msra.mxu0 0.0
        %309 = vmatprep.subr.mxu0 0.0
        %310 = vmatpush1.msra.mxu0 0.0
        %311 = vmatprep.subr.mxu0 0.0
        %312 = vmatpush1.msra.mxu0 0.0
        %313 = vmatprep.subr.mxu0 0.0
        %314 = vmatpush1.msra.mxu0 0.0
        %315 = vmatprep.subr.mxu0 0.0
        %316 = vmatpush1.msra.mxu0 0.0
        %317 = vmatprep.subr.mxu0 0.0
        %318 = vmatpush1.msra.mxu0 0.0
        %319 = vmatprep.subr.mxu0 0.0
        %320 = vmatpush1.msra.mxu0 0.0
        %321 = vmatprep.subr.mxu0 0.0
        %322 = vmatpush1.msra.mxu0 0.0
        %323 = vmatprep.subr.mxu0 0.0
        %324 = vmatpush1.msra.mxu0 0.0
        %325 = vmatprep.subr.mxu0 0.0
        %326 = vmatpush1.msra.mxu0 0.0
        %327 = vmatprep.subr.mxu0 0.0
        %328 = vmatpush1.msra.mxu0 0.0
        %329 = vmatprep.subr.mxu0 0.0
        %330 = vmatpush1.msra.mxu0 0.0
        %331 = vmatprep.subr.mxu0 0.0
        %332 = vmatpush1.msra.mxu0 0.0
        %333 = vmatprep.subr.mxu0 0.0
        %334 = vmatpush1.msra.mxu0 0.0
        %335 = vmatprep.subr.mxu0 0.0
        %336 = vmatpush1.msra.mxu0 0.0
        %337 = vmatprep.subr.mxu0 0.0
        %338 = vmatpush1.msra.mxu0 0.0
        %339 = vmatprep.subr.mxu0 0.0
        %340 = vmatpush1.msra.mxu0 0.0
        %341 = vmatprep.subr.mxu0 0.0
        %342 = vmatpush1.msra.mxu0 0.0
        %343 = vmatprep.subr.mxu0 0.0
        %344 = vmatpush1.msra.mxu0 0.0
        %345 = vmatprep.subr.mxu0 0.0
        %346 = vmatpush1.msra.mxu0 0.0
        %347 = vmatprep.subr.mxu0 0.0
        %348 = vmatpush1.msra.mxu0 0.0
        %349 = vmatprep.subr.mxu0 0.0
        %350 = vmatpush1.msra.mxu0 0.0
        %351 = vmatprep.subr.mxu0 0.0
        %352 = vmatpush1.msra.mxu0 0.0
        %353 = vmatprep.mubr.f32.mxu0 0.0
        %354 = vmatmul.mubr.f32.gmra.mrb[0].mxu0 %v242
        %v355 = vpop.f32.mrb[0].mxu0
        %v356 = vadd.f32 %v239, %v355
        %v357 = vpop.f32.mrb[0].mxu0
        %358 = vmatprep.mubr.f32.mxu0 0.0
        %359 = vmatmul.mubr.f32.gmra.mrb[0].mxu0 %v245
        %v360 = vpop.f32.mrb[0].mxu0
        %v361 = vadd.f32 %v239, %v360
        %v362 = vpop.f32.mrb[0].mxu0
        %363 = vmatprep.mubr.f32.mxu0 0.0
        %364 = vmatmul.mubr.f32.gmra.mrb[0].mxu0 %v248
        %v365 = vpop.f32.mrb[0].mxu0
        %v366 = vadd.f32 %v239, %v365
        %v367 = vpop.f32.mrb[0].mxu0
        %368 = vmatprep.mubr.f32.mxu0 0.0
        %369 = vmatmul.mubr.f32.gmra.mrb[0].mxu0 %v251
        %v370 = vpop.f32.mrb[0].mxu0
        %v371 = vadd.f32 %v239, %v370
        %v372 = vpop.f32.mrb[0].mxu0
        %373 = vmatprep.mubr.f32.mxu0 0.0
        %374 = vmatmul.mubr.f32.gmra.mrb[0].mxu0 %v254
        %v375 = vpop.f32.mrb[0].mxu0
        %v376 = vadd.f32 %v239, %v375
        %v377 = vpop.f32.mrb[0].mxu0
        %378 = vmatprep.mubr.f32.mxu0 0.0
        %379 = vmatmul.mubr.f32.gmra.mrb[0].mxu0 %v257
        %v380 = vpop.f32.mrb[0].mxu0
        %v381 = vadd.f32 %v239, %v380
        %v382 = vpop.f32.mrb[0].mxu0
        %383 = vmatprep.mubr.f32.mxu0 0.0
        %384 = vmatmul.mubr.f32.gmra.mrb[0].mxu0 %v260
        %v385 = vpop.f32.mrb[0].mxu0
        %v386 = vadd.f32 %v239, %v385
        %v387 = vpop.f32.mrb[0].mxu0
        %388 = vmatprep.mubr.f32.mxu0 0.0
        %389 = vmatmul.mubr.f32.gmra.mrb[0].mxu0 %v263
        %v390 = vpop.f32.mrb[0].mxu0
        %v391 = vadd.f32 %v239, %v390
        %v392 = vpop.f32.mrb[0].mxu0
        %393 = vmatprep.mubr.f32.mxu0 0.0
        %394 = vmatmul.mubr.f32.gmra.mrb[0].mxu0 %v266
        %v395 = vpop.f32.mrb[0].mxu0
        %v396 = vadd.f32 %v239, %v395
        %v397 = vpop.f32.mrb[0].mxu0
        %398 = vmatprep.mubr.f32.mxu0 0.0
        %399 = vmatmul.mubr.f32.gmra.mrb[0].mxu0 %v269
        %v400 = vpop.f32.mrb[0].mxu0
        %v401 = vadd.f32 %v239, %v400
        %v402 = vpop.f32.mrb[0].mxu0
        %403 = vmatprep.mubr.f32.mxu0 0.0
        %404 = vmatmul.mubr.f32.gmra.mrb[0].mxu0 %v272
        %v405 = vpop.f32.mrb[0].mxu0
        %v406 = vadd.f32 %v239, %v405
        %v407 = vpop.f32.mrb[0].mxu0
        %408 = vmatprep.mubr.f32.mxu0 0.0
        %409 = vmatmul.mubr.f32.gmra.mrb[0].mxu0 %v275
        %v410 = vpop.f32.mrb[0].mxu0
        %v411 = vadd.f32 %v239, %v410
        %v412 = vpop.f32.mrb[0].mxu0
        %413 = vmatprep.mubr.f32.mxu0 0.0
        %414 = vmatmul.mubr.f32.gmra.mrb[0].mxu0 %v278
        %v415 = vpop.f32.mrb[0].mxu0
        %v416 = vadd.f32 %v239, %v415
        %v417 = vpop.f32.mrb[0].mxu0
        %418 = vmatprep.mubr.f32.mxu0 0.0
        %419 = vmatmul.mubr.f32.gmra.mrb[0].mxu0 %v281
        %v420 = vpop.f32.mrb[0].mxu0
        %v421 = vadd.f32 %v239, %v420
        %v422 = vpop.f32.mrb[0].mxu0
        %423 = vmatprep.mubr.f32.mxu0 0.0
        %424 = vmatmul.mubr.f32.gmra.mrb[0].mxu0 %v284
        %v425 = vpop.f32.mrb[0].mxu0
        %v426 = vadd.f32 %v239, %v425
        %v427 = vpop.f32.mrb[0].mxu0
        %428 = vmatprep.mubr.f32.mxu0 0.0
        %429 = vmatmul.mubr.f32.gmra.mrb[0].mxu0 %v287
        %v430 = vpop.f32.mrb[0].mxu0
        %v431 = vadd.f32 %v239, %v430
        %v432 = vpop.f32.mrb[0].mxu0
        %433 = vdwg.mxu0
        %v434 = vlaneseq
        %v435 = vshrl.u32 %v434, 7
        %v436 = vadd.s32 %v435, 8
        %v437 = vadd.s32 %v435, 16
        %v438 = vadd.s32 %v435, 24
        %v439 = vadd.s32 %v435, 32
        %v440 = vadd.s32 %v435, 40
        %v441 = vadd.s32 %v435, 48
        %v442 = vadd.s32 %v435, 56
        %v443 = vadd.s32 %v435, 64
        %v444 = vadd.s32 %v435, 72
        %v445 = vadd.s32 %v435, 80
        %v446 = vadd.s32 %v435, 88
        %v447 = vadd.s32 %v435, 96
        %v448 = vadd.s32 %v435, 104
        %v449 = vadd.s32 %v435, 112
        %v450 = vadd.s32 %v435, 120
        %v451 = vlaneseq
        %v452 = vand.u32 %v451, 127
        %v453 = vand.u32 %v435, 7
        %v454 = vand.u32 %v436, 7
        %v455 = vand.u32 %v437, 7
        %v456 = vand.u32 %v438, 7
        %v457 = vand.u32 %v439, 7
        %v458 = vand.u32 %v440, 7
        %v459 = vand.u32 %v441, 7
        %v460 = vand.u32 %v442, 7
        %v461 = vand.u32 %v443, 7
        %v462 = vand.u32 %v444, 7
        %v463 = vand.u32 %v445, 7
        %v464 = vand.u32 %v446, 7
        %v465 = vand.u32 %v447, 7
        %v466 = vand.u32 %v448, 7
        %v467 = vand.u32 %v449, 7
        %v468 = vand.u32 %v450, 7
        %v469 = vsub.s32 %v435, %v453
        %v470 = vsub.s32 %v436, %v454
        %v471 = vsub.s32 %v437, %v455
        %v472 = vsub.s32 %v438, %v456
        %v473 = vsub.s32 %v439, %v457
        %v474 = vsub.s32 %v440, %v458
        %v475 = vsub.s32 %v441, %v459
        %v476 = vsub.s32 %v442, %v460
        %v477 = vsub.s32 %v443, %v461
        %v478 = vsub.s32 %v444, %v462
        %v479 = vsub.s32 %v445, %v463
        %v480 = vsub.s32 %v446, %v464
        %v481 = vsub.s32 %v447, %v465
        %v482 = vsub.s32 %v448, %v466
        %v483 = vsub.s32 %v449, %v467
        %v484 = vsub.s32 %v450, %v468
        %s485 = smul.u32 %s25, 16
        %s486 = sld [smem:[#allocation3 + %s485]]
        %vm487 = vcmp.ge.s32.totalorder %v435, 0
        %vm488 = vcmp.ge.s32.totalorder %v436, 0
        %vm489 = vcmp.ge.s32.totalorder %v437, 0
        %vm490 = vcmp.ge.s32.totalorder %v438, 0
        %vm491 = vcmp.ge.s32.totalorder %v439, 0
        %vm492 = vcmp.ge.s32.totalorder %v440, 0
        %vm493 = vcmp.ge.s32.totalorder %v441, 0
        %vm494 = vcmp.ge.s32.totalorder %v442, 0
        %vm495 = vcmp.ge.s32.totalorder %v443, 0
        %vm496 = vcmp.ge.s32.totalorder %v444, 0
        %vm497 = vcmp.ge.s32.totalorder %v445, 0
        %vm498 = vcmp.ge.s32.totalorder %v446, 0
        %vm499 = vcmp.ge.s32.totalorder %v447, 0
        %vm500 = vcmp.ge.s32.totalorder %v448, 0
        %vm501 = vcmp.ge.s32.totalorder %v449, 0
        %vm502 = vcmp.ge.s32.totalorder %v450, 0
        %v503 = vstv %s486
        %v504 = vsel %vm487, %v503, 0
        %v505 = vsel %vm488, %v503, 0
        %v506 = vsel %vm489, %v503, 0
        %v507 = vsel %vm490, %v503, 0
        %v508 = vsel %vm491, %v503, 0
        %v509 = vsel %vm492, %v503, 0
        %v510 = vsel %vm493, %v503, 0
        %v511 = vsel %vm494, %v503, 0
        %v512 = vsel %vm495, %v503, 0
        %v513 = vsel %vm496, %v503, 0
        %v514 = vsel %vm497, %v503, 0
        %v515 = vsel %vm498, %v503, 0
        %v516 = vsel %vm499, %v503, 0
        %v517 = vsel %vm500, %v503, 0
        %v518 = vsel %vm501, %v503, 0
        %v519 = vsel %vm502, %v503, 0
        %s520 = sadd.s32 %s485, 1
        %s521 = sld [smem:[#allocation3 + %s520]]
        %vm522 = vcmp.ge.s32.totalorder %v435, 8
        %vm523 = vcmp.ge.s32.totalorder %v436, 8
        %vm524 = vcmp.ge.s32.totalorder %v437, 8
        %vm525 = vcmp.ge.s32.totalorder %v438, 8
        %vm526 = vcmp.ge.s32.totalorder %v439, 8
        %vm527 = vcmp.ge.s32.totalorder %v440, 8
        %vm528 = vcmp.ge.s32.totalorder %v441, 8
        %vm529 = vcmp.ge.s32.totalorder %v442, 8
        %vm530 = vcmp.ge.s32.totalorder %v443, 8
        %vm531 = vcmp.ge.s32.totalorder %v444, 8
        %vm532 = vcmp.ge.s32.totalorder %v445, 8
        %vm533 = vcmp.ge.s32.totalorder %v446, 8
        %vm534 = vcmp.ge.s32.totalorder %v447, 8
        %vm535 = vcmp.ge.s32.totalorder %v448, 8
        %vm536 = vcmp.ge.s32.totalorder %v449, 8
        %vm537 = vcmp.ge.s32.totalorder %v450, 8
        %v538 = vstv %s521
        %v539 = vsel %vm522, %v538, %v504
        %v540 = vsel %vm523, %v538, %v505
        %v541 = vsel %vm524, %v538, %v506
        %v542 = vsel %vm525, %v538, %v507
        %v543 = vsel %vm526, %v538, %v508
        %v544 = vsel %vm527, %v538, %v509
        %v545 = vsel %vm528, %v538, %v510
        %v546 = vsel %vm529, %v538, %v511
        %v547 = vsel %vm530, %v538, %v512
        %v548 = vsel %vm531, %v538, %v513
        %v549 = vsel %vm532, %v538, %v514
        %v550 = vsel %vm533, %v538, %v515
        %v551 = vsel %vm534, %v538, %v516
        %v552 = vsel %vm535, %v538, %v517
        %v553 = vsel %vm536, %v538, %v518
        %v554 = vsel %vm537, %v538, %v519
        %s555 = sadd.s32 %s485, 2
        %s556 = sld [smem:[#allocation3 + %s555]]
        %vm557 = vcmp.ge.s32.totalorder %v435, 16
        %vm558 = vcmp.ge.s32.totalorder %v436, 16
        %vm559 = vcmp.ge.s32.totalorder %v437, 16
        %vm560 = vcmp.ge.s32.totalorder %v438, 16
        %vm561 = vcmp.ge.s32.totalorder %v439, 16
        %vm562 = vcmp.ge.s32.totalorder %v440, 16
        %vm563 = vcmp.ge.s32.totalorder %v441, 16
        %vm564 = vcmp.ge.s32.totalorder %v442, 16
        %vm565 = vcmp.ge.s32.totalorder %v443, 16
        %vm566 = vcmp.ge.s32.totalorder %v444, 16
        %vm567 = vcmp.ge.s32.totalorder %v445, 16
        %vm568 = vcmp.ge.s32.totalorder %v446, 16
        %vm569 = vcmp.ge.s32.totalorder %v447, 16
        %vm570 = vcmp.ge.s32.totalorder %v448, 16
        %vm571 = vcmp.ge.s32.totalorder %v449, 16
        %vm572 = vcmp.ge.s32.totalorder %v450, 16
        %v573 = vstv %s556
        %v574 = vsel %vm557, %v573, %v539
        %v575 = vsel %vm558, %v573, %v540
        %v576 = vsel %vm559, %v573, %v541
        %v577 = vsel %vm560, %v573, %v542
        %v578 = vsel %vm561, %v573, %v543
        %v579 = vsel %vm562, %v573, %v544
        %v580 = vsel %vm563, %v573, %v545
        %v581 = vsel %vm564, %v573, %v546
        %v582 = vsel %vm565, %v573, %v547
        %v583 = vsel %vm566, %v573, %v548
        %v584 = vsel %vm567, %v573, %v549
        %v585 = vsel %vm568, %v573, %v550
        %v586 = vsel %vm569, %v573, %v551
        %v587 = vsel %vm570, %v573, %v552
        %v588 = vsel %vm571, %v573, %v553
        %v589 = vsel %vm572, %v573, %v554
        %s590 = sadd.s32 %s485, 3
        %s591 = sld [smem:[#allocation3 + %s590]]
        %vm592 = vcmp.ge.s32.totalorder %v435, 24
        %vm593 = vcmp.ge.s32.totalorder %v436, 24
        %vm594 = vcmp.ge.s32.totalorder %v437, 24
        %vm595 = vcmp.ge.s32.totalorder %v438, 24
        %vm596 = vcmp.ge.s32.totalorder %v439, 24
        %vm597 = vcmp.ge.s32.totalorder %v440, 24
        %vm598 = vcmp.ge.s32.totalorder %v441, 24
        %vm599 = vcmp.ge.s32.totalorder %v442, 24
        %vm600 = vcmp.ge.s32.totalorder %v443, 24
        %vm601 = vcmp.ge.s32.totalorder %v444, 24
        %vm602 = vcmp.ge.s32.totalorder %v445, 24
        %vm603 = vcmp.ge.s32.totalorder %v446, 24
        %vm604 = vcmp.ge.s32.totalorder %v447, 24
        %vm605 = vcmp.ge.s32.totalorder %v448, 24
        %vm606 = vcmp.ge.s32.totalorder %v449, 24
        %vm607 = vcmp.ge.s32.totalorder %v450, 24
        %v608 = vstv %s591
        %v609 = vsel %vm592, %v608, %v574
        %v610 = vsel %vm593, %v608, %v575
        %v611 = vsel %vm594, %v608, %v576
        %v612 = vsel %vm595, %v608, %v577
        %v613 = vsel %vm596, %v608, %v578
        %v614 = vsel %vm597, %v608, %v579
        %v615 = vsel %vm598, %v608, %v580
        %v616 = vsel %vm599, %v608, %v581
        %v617 = vsel %vm600, %v608, %v582
        %v618 = vsel %vm601, %v608, %v583
        %v619 = vsel %vm602, %v608, %v584
        %v620 = vsel %vm603, %v608, %v585
        %v621 = vsel %vm604, %v608, %v586
        %v622 = vsel %vm605, %v608, %v587
        %v623 = vsel %vm606, %v608, %v588
        %v624 = vsel %vm607, %v608, %v589
        %s625 = sadd.s32 %s485, 4
        %s626 = sld [smem:[#allocation3 + %s625]]
        %vm627 = vcmp.ge.s32.totalorder %v435, 32
        %vm628 = vcmp.ge.s32.totalorder %v436, 32
        %vm629 = vcmp.ge.s32.totalorder %v437, 32
        %vm630 = vcmp.ge.s32.totalorder %v438, 32
        %vm631 = vcmp.ge.s32.totalorder %v439, 32
        %vm632 = vcmp.ge.s32.totalorder %v440, 32
        %vm633 = vcmp.ge.s32.totalorder %v441, 32
        %vm634 = vcmp.ge.s32.totalorder %v442, 32
        %vm635 = vcmp.ge.s32.totalorder %v443, 32
        %vm636 = vcmp.ge.s32.totalorder %v444, 32
        %vm637 = vcmp.ge.s32.totalorder %v445, 32
        %vm638 = vcmp.ge.s32.totalorder %v446, 32
        %vm639 = vcmp.ge.s32.totalorder %v447, 32
        %vm640 = vcmp.ge.s32.totalorder %v448, 32
        %vm641 = vcmp.ge.s32.totalorder %v449, 32
        %vm642 = vcmp.ge.s32.totalorder %v450, 32
        %v643 = vstv %s626
        %v644 = vsel %vm627, %v643, %v609
        %v645 = vsel %vm628, %v643, %v610
        %v646 = vsel %vm629, %v643, %v611
        %v647 = vsel %vm630, %v643, %v612
        %v648 = vsel %vm631, %v643, %v613
        %v649 = vsel %vm632, %v643, %v614
        %v650 = vsel %vm633, %v643, %v615
        %v651 = vsel %vm634, %v643, %v616
        %v652 = vsel %vm635, %v643, %v617
        %v653 = vsel %vm636, %v643, %v618
        %v654 = vsel %vm637, %v643, %v619
        %v655 = vsel %vm638, %v643, %v620
        %v656 = vsel %vm639, %v643, %v621
        %v657 = vsel %vm640, %v643, %v622
        %v658 = vsel %vm641, %v643, %v623
        %v659 = vsel %vm642, %v643, %v624
        %s660 = sadd.s32 %s485, 5
        %s661 = sld [smem:[#allocation3 + %s660]]
        %vm662 = vcmp.ge.s32.totalorder %v435, 40
        %vm663 = vcmp.ge.s32.totalorder %v436, 40
        %vm664 = vcmp.ge.s32.totalorder %v437, 40
        %vm665 = vcmp.ge.s32.totalorder %v438, 40
        %vm666 = vcmp.ge.s32.totalorder %v439, 40
        %vm667 = vcmp.ge.s32.totalorder %v440, 40
        %vm668 = vcmp.ge.s32.totalorder %v441, 40
        %vm669 = vcmp.ge.s32.totalorder %v442, 40
        %vm670 = vcmp.ge.s32.totalorder %v443, 40
        %vm671 = vcmp.ge.s32.totalorder %v444, 40
        %vm672 = vcmp.ge.s32.totalorder %v445, 40
        %vm673 = vcmp.ge.s32.totalorder %v446, 40
        %vm674 = vcmp.ge.s32.totalorder %v447, 40
        %vm675 = vcmp.ge.s32.totalorder %v448, 40
        %vm676 = vcmp.ge.s32.totalorder %v449, 40
        %vm677 = vcmp.ge.s32.totalorder %v450, 40
        %v678 = vstv %s661
        %v679 = vsel %vm662, %v678, %v644
        %v680 = vsel %vm663, %v678, %v645
        %v681 = vsel %vm664, %v678, %v646
        %v682 = vsel %vm665, %v678, %v647
        %v683 = vsel %vm666, %v678, %v648
        %v684 = vsel %vm667, %v678, %v649
        %v685 = vsel %vm668, %v678, %v650
        %v686 = vsel %vm669, %v678, %v651
        %v687 = vsel %vm670, %v678, %v652
        %v688 = vsel %vm671, %v678, %v653
        %v689 = vsel %vm672, %v678, %v654
        %v690 = vsel %vm673, %v678, %v655
        %v691 = vsel %vm674, %v678, %v656
        %v692 = vsel %vm675, %v678, %v657
        %v693 = vsel %vm676, %v678, %v658
        %v694 = vsel %vm677, %v678, %v659
        %s695 = sadd.s32 %s485, 6
        %s696 = sld [smem:[#allocation3 + %s695]]
        %vm697 = vcmp.ge.s32.totalorder %v435, 48
        %vm698 = vcmp.ge.s32.totalorder %v436, 48
        %vm699 = vcmp.ge.s32.totalorder %v437, 48
        %vm700 = vcmp.ge.s32.totalorder %v438, 48
        %vm701 = vcmp.ge.s32.totalorder %v439, 48
        %vm702 = vcmp.ge.s32.totalorder %v440, 48
        %vm703 = vcmp.ge.s32.totalorder %v441, 48
        %vm704 = vcmp.ge.s32.totalorder %v442, 48
        %vm705 = vcmp.ge.s32.totalorder %v443, 48
        %vm706 = vcmp.ge.s32.totalorder %v444, 48
        %vm707 = vcmp.ge.s32.totalorder %v445, 48
        %vm708 = vcmp.ge.s32.totalorder %v446, 48
        %vm709 = vcmp.ge.s32.totalorder %v447, 48
        %vm710 = vcmp.ge.s32.totalorder %v448, 48
        %vm711 = vcmp.ge.s32.totalorder %v449, 48
        %vm712 = vcmp.ge.s32.totalorder %v450, 48
        %v713 = vstv %s696
        %v714 = vsel %vm697, %v713, %v679
        %v715 = vsel %vm698, %v713, %v680
        %v716 = vsel %vm699, %v713, %v681
        %v717 = vsel %vm700, %v713, %v682
        %v718 = vsel %vm701, %v713, %v683
        %v719 = vsel %vm702, %v713, %v684
        %v720 = vsel %vm703, %v713, %v685
        %v721 = vsel %vm704, %v713, %v686
        %v722 = vsel %vm705, %v713, %v687
        %v723 = vsel %vm706, %v713, %v688
        %v724 = vsel %vm707, %v713, %v689
        %v725 = vsel %vm708, %v713, %v690
        %v726 = vsel %vm709, %v713, %v691
        %v727 = vsel %vm710, %v713, %v692
        %v728 = vsel %vm711, %v713, %v693
        %v729 = vsel %vm712, %v713, %v694
        %s730 = sadd.s32 %s485, 7
        %s731 = sld [smem:[#allocation3 + %s730]]
        %vm732 = vcmp.ge.s32.totalorder %v435, 56
        %vm733 = vcmp.ge.s32.totalorder %v436, 56
        %vm734 = vcmp.ge.s32.totalorder %v437, 56
        %vm735 = vcmp.ge.s32.totalorder %v438, 56
        %vm736 = vcmp.ge.s32.totalorder %v439, 56
        %vm737 = vcmp.ge.s32.totalorder %v440, 56
        %vm738 = vcmp.ge.s32.totalorder %v441, 56
        %vm739 = vcmp.ge.s32.totalorder %v442, 56
        %vm740 = vcmp.ge.s32.totalorder %v443, 56
        %vm741 = vcmp.ge.s32.totalorder %v444, 56
        %vm742 = vcmp.ge.s32.totalorder %v445, 56
        %vm743 = vcmp.ge.s32.totalorder %v446, 56
        %vm744 = vcmp.ge.s32.totalorder %v447, 56
        %vm745 = vcmp.ge.s32.totalorder %v448, 56
        %vm746 = vcmp.ge.s32.totalorder %v449, 56
        %vm747 = vcmp.ge.s32.totalorder %v450, 56
        %v748 = vstv %s731
        %v749 = vsel %vm732, %v748, %v714
        %v750 = vsel %vm733, %v748, %v715
        %v751 = vsel %vm734, %v748, %v716
        %v752 = vsel %vm735, %v748, %v717
        %v753 = vsel %vm736, %v748, %v718
        %v754 = vsel %vm737, %v748, %v719
        %v755 = vsel %vm738, %v748, %v720
        %v756 = vsel %vm739, %v748, %v721
        %v757 = vsel %vm740, %v748, %v722
        %v758 = vsel %vm741, %v748, %v723
        %v759 = vsel %vm742, %v748, %v724
        %v760 = vsel %vm743, %v748, %v725
        %v761 = vsel %vm744, %v748, %v726
        %v762 = vsel %vm745, %v748, %v727
        %v763 = vsel %vm746, %v748, %v728
        %v764 = vsel %vm747, %v748, %v729
        %s765 = sadd.s32 %s485, 8
        %s766 = sld [smem:[#allocation3 + %s765]]
        %vm767 = vcmp.ge.s32.totalorder %v435, 64
        %vm768 = vcmp.ge.s32.totalorder %v436, 64
        %vm769 = vcmp.ge.s32.totalorder %v437, 64
        %vm770 = vcmp.ge.s32.totalorder %v438, 64
        %vm771 = vcmp.ge.s32.totalorder %v439, 64
        %vm772 = vcmp.ge.s32.totalorder %v440, 64
        %vm773 = vcmp.ge.s32.totalorder %v441, 64
        %vm774 = vcmp.ge.s32.totalorder %v442, 64
        %vm775 = vcmp.ge.s32.totalorder %v443, 64
        %vm776 = vcmp.ge.s32.totalorder %v444, 64
        %vm777 = vcmp.ge.s32.totalorder %v445, 64
        %vm778 = vcmp.ge.s32.totalorder %v446, 64
        %vm779 = vcmp.ge.s32.totalorder %v447, 64
        %vm780 = vcmp.ge.s32.totalorder %v448, 64
        %vm781 = vcmp.ge.s32.totalorder %v449, 64
        %vm782 = vcmp.ge.s32.totalorder %v450, 64
        %v783 = vstv %s766
        %v784 = vsel %vm767, %v783, %v749
        %v785 = vsel %vm768, %v783, %v750
        %v786 = vsel %vm769, %v783, %v751
        %v787 = vsel %vm770, %v783, %v752
        %v788 = vsel %vm771, %v783, %v753
        %v789 = vsel %vm772, %v783, %v754
        %v790 = vsel %vm773, %v783, %v755
        %v791 = vsel %vm774, %v783, %v756
        %v792 = vsel %vm775, %v783, %v757
        %v793 = vsel %vm776, %v783, %v758
        %v794 = vsel %vm777, %v783, %v759
        %v795 = vsel %vm778, %v783, %v760
        %v796 = vsel %vm779, %v783, %v761
        %v797 = vsel %vm780, %v783, %v762
        %v798 = vsel %vm781, %v783, %v763
        %v799 = vsel %vm782, %v783, %v764
        %s800 = sadd.s32 %s485, 9
        %s801 = sld [smem:[#allocation3 + %s800]]
        %vm802 = vcmp.ge.s32.totalorder %v435, 72
        %vm803 = vcmp.ge.s32.totalorder %v436, 72
        %vm804 = vcmp.ge.s32.totalorder %v437, 72
        %vm805 = vcmp.ge.s32.totalorder %v438, 72
        %vm806 = vcmp.ge.s32.totalorder %v439, 72
        %vm807 = vcmp.ge.s32.totalorder %v440, 72
        %vm808 = vcmp.ge.s32.totalorder %v441, 72
        %vm809 = vcmp.ge.s32.totalorder %v442, 72
        %vm810 = vcmp.ge.s32.totalorder %v443, 72
        %vm811 = vcmp.ge.s32.totalorder %v444, 72
        %vm812 = vcmp.ge.s32.totalorder %v445, 72
        %vm813 = vcmp.ge.s32.totalorder %v446, 72
        %vm814 = vcmp.ge.s32.totalorder %v447, 72
        %vm815 = vcmp.ge.s32.totalorder %v448, 72
        %vm816 = vcmp.ge.s32.totalorder %v449, 72
        %vm817 = vcmp.ge.s32.totalorder %v450, 72
        %v818 = vstv %s801
        %v819 = vsel %vm802, %v818, %v784
        %v820 = vsel %vm803, %v818, %v785
        %v821 = vsel %vm804, %v818, %v786
        %v822 = vsel %vm805, %v818, %v787
        %v823 = vsel %vm806, %v818, %v788
        %v824 = vsel %vm807, %v818, %v789
        %v825 = vsel %vm808, %v818, %v790
        %v826 = vsel %vm809, %v818, %v791
        %v827 = vsel %vm810, %v818, %v792
        %v828 = vsel %vm811, %v818, %v793
        %v829 = vsel %vm812, %v818, %v794
        %v830 = vsel %vm813, %v818, %v795
        %v831 = vsel %vm814, %v818, %v796
        %v832 = vsel %vm815, %v818, %v797
        %v833 = vsel %vm816, %v818, %v798
        %v834 = vsel %vm817, %v818, %v799
        %s835 = sadd.s32 %s485, 10
        %s836 = sld [smem:[#allocation3 + %s835]]
        %vm837 = vcmp.ge.s32.totalorder %v435, 80
        %vm838 = vcmp.ge.s32.totalorder %v436, 80
        %vm839 = vcmp.ge.s32.totalorder %v437, 80
        %vm840 = vcmp.ge.s32.totalorder %v438, 80
        %vm841 = vcmp.ge.s32.totalorder %v439, 80
        %vm842 = vcmp.ge.s32.totalorder %v440, 80
        %vm843 = vcmp.ge.s32.totalorder %v441, 80
        %vm844 = vcmp.ge.s32.totalorder %v442, 80
        %vm845 = vcmp.ge.s32.totalorder %v443, 80
        %vm846 = vcmp.ge.s32.totalorder %v444, 80
        %vm847 = vcmp.ge.s32.totalorder %v445, 80
        %vm848 = vcmp.ge.s32.totalorder %v446, 80
        %vm849 = vcmp.ge.s32.totalorder %v447, 80
        %vm850 = vcmp.ge.s32.totalorder %v448, 80
        %vm851 = vcmp.ge.s32.totalorder %v449, 80
        %vm852 = vcmp.ge.s32.totalorder %v450, 80
        %v853 = vstv %s836
        %v854 = vsel %vm837, %v853, %v819
        %v855 = vsel %vm838, %v853, %v820
        %v856 = vsel %vm839, %v853, %v821
        %v857 = vsel %vm840, %v853, %v822
        %v858 = vsel %vm841, %v853, %v823
        %v859 = vsel %vm842, %v853, %v824
        %v860 = vsel %vm843, %v853, %v825
        %v861 = vsel %vm844, %v853, %v826
        %v862 = vsel %vm845, %v853, %v827
        %v863 = vsel %vm846, %v853, %v828
        %v864 = vsel %vm847, %v853, %v829
        %v865 = vsel %vm848, %v853, %v830
        %v866 = vsel %vm849, %v853, %v831
        %v867 = vsel %vm850, %v853, %v832
        %v868 = vsel %vm851, %v853, %v833
        %v869 = vsel %vm852, %v853, %v834
        %s870 = sadd.s32 %s485, 11
        %s871 = sld [smem:[#allocation3 + %s870]]
        %vm872 = vcmp.ge.s32.totalorder %v435, 88
        %vm873 = vcmp.ge.s32.totalorder %v436, 88
        %vm874 = vcmp.ge.s32.totalorder %v437, 88
        %vm875 = vcmp.ge.s32.totalorder %v438, 88
        %vm876 = vcmp.ge.s32.totalorder %v439, 88
        %vm877 = vcmp.ge.s32.totalorder %v440, 88
        %vm878 = vcmp.ge.s32.totalorder %v441, 88
        %vm879 = vcmp.ge.s32.totalorder %v442, 88
        %vm880 = vcmp.ge.s32.totalorder %v443, 88
        %vm881 = vcmp.ge.s32.totalorder %v444, 88
        %vm882 = vcmp.ge.s32.totalorder %v445, 88
        %vm883 = vcmp.ge.s32.totalorder %v446, 88
        %vm884 = vcmp.ge.s32.totalorder %v447, 88
        %vm885 = vcmp.ge.s32.totalorder %v448, 88
        %vm886 = vcmp.ge.s32.totalorder %v449, 88
        %vm887 = vcmp.ge.s32.totalorder %v450, 88
        %v888 = vstv %s871
        %v889 = vsel %vm872, %v888, %v854
        %v890 = vsel %vm873, %v888, %v855
        %v891 = vsel %vm874, %v888, %v856
        %v892 = vsel %vm875, %v888, %v857
        %v893 = vsel %vm876, %v888, %v858
        %v894 = vsel %vm877, %v888, %v859
        %v895 = vsel %vm878, %v888, %v860
        %v896 = vsel %vm879, %v888, %v861
        %v897 = vsel %vm880, %v888, %v862
        %v898 = vsel %vm881, %v888, %v863
        %v899 = vsel %vm882, %v888, %v864
        %v900 = vsel %vm883, %v888, %v865
        %v901 = vsel %vm884, %v888, %v866
        %v902 = vsel %vm885, %v888, %v867
        %v903 = vsel %vm886, %v888, %v868
        %v904 = vsel %vm887, %v888, %v869
        %s905 = sadd.s32 %s485, 12
        %s906 = sld [smem:[#allocation3 + %s905]]
        %vm907 = vcmp.ge.s32.totalorder %v435, 96
        %vm908 = vcmp.ge.s32.totalorder %v436, 96
        %vm909 = vcmp.ge.s32.totalorder %v437, 96
        %vm910 = vcmp.ge.s32.totalorder %v438, 96
        %vm911 = vcmp.ge.s32.totalorder %v439, 96
        %vm912 = vcmp.ge.s32.totalorder %v440, 96
        %vm913 = vcmp.ge.s32.totalorder %v441, 96
        %vm914 = vcmp.ge.s32.totalorder %v442, 96
        %vm915 = vcmp.ge.s32.totalorder %v443, 96
        %vm916 = vcmp.ge.s32.totalorder %v444, 96
        %vm917 = vcmp.ge.s32.totalorder %v445, 96
        %vm918 = vcmp.ge.s32.totalorder %v446, 96
        %vm919 = vcmp.ge.s32.totalorder %v447, 96
        %vm920 = vcmp.ge.s32.totalorder %v448, 96
        %vm921 = vcmp.ge.s32.totalorder %v449, 96
        %vm922 = vcmp.ge.s32.totalorder %v450, 96
        %v923 = vstv %s906
        %v924 = vsel %vm907, %v923, %v889
        %v925 = vsel %vm908, %v923, %v890
        %v926 = vsel %vm909, %v923, %v891
        %v927 = vsel %vm910, %v923, %v892
        %v928 = vsel %vm911, %v923, %v893
        %v929 = vsel %vm912, %v923, %v894
        %v930 = vsel %vm913, %v923, %v895
        %v931 = vsel %vm914, %v923, %v896
        %v932 = vsel %vm915, %v923, %v897
        %v933 = vsel %vm916, %v923, %v898
        %v934 = vsel %vm917, %v923, %v899
        %v935 = vsel %vm918, %v923, %v900
        %v936 = vsel %vm919, %v923, %v901
        %v937 = vsel %vm920, %v923, %v902
        %v938 = vsel %vm921, %v923, %v903
        %v939 = vsel %vm922, %v923, %v904
        %s940 = sadd.s32 %s485, 13
        %s941 = sld [smem:[#allocation3 + %s940]]
        %vm942 = vcmp.ge.s32.totalorder %v435, 104
        %vm943 = vcmp.ge.s32.totalorder %v436, 104
        %vm944 = vcmp.ge.s32.totalorder %v437, 104
        %vm945 = vcmp.ge.s32.totalorder %v438, 104
        %vm946 = vcmp.ge.s32.totalorder %v439, 104
        %vm947 = vcmp.ge.s32.totalorder %v440, 104
        %vm948 = vcmp.ge.s32.totalorder %v441, 104
        %vm949 = vcmp.ge.s32.totalorder %v442, 104
        %vm950 = vcmp.ge.s32.totalorder %v443, 104
        %vm951 = vcmp.ge.s32.totalorder %v444, 104
        %vm952 = vcmp.ge.s32.totalorder %v445, 104
        %vm953 = vcmp.ge.s32.totalorder %v446, 104
        %vm954 = vcmp.ge.s32.totalorder %v447, 104
        %vm955 = vcmp.ge.s32.totalorder %v448, 104
        %vm956 = vcmp.ge.s32.totalorder %v449, 104
        %vm957 = vcmp.ge.s32.totalorder %v450, 104
        %v958 = vstv %s941
        %v959 = vsel %vm942, %v958, %v924
        %v960 = vsel %vm943, %v958, %v925
        %v961 = vsel %vm944, %v958, %v926
        %v962 = vsel %vm945, %v958, %v927
        %v963 = vsel %vm946, %v958, %v928
        %v964 = vsel %vm947, %v958, %v929
        %v965 = vsel %vm948, %v958, %v930
        %v966 = vsel %vm949, %v958, %v931
        %v967 = vsel %vm950, %v958, %v932
        %v968 = vsel %vm951, %v958, %v933
        %v969 = vsel %vm952, %v958, %v934
        %v970 = vsel %vm953, %v958, %v935
        %v971 = vsel %vm954, %v958, %v936
        %v972 = vsel %vm955, %v958, %v937
        %v973 = vsel %vm956, %v958, %v938
        %v974 = vsel %vm957, %v958, %v939
        %s975 = sadd.s32 %s485, 14
        %s976 = sld [smem:[#allocation3 + %s975]]
        %vm977 = vcmp.ge.s32.totalorder %v435, 112
        %vm978 = vcmp.ge.s32.totalorder %v436, 112
        %vm979 = vcmp.ge.s32.totalorder %v437, 112
        %vm980 = vcmp.ge.s32.totalorder %v438, 112
        %vm981 = vcmp.ge.s32.totalorder %v439, 112
        %vm982 = vcmp.ge.s32.totalorder %v440, 112
        %vm983 = vcmp.ge.s32.totalorder %v441, 112
        %vm984 = vcmp.ge.s32.totalorder %v442, 112
        %vm985 = vcmp.ge.s32.totalorder %v443, 112
        %vm986 = vcmp.ge.s32.totalorder %v444, 112
        %vm987 = vcmp.ge.s32.totalorder %v445, 112
        %vm988 = vcmp.ge.s32.totalorder %v446, 112
        %vm989 = vcmp.ge.s32.totalorder %v447, 112
        %vm990 = vcmp.ge.s32.totalorder %v448, 112
        %vm991 = vcmp.ge.s32.totalorder %v449, 112
        %vm992 = vcmp.ge.s32.totalorder %v450, 112
        %v993 = vstv %s976
        %v994 = vsel %vm977, %v993, %v959
        %v995 = vsel %vm978, %v993, %v960
        %v996 = vsel %vm979, %v993, %v961
        %v997 = vsel %vm980, %v993, %v962
        %v998 = vsel %vm981, %v993, %v963
        %v999 = vsel %vm982, %v993, %v964
        %v1000 = vsel %vm983, %v993, %v965
        %v1001 = vsel %vm984, %v993, %v966
        %v1002 = vsel %vm985, %v993, %v967
        %v1003 = vsel %vm986, %v993, %v968
        %v1004 = vsel %vm987, %v993, %v969
        %v1005 = vsel %vm988, %v993, %v970
        %v1006 = vsel %vm989, %v993, %v971
        %v1007 = vsel %vm990, %v993, %v972
        %v1008 = vsel %vm991, %v993, %v973
        %v1009 = vsel %vm992, %v993, %v974
        %s1010 = sadd.s32 %s485, 15
        %s1011 = sld [smem:[#allocation3 + %s1010]]
        %vm1012 = vcmp.ge.s32.totalorder %v435, 120
        %vm1013 = vcmp.ge.s32.totalorder %v436, 120
        %vm1014 = vcmp.ge.s32.totalorder %v437, 120
        %vm1015 = vcmp.ge.s32.totalorder %v438, 120
        %vm1016 = vcmp.ge.s32.totalorder %v439, 120
        %vm1017 = vcmp.ge.s32.totalorder %v440, 120
        %vm1018 = vcmp.ge.s32.totalorder %v441, 120
        %vm1019 = vcmp.ge.s32.totalorder %v442, 120
        %vm1020 = vcmp.ge.s32.totalorder %v443, 120
        %vm1021 = vcmp.ge.s32.totalorder %v444, 120
        %vm1022 = vcmp.ge.s32.totalorder %v445, 120
        %vm1023 = vcmp.ge.s32.totalorder %v446, 120
        %vm1024 = vcmp.ge.s32.totalorder %v447, 120
        %vm1025 = vcmp.ge.s32.totalorder %v448, 120
        %vm1026 = vcmp.ge.s32.totalorder %v449, 120
        %vm1027 = vcmp.ge.s32.totalorder %v450, 120
        %v1028 = vstv %s1011
        %v1029 = vsel %vm1012, %v1028, %v994
        %v1030 = vsel %vm1013, %v1028, %v995
        %v1031 = vsel %vm1014, %v1028, %v996
        %v1032 = vsel %vm1015, %v1028, %v997
        %v1033 = vsel %vm1016, %v1028, %v998
        %v1034 = vsel %vm1017, %v1028, %v999
        %v1035 = vsel %vm1018, %v1028, %v1000
        %v1036 = vsel %vm1019, %v1028, %v1001
        %v1037 = vsel %vm1020, %v1028, %v1002
        %v1038 = vsel %vm1021, %v1028, %v1003
        %v1039 = vsel %vm1022, %v1028, %v1004
        %v1040 = vsel %vm1023, %v1028, %v1005
        %v1041 = vsel %vm1024, %v1028, %v1006
        %v1042 = vsel %vm1025, %v1028, %v1007
        %v1043 = vsel %vm1026, %v1028, %v1008
        %v1044 = vsel %vm1027, %v1028, %v1009
        %v1045 = vsub.s32 %v435, %v469
        %v1046 = vsub.s32 %v436, %v470
        %v1047 = vsub.s32 %v437, %v471
        %v1048 = vsub.s32 %v438, %v472
        %v1049 = vsub.s32 %v439, %v473
        %v1050 = vsub.s32 %v440, %v474
        %v1051 = vsub.s32 %v441, %v475
        %v1052 = vsub.s32 %v442, %v476
        %v1053 = vsub.s32 %v443, %v477
        %v1054 = vsub.s32 %v444, %v478
        %v1055 = vsub.s32 %v445, %v479
        %v1056 = vsub.s32 %v446, %v480
        %v1057 = vsub.s32 %v447, %v481
        %v1058 = vsub.s32 %v448, %v482
        %v1059 = vsub.s32 %v449, %v483
        %v1060 = vsub.s32 %v450, %v484
        %vm1061 = vcmp.lt.s32.totalorder %v1045, %v1029
        %vm1062 = vcmp.lt.s32.totalorder %v1046, %v1030
        %vm1063 = vcmp.lt.s32.totalorder %v1047, %v1031
        %vm1064 = vcmp.lt.s32.totalorder %v1048, %v1032
        %vm1065 = vcmp.lt.s32.totalorder %v1049, %v1033
        %vm1066 = vcmp.lt.s32.totalorder %v1050, %v1034
        %vm1067 = vcmp.lt.s32.totalorder %v1051, %v1035
        %vm1068 = vcmp.lt.s32.totalorder %v1052, %v1036
        %vm1069 = vcmp.lt.s32.totalorder %v1053, %v1037
        %vm1070 = vcmp.lt.s32.totalorder %v1054, %v1038
        %vm1071 = vcmp.lt.s32.totalorder %v1055, %v1039
        %vm1072 = vcmp.lt.s32.totalorder %v1056, %v1040
        %vm1073 = vcmp.lt.s32.totalorder %v1057, %v1041
        %vm1074 = vcmp.lt.s32.totalorder %v1058, %v1042
        %vm1075 = vcmp.lt.s32.totalorder %v1059, %v1043
        %vm1076 = vcmp.lt.s32.totalorder %v1060, %v1044
        %vm1077 = vcmp.ge.s32.totalorder %v452, %v469
        %vm1078 = vcmp.ge.s32.totalorder %v452, %v470
        %vm1079 = vcmp.ge.s32.totalorder %v452, %v471
        %vm1080 = vcmp.ge.s32.totalorder %v452, %v472
        %vm1081 = vcmp.ge.s32.totalorder %v452, %v473
        %vm1082 = vcmp.ge.s32.totalorder %v452, %v474
        %vm1083 = vcmp.ge.s32.totalorder %v452, %v475
        %vm1084 = vcmp.ge.s32.totalorder %v452, %v476
        %vm1085 = vcmp.ge.s32.totalorder %v452, %v477
        %vm1086 = vcmp.ge.s32.totalorder %v452, %v478
        %vm1087 = vcmp.ge.s32.totalorder %v452, %v479
        %vm1088 = vcmp.ge.s32.totalorder %v452, %v480
        %vm1089 = vcmp.ge.s32.totalorder %v452, %v481
        %vm1090 = vcmp.ge.s32.totalorder %v452, %v482
        %vm1091 = vcmp.ge.s32.totalorder %v452, %v483
        %vm1092 = vcmp.ge.s32.totalorder %v452, %v484
        %v1093 = vsel %vm1061, 1, 0
        %v1094 = vsel %vm1062, 1, 0
        %v1095 = vsel %vm1063, 1, 0
        %v1096 = vsel %vm1064, 1, 0
        %v1097 = vsel %vm1065, 1, 0
        %v1098 = vsel %vm1066, 1, 0
        %v1099 = vsel %vm1067, 1, 0
        %v1100 = vsel %vm1068, 1, 0
        %v1101 = vsel %vm1069, 1, 0
        %v1102 = vsel %vm1070, 1, 0
        %v1103 = vsel %vm1071, 1, 0
        %v1104 = vsel %vm1072, 1, 0
        %v1105 = vsel %vm1073, 1, 0
        %v1106 = vsel %vm1074, 1, 0
        %v1107 = vsel %vm1075, 1, 0
        %v1108 = vsel %vm1076, 1, 0
        %vm1109 = vcmp.eq.s32.totalorder %v1093, 1
        %vm1110 = vcmp.eq.s32.totalorder %v1094, 1
        %vm1111 = vcmp.eq.s32.totalorder %v1095, 1
        %vm1112 = vcmp.eq.s32.totalorder %v1096, 1
        %vm1113 = vcmp.eq.s32.totalorder %v1097, 1
        %vm1114 = vcmp.eq.s32.totalorder %v1098, 1
        %vm1115 = vcmp.eq.s32.totalorder %v1099, 1
        %vm1116 = vcmp.eq.s32.totalorder %v1100, 1
        %vm1117 = vcmp.eq.s32.totalorder %v1101, 1
        %vm1118 = vcmp.eq.s32.totalorder %v1102, 1
        %vm1119 = vcmp.eq.s32.totalorder %v1103, 1
        %vm1120 = vcmp.eq.s32.totalorder %v1104, 1
        %vm1121 = vcmp.eq.s32.totalorder %v1105, 1
        %vm1122 = vcmp.eq.s32.totalorder %v1106, 1
        %vm1123 = vcmp.eq.s32.totalorder %v1107, 1
        %vm1124 = vcmp.eq.s32.totalorder %v1108, 1
        %vm1125 = vmand %vm1109, %vm1077
        %vm1126 = vmand %vm1110, %vm1078
        %vm1127 = vmand %vm1111, %vm1079
        %vm1128 = vmand %vm1112, %vm1080
        %vm1129 = vmand %vm1113, %vm1081
        %vm1130 = vmand %vm1114, %vm1082
        %vm1131 = vmand %vm1115, %vm1083
        %vm1132 = vmand %vm1116, %vm1084
        %vm1133 = vmand %vm1117, %vm1085
        %vm1134 = vmand %vm1118, %vm1086
        %vm1135 = vmand %vm1119, %vm1087
        %vm1136 = vmand %vm1120, %vm1088
        %vm1137 = vmand %vm1121, %vm1089
        %vm1138 = vmand %vm1122, %vm1090
        %vm1139 = vmand %vm1123, %vm1091
        %vm1140 = vmand %vm1124, %vm1092
        %v1141 = vadd.s32 %v469, %v1029
        %v1142 = vadd.s32 %v470, %v1030
        %v1143 = vadd.s32 %v471, %v1031
        %v1144 = vadd.s32 %v472, %v1032
        %v1145 = vadd.s32 %v473, %v1033
        %v1146 = vadd.s32 %v474, %v1034
        %v1147 = vadd.s32 %v475, %v1035
        %v1148 = vadd.s32 %v476, %v1036
        %v1149 = vadd.s32 %v477, %v1037
        %v1150 = vadd.s32 %v478, %v1038
        %v1151 = vadd.s32 %v479, %v1039
        %v1152 = vadd.s32 %v480, %v1040
        %v1153 = vadd.s32 %v481, %v1041
        %v1154 = vadd.s32 %v482, %v1042
        %v1155 = vadd.s32 %v483, %v1043
        %v1156 = vadd.s32 %v484, %v1044
        %vm1157 = vcmp.lt.s32.totalorder %v452, %v1141
        %vm1158 = vcmp.lt.s32.totalorder %v452, %v1142
        %vm1159 = vcmp.lt.s32.totalorder %v452, %v1143
        %vm1160 = vcmp.lt.s32.totalorder %v452, %v1144
        %vm1161 = vcmp.lt.s32.totalorder %v452, %v1145
        %vm1162 = vcmp.lt.s32.totalorder %v452, %v1146
        %vm1163 = vcmp.lt.s32.totalorder %v452, %v1147
        %vm1164 = vcmp.lt.s32.totalorder %v452, %v1148
        %vm1165 = vcmp.lt.s32.totalorder %v452, %v1149
        %vm1166 = vcmp.lt.s32.totalorder %v452, %v1150
        %vm1167 = vcmp.lt.s32.totalorder %v452, %v1151
        %vm1168 = vcmp.lt.s32.totalorder %v452, %v1152
        %vm1169 = vcmp.lt.s32.totalorder %v452, %v1153
        %vm1170 = vcmp.lt.s32.totalorder %v452, %v1154
        %vm1171 = vcmp.lt.s32.totalorder %v452, %v1155
        %vm1172 = vcmp.lt.s32.totalorder %v452, %v1156
        %vm1173 = vmand %vm1125, %vm1157
        %vm1174 = vmand %vm1126, %vm1158
        %vm1175 = vmand %vm1127, %vm1159
        %vm1176 = vmand %vm1128, %vm1160
        %vm1177 = vmand %vm1129, %vm1161
        %vm1178 = vmand %vm1130, %vm1162
        %vm1179 = vmand %vm1131, %vm1163
        %vm1180 = vmand %vm1132, %vm1164
        %vm1181 = vmand %vm1133, %vm1165
        %vm1182 = vmand %vm1134, %vm1166
        %vm1183 = vmand %vm1135, %vm1167
        %vm1184 = vmand %vm1136, %vm1168
        %vm1185 = vmand %vm1137, %vm1169
        %vm1186 = vmand %vm1138, %vm1170
        %vm1187 = vmand %vm1139, %vm1171
        %vm1188 = vmand %vm1140, %vm1172
        %v1189 = vsel %vm1173, 0.0, -1e+30
        %v1190 = vsel %vm1174, 0.0, -1e+30
        %v1191 = vsel %vm1175, 0.0, -1e+30
        %v1192 = vsel %vm1176, 0.0, -1e+30
        %v1193 = vsel %vm1177, 0.0, -1e+30
        %v1194 = vsel %vm1178, 0.0, -1e+30
        %v1195 = vsel %vm1179, 0.0, -1e+30
        %v1196 = vsel %vm1180, 0.0, -1e+30
        %v1197 = vsel %vm1181, 0.0, -1e+30
        %v1198 = vsel %vm1182, 0.0, -1e+30
        %v1199 = vsel %vm1183, 0.0, -1e+30
        %v1200 = vsel %vm1184, 0.0, -1e+30
        %v1201 = vsel %vm1185, 0.0, -1e+30
        %v1202 = vsel %vm1186, 0.0, -1e+30
        %v1203 = vsel %vm1187, 0.0, -1e+30
        %v1204 = vsel %vm1188, 0.0, -1e+30
        %v1205 = vcvt.s32.f32 %v1093
        %v1206 = vcvt.s32.f32 %v1094
        %v1207 = vcvt.s32.f32 %v1095
        %v1208 = vcvt.s32.f32 %v1096
        %v1209 = vcvt.s32.f32 %v1097
        %v1210 = vcvt.s32.f32 %v1098
        %v1211 = vcvt.s32.f32 %v1099
        %v1212 = vcvt.s32.f32 %v1100
        %v1213 = vcvt.s32.f32 %v1101
        %v1214 = vcvt.s32.f32 %v1102
        %v1215 = vcvt.s32.f32 %v1103
        %v1216 = vcvt.s32.f32 %v1104
        %v1217 = vcvt.s32.f32 %v1105
        %v1218 = vcvt.s32.f32 %v1106
        %v1219 = vcvt.s32.f32 %v1107
        %v1220 = vcvt.s32.f32 %v1108
        %v1221 = vmul.f32 %v356, %v1205
        %v1222 = vmul.f32 %v361, %v1206
        %v1223 = vmul.f32 %v366, %v1207
        %v1224 = vmul.f32 %v371, %v1208
        %v1225 = vmul.f32 %v376, %v1209
        %v1226 = vmul.f32 %v381, %v1210
        %v1227 = vmul.f32 %v386, %v1211
        %v1228 = vmul.f32 %v391, %v1212
        %v1229 = vmul.f32 %v396, %v1213
        %v1230 = vmul.f32 %v401, %v1214
        %v1231 = vmul.f32 %v406, %v1215
        %v1232 = vmul.f32 %v411, %v1216
        %v1233 = vmul.f32 %v416, %v1217
        %v1234 = vmul.f32 %v421, %v1218
        %v1235 = vmul.f32 %v426, %v1219
        %v1236 = vmul.f32 %v431, %v1220
        %v1237 = vmul.f32 %v1221, 0.17677669
        %v1238 = vmul.f32 %v1222, 0.17677669
        %v1239 = vmul.f32 %v1223, 0.17677669
        %v1240 = vmul.f32 %v1224, 0.17677669
        %v1241 = vmul.f32 %v1225, 0.17677669
        %v1242 = vmul.f32 %v1226, 0.17677669
        %v1243 = vmul.f32 %v1227, 0.17677669
        %v1244 = vmul.f32 %v1228, 0.17677669
        %v1245 = vmul.f32 %v1229, 0.17677669
        %v1246 = vmul.f32 %v1230, 0.17677669
        %v1247 = vmul.f32 %v1231, 0.17677669
        %v1248 = vmul.f32 %v1232, 0.17677669
        %v1249 = vmul.f32 %v1233, 0.17677669
        %v1250 = vmul.f32 %v1234, 0.17677669
        %v1251 = vmul.f32 %v1235, 0.17677669
        %v1252 = vmul.f32 %v1236, 0.17677669
        %vm1253 = vcmp.ge.s32.totalorder %v452, 0
        %vm1254 = vcmp.lt.s32.totalorder %v452, 8
        %vm1255 = vmand %vm1253, %vm1254
        %v1256 = vsel %vm1255, 1, 0
        %v1257 = vcvt.s32.f32 %v1256
        %v1258 = vmul.f32 %v1237, %v1257
        %v1259 = vmul.f32 %v1238, %v1257
        %v1260 = vmul.f32 %v1239, %v1257
        %v1261 = vmul.f32 %v1240, %v1257
        %v1262 = vmul.f32 %v1241, %v1257
        %v1263 = vmul.f32 %v1242, %v1257
        %v1264 = vmul.f32 %v1243, %v1257
        %v1265 = vmul.f32 %v1244, %v1257
        %v1266 = vmul.f32 %v1245, %v1257
        %v1267 = vmul.f32 %v1246, %v1257
        %v1268 = vmul.f32 %v1247, %v1257
        %v1269 = vmul.f32 %v1248, %v1257
        %v1270 = vmul.f32 %v1249, %v1257
        %v1271 = vmul.f32 %v1250, %v1257
        %v1272 = vmul.f32 %v1251, %v1257
        %v1273 = vmul.f32 %v1252, %v1257
        %1290 = vrot.lane.b32.xlu0 %v356, 96
        %v1291 = vpop.permute.xlu0 %1290
        %1292 = vrot.lane.b32.xlu0 %v361, 96
        %v1293 = vpop.permute.xlu0 %1292
        %1294 = vrot.lane.b32.xlu0 %v366, 96
        %v1295 = vpop.permute.xlu0 %1294
        %1296 = vrot.lane.b32.xlu0 %v371, 96
        %v1297 = vpop.permute.xlu0 %1296
        %1298 = vrot.lane.b32.xlu0 %v376, 96
        %v1299 = vpop.permute.xlu0 %1298
        %1300 = vrot.lane.b32.xlu0 %v381, 96
        %v1301 = vpop.permute.xlu0 %1300
        %1302 = vrot.lane.b32.xlu0 %v386, 96
        %v1303 = vpop.permute.xlu0 %1302
        %1304 = vrot.lane.b32.xlu0 %v391, 96
        %v1305 = vpop.permute.xlu0 %1304
        %1306 = vrot.lane.b32.xlu0 %v396, 96
        %v1307 = vpop.permute.xlu0 %1306
        %1308 = vrot.lane.b32.xlu0 %v401, 96
        %v1309 = vpop.permute.xlu0 %1308
        %1310 = vrot.lane.b32.xlu0 %v406, 96
        %v1311 = vpop.permute.xlu0 %1310
        %1312 = vrot.lane.b32.xlu0 %v411, 96
        %v1313 = vpop.permute.xlu0 %1312
        %1314 = vrot.lane.b32.xlu0 %v416, 96
        %v1315 = vpop.permute.xlu0 %1314
        %1316 = vrot.lane.b32.xlu0 %v421, 96
        %v1317 = vpop.permute.xlu0 %1316
        %1318 = vrot.lane.b32.xlu0 %v426, 96
        %v1319 = vpop.permute.xlu0 %1318
        %1320 = vrot.lane.b32.xlu0 %v431, 96
        %v1321 = vpop.permute.xlu0 %1320
        %vm1322 = vcmask 261120
        %v1324 = vsel %vm1322, %v1258, 0
        %v1327 = vsel %vm1322, %v1259, 0
        %v1330 = vsel %vm1322, %v1260, 0
        %v1333 = vsel %vm1322, %v1261, 0
        %v1336 = vsel %vm1322, %v1262, 0
        %v1339 = vsel %vm1322, %v1263, 0
        %v1342 = vsel %vm1322, %v1264, 0
        %v1345 = vsel %vm1322, %v1265, 0
        %v1348 = vsel %vm1322, %v1266, 0
        %v1351 = vsel %vm1322, %v1267, 0
        %v1354 = vsel %vm1322, %v1268, 0
        %v1357 = vsel %vm1322, %v1269, 0
        %v1360 = vsel %vm1322, %v1270, 0
        %v1363 = vsel %vm1322, %v1271, 0
        %v1366 = vsel %vm1322, %v1272, 0
        %v1369 = vsel %vm1322, %v1273, 0
        %v1371 = vsel %vm1322, %v1291, 0
        %v1373 = vsel %vm1322, %v1293, 0
        %v1375 = vsel %vm1322, %v1295, 0
        %v1377 = vsel %vm1322, %v1297, 0
        %v1379 = vsel %vm1322, %v1299, 0
        %v1381 = vsel %vm1322, %v1301, 0
        %v1383 = vsel %vm1322, %v1303, 0
        %v1385 = vsel %vm1322, %v1305, 0
        %v1387 = vsel %vm1322, %v1307, 0
        %v1389 = vsel %vm1322, %v1309, 0
        %v1391 = vsel %vm1322, %v1311, 0
        %v1393 = vsel %vm1322, %v1313, 0
        %v1395 = vsel %vm1322, %v1315, 0
        %v1397 = vsel %vm1322, %v1317, 0
        %v1399 = vsel %vm1322, %v1319, 0
        %v1401 = vsel %vm1322, %v1321, 0
        %1403 = vmatprep.subr.mxu0 0.0
        %1404 = vmatpush1.xpose.msra.mxu0 %v1371
        %1405 = vmatprep.subr.mxu0 0.0
        %1406 = vmatpush1.xpose.msra.mxu0 %v1373
        %1407 = vmatprep.subr.mxu0 0.0
        %1408 = vmatpush1.xpose.msra.mxu0 %v1375
        %1409 = vmatprep.subr.mxu0 0.0
        %1410 = vmatpush1.xpose.msra.mxu0 %v1377
        %1411 = vmatprep.subr.mxu0 0.0
        %1412 = vmatpush1.xpose.msra.mxu0 %v1379
        %1413 = vmatprep.subr.mxu0 0.0
        %1414 = vmatpush1.xpose.msra.mxu0 %v1381
        %1415 = vmatprep.subr.mxu0 0.0
        %1416 = vmatpush1.xpose.msra.mxu0 %v1383
        %1417 = vmatprep.subr.mxu0 0.0
        %1418 = vmatpush1.xpose.msra.mxu0 %v1385
        %1419 = vmatprep.subr.mxu0 0.0
        %1420 = vmatpush1.xpose.msra.mxu0 %v1387
        %1421 = vmatprep.subr.mxu0 0.0
        %1422 = vmatpush1.xpose.msra.mxu0 %v1389
        %1423 = vmatprep.subr.mxu0 0.0
        %1424 = vmatpush1.xpose.msra.mxu0 %v1391
        %1425 = vmatprep.subr.mxu0 0.0
        %1426 = vmatpush1.xpose.msra.mxu0 %v1393
        %1427 = vmatprep.subr.mxu0 0.0
        %1428 = vmatpush1.xpose.msra.mxu0 %v1395
        %1429 = vmatprep.subr.mxu0 0.0
        %1430 = vmatpush1.xpose.msra.mxu0 %v1397
        %1431 = vmatprep.subr.mxu0 0.0
        %1432 = vmatpush1.xpose.msra.mxu0 %v1399
        %1433 = vmatprep.subr.mxu0 0.0
        %1434 = vmatpush1.xpose.msra.mxu0 %v1401
        %1435 = vmatprep.subr.mxu0 0.0
        %1436 = vmatpush1.xpose.msra.mxu0 0.0
        %1437 = vmatprep.subr.mxu0 0.0
        %1438 = vmatpush1.xpose.msra.mxu0 0.0
        %1439 = vmatprep.subr.mxu0 0.0
        %1440 = vmatpush1.xpose.msra.mxu0 0.0
        %1441 = vmatprep.subr.mxu0 0.0
        %1442 = vmatpush1.xpose.msra.mxu0 0.0
        %1443 = vmatprep.subr.mxu0 0.0
        %1444 = vmatpush1.xpose.msra.mxu0 0.0
        %1445 = vmatprep.subr.mxu0 0.0
        %1446 = vmatpush1.xpose.msra.mxu0 0.0
        %1447 = vmatprep.subr.mxu0 0.0
        %1448 = vmatpush1.xpose.msra.mxu0 0.0
        %1449 = vmatprep.subr.mxu0 0.0
        %1450 = vmatpush1.xpose.msra.mxu0 0.0
        %1451 = vmatprep.subr.mxu0 0.0
        %1452 = vmatpush1.xpose.msra.mxu0 0.0
        %1453 = vmatprep.subr.mxu0 0.0
        %1454 = vmatpush1.xpose.msra.mxu0 0.0
        %1455 = vmatprep.subr.mxu0 0.0
        %1456 = vmatpush1.xpose.msra.mxu0 0.0
        %1457 = vmatprep.subr.mxu0 0.0
        %1458 = vmatpush1.xpose.msra.mxu0 0.0
        %1459 = vmatprep.subr.mxu0 0.0
        %1460 = vmatpush1.xpose.msra.mxu0 0.0
        %1461 = vmatprep.subr.mxu0 0.0
        %1462 = vmatpush1.xpose.msra.mxu0 0.0
        %1463 = vmatprep.subr.mxu0 0.0
        %1464 = vmatpush1.xpose.msra.mxu0 0.0
        %1465 = vmatprep.subr.mxu0 0.0
        %1466 = vmatpush1.xpose.msra.mxu0 0.0
        %1467 = vmatprep.mubr.f32.mxu0 0.0
        %1468 = vmatmul.mubr.f32.gmra.mrb[0].mxu0 %v1324
        %v1469 = vpop.f32.mrb[0].mxu0
        %v1470 = vadd.f32 %v1189, %v1469
        %v1471 = vpop.f32.mrb[0].mxu0
        %1472 = vmatprep.mubr.f32.mxu0 0.0
        %1473 = vmatmul.mubr.f32.gmra.mrb[0].mxu0 %v1327
        %v1474 = vpop.f32.mrb[0].mxu0
        %v1475 = vadd.f32 %v1190, %v1474
        %v1476 = vpop.f32.mrb[0].mxu0
        %1477 = vmatprep.mubr.f32.mxu0 0.0
        %1478 = vmatmul.mubr.f32.gmra.mrb[0].mxu0 %v1330
        %v1479 = vpop.f32.mrb[0].mxu0
        %v1480 = vadd.f32 %v1191, %v1479
        %v1481 = vpop.f32.mrb[0].mxu0
        %1482 = vmatprep.mubr.f32.mxu0 0.0
        %1483 = vmatmul.mubr.f32.gmra.mrb[0].mxu0 %v1333
        %v1484 = vpop.f32.mrb[0].mxu0
        %v1485 = vadd.f32 %v1192, %v1484
        %v1486 = vpop.f32.mrb[0].mxu0
        %1487 = vmatprep.mubr.f32.mxu0 0.0
        %1488 = vmatmul.mubr.f32.gmra.mrb[0].mxu0 %v1336
        %v1489 = vpop.f32.mrb[0].mxu0
        %v1490 = vadd.f32 %v1193, %v1489
        %v1491 = vpop.f32.mrb[0].mxu0
        %1492 = vmatprep.mubr.f32.mxu0 0.0
        %1493 = vmatmul.mubr.f32.gmra.mrb[0].mxu0 %v1339
        %v1494 = vpop.f32.mrb[0].mxu0
        %v1495 = vadd.f32 %v1194, %v1494
        %v1496 = vpop.f32.mrb[0].mxu0
        %1497 = vmatprep.mubr.f32.mxu0 0.0
        %1498 = vmatmul.mubr.f32.gmra.mrb[0].mxu0 %v1342
        %v1499 = vpop.f32.mrb[0].mxu0
        %v1500 = vadd.f32 %v1195, %v1499
        %v1501 = vpop.f32.mrb[0].mxu0
        %1502 = vmatprep.mubr.f32.mxu0 0.0
        %1503 = vmatmul.mubr.f32.gmra.mrb[0].mxu0 %v1345
        %v1504 = vpop.f32.mrb[0].mxu0
        %v1505 = vadd.f32 %v1196, %v1504
        %v1506 = vpop.f32.mrb[0].mxu0
        %1507 = vmatprep.mubr.f32.mxu0 0.0
        %1508 = vmatmul.mubr.f32.gmra.mrb[0].mxu0 %v1348
        %v1509 = vpop.f32.mrb[0].mxu0
        %v1510 = vadd.f32 %v1197, %v1509
        %v1511 = vpop.f32.mrb[0].mxu0
        %1512 = vmatprep.mubr.f32.mxu0 0.0
        %1513 = vmatmul.mubr.f32.gmra.mrb[0].mxu0 %v1351
        %v1514 = vpop.f32.mrb[0].mxu0
        %v1515 = vadd.f32 %v1198, %v1514
        %v1516 = vpop.f32.mrb[0].mxu0
        %1517 = vmatprep.mubr.f32.mxu0 0.0
        %1518 = vmatmul.mubr.f32.gmra.mrb[0].mxu0 %v1354
        %v1519 = vpop.f32.mrb[0].mxu0
        %v1520 = vadd.f32 %v1199, %v1519
        %v1521 = vpop.f32.mrb[0].mxu0
        %1522 = vmatprep.mubr.f32.mxu0 0.0
        %1523 = vmatmul.mubr.f32.gmra.mrb[0].mxu0 %v1357
        %v1524 = vpop.f32.mrb[0].mxu0
        %v1525 = vadd.f32 %v1200, %v1524
        %v1526 = vpop.f32.mrb[0].mxu0
        %1527 = vmatprep.mubr.f32.mxu0 0.0
        %1528 = vmatmul.mubr.f32.gmra.mrb[0].mxu0 %v1360
        %v1529 = vpop.f32.mrb[0].mxu0
        %v1530 = vadd.f32 %v1201, %v1529
        %v1531 = vpop.f32.mrb[0].mxu0
        %1532 = vmatprep.mubr.f32.mxu0 0.0
        %1533 = vmatmul.mubr.f32.gmra.mrb[0].mxu0 %v1363
        %v1534 = vpop.f32.mrb[0].mxu0
        %v1535 = vadd.f32 %v1202, %v1534
        %v1536 = vpop.f32.mrb[0].mxu0
        %1537 = vmatprep.mubr.f32.mxu0 0.0
        %1538 = vmatmul.mubr.f32.gmra.mrb[0].mxu0 %v1366
        %v1539 = vpop.f32.mrb[0].mxu0
        %v1540 = vadd.f32 %v1203, %v1539
        %v1541 = vpop.f32.mrb[0].mxu0
        %1542 = vmatprep.mubr.f32.mxu0 0.0
        %1543 = vmatmul.mubr.f32.gmra.mrb[0].mxu0 %v1369
        %v1544 = vpop.f32.mrb[0].mxu0
        %v1545 = vadd.f32 %v1204, %v1544
        %v1546 = vpop.f32.mrb[0].mxu0
        %1547 = vdwg.mxu0
        %1548 = vmax.xlane.f32.xlu0 %v1470
        %v1549 = vpop.xlane.xlu0 %1548
        %1550 = vmax.xlane.f32.xlu0 %v1475
        %v1551 = vpop.xlane.xlu0 %1550
        %1552 = vmax.xlane.f32.xlu0 %v1480
        %v1553 = vpop.xlane.xlu0 %1552
        %1554 = vmax.xlane.f32.xlu0 %v1485
        %v1555 = vpop.xlane.xlu0 %1554
        %1556 = vmax.xlane.f32.xlu0 %v1490
        %v1557 = vpop.xlane.xlu0 %1556
        %1558 = vmax.xlane.f32.xlu0 %v1495
        %v1559 = vpop.xlane.xlu0 %1558
        %1560 = vmax.xlane.f32.xlu0 %v1500
        %v1561 = vpop.xlane.xlu0 %1560
        %1562 = vmax.xlane.f32.xlu0 %v1505
        %v1563 = vpop.xlane.xlu0 %1562
        %1564 = vmax.xlane.f32.xlu0 %v1510
        %v1565 = vpop.xlane.xlu0 %1564
        %1566 = vmax.xlane.f32.xlu0 %v1515
        %v1567 = vpop.xlane.xlu0 %1566
        %1568 = vmax.xlane.f32.xlu0 %v1520
        %v1569 = vpop.xlane.xlu0 %1568
        %1570 = vmax.xlane.f32.xlu0 %v1525
        %v1571 = vpop.xlane.xlu0 %1570
        %1572 = vmax.xlane.f32.xlu0 %v1530
        %v1573 = vpop.xlane.xlu0 %1572
        %1574 = vmax.xlane.f32.xlu0 %v1535
        %v1575 = vpop.xlane.xlu0 %1574
        %1576 = vmax.xlane.f32.xlu0 %v1540
        %v1577 = vpop.xlane.xlu0 %1576
        %1578 = vmax.xlane.f32.xlu0 %v1545
        %v1579 = vpop.xlane.xlu0 %1578
        %v1580 = vmax.f32 %v1549, 0.0
        %v1581 = vmax.f32 %v1551, 0.0
        %v1582 = vmax.f32 %v1553, 0.0
        %v1583 = vmax.f32 %v1555, 0.0
        %v1584 = vmax.f32 %v1557, 0.0
        %v1585 = vmax.f32 %v1559, 0.0
        %v1586 = vmax.f32 %v1561, 0.0
        %v1587 = vmax.f32 %v1563, 0.0
        %v1588 = vmax.f32 %v1565, 0.0
        %v1589 = vmax.f32 %v1567, 0.0
        %v1590 = vmax.f32 %v1569, 0.0
        %v1591 = vmax.f32 %v1571, 0.0
        %v1592 = vmax.f32 %v1573, 0.0
        %v1593 = vmax.f32 %v1575, 0.0
        %v1594 = vmax.f32 %v1577, 0.0
        %v1595 = vmax.f32 %v1579, 0.0
        %v1596 = vsub.f32 %v1470, %v1580
        %v1597 = vsub.f32 %v1475, %v1581
        %v1598 = vsub.f32 %v1480, %v1582
        %v1599 = vsub.f32 %v1485, %v1583
        %v1600 = vsub.f32 %v1490, %v1584
        %v1601 = vsub.f32 %v1495, %v1585
        %v1602 = vsub.f32 %v1500, %v1586
        %v1603 = vsub.f32 %v1505, %v1587
        %v1604 = vsub.f32 %v1510, %v1588
        %v1605 = vsub.f32 %v1515, %v1589
        %v1606 = vsub.f32 %v1520, %v1590
        %v1607 = vsub.f32 %v1525, %v1591
        %v1608 = vsub.f32 %v1530, %v1592
        %v1609 = vsub.f32 %v1535, %v1593
        %v1610 = vsub.f32 %v1540, %v1594
        %v1611 = vsub.f32 %v1545, %v1595
        %v1612 = vmul.f32 %v1596, 1.442695
        %v1613 = vpow.pop %v1612
        %v1614 = vmul.f32 %v1597, 1.442695
        %v1615 = vpow.pop %v1614
        %v1616 = vmul.f32 %v1598, 1.442695
        %v1617 = vpow.pop %v1616
        %v1618 = vmul.f32 %v1599, 1.442695
        %v1619 = vpow.pop %v1618
        %v1620 = vmul.f32 %v1600, 1.442695
        %v1621 = vpow.pop %v1620
        %v1622 = vmul.f32 %v1601, 1.442695
        %v1623 = vpow.pop %v1622
        %v1624 = vmul.f32 %v1602, 1.442695
        %v1625 = vpow.pop %v1624
        %v1626 = vmul.f32 %v1603, 1.442695
        %v1627 = vpow.pop %v1626
        %v1628 = vmul.f32 %v1604, 1.442695
        %v1629 = vpow.pop %v1628
        %v1630 = vmul.f32 %v1605, 1.442695
        %v1631 = vpow.pop %v1630
        %v1632 = vmul.f32 %v1606, 1.442695
        %v1633 = vpow.pop %v1632
        %v1634 = vmul.f32 %v1607, 1.442695
        %v1635 = vpow.pop %v1634
        %v1636 = vmul.f32 %v1608, 1.442695
        %v1637 = vpow.pop %v1636
        %v1638 = vmul.f32 %v1609, 1.442695
        %v1639 = vpow.pop %v1638
        %v1640 = vmul.f32 %v1610, 1.442695
        %v1641 = vpow.pop %v1640
        %v1642 = vmul.f32 %v1611, 1.442695
        %v1643 = vpow.pop %v1642
        %1644 = vadd.xlane.f32.xlu0 %v1613
        %v1645 = vpop.xlane.xlu0 %1644
        %1646 = vadd.xlane.f32.xlu0 %v1615
        %v1647 = vpop.xlane.xlu0 %1646
        %1648 = vadd.xlane.f32.xlu0 %v1617
        %v1649 = vpop.xlane.xlu0 %1648
        %1650 = vadd.xlane.f32.xlu0 %v1619
        %v1651 = vpop.xlane.xlu0 %1650
        %1652 = vadd.xlane.f32.xlu0 %v1621
        %v1653 = vpop.xlane.xlu0 %1652
        %1654 = vadd.xlane.f32.xlu0 %v1623
        %v1655 = vpop.xlane.xlu0 %1654
        %1656 = vadd.xlane.f32.xlu0 %v1625
        %v1657 = vpop.xlane.xlu0 %1656
        %1658 = vadd.xlane.f32.xlu0 %v1627
        %v1659 = vpop.xlane.xlu0 %1658
        %1660 = vadd.xlane.f32.xlu0 %v1629
        %v1661 = vpop.xlane.xlu0 %1660
        %1662 = vadd.xlane.f32.xlu0 %v1631
        %v1663 = vpop.xlane.xlu0 %1662
        %1664 = vadd.xlane.f32.xlu0 %v1633
        %v1665 = vpop.xlane.xlu0 %1664
        %1666 = vadd.xlane.f32.xlu0 %v1635
        %v1667 = vpop.xlane.xlu0 %1666
        %1668 = vadd.xlane.f32.xlu0 %v1637
        %v1669 = vpop.xlane.xlu0 %1668
        %1670 = vadd.xlane.f32.xlu0 %v1639
        %v1671 = vpop.xlane.xlu0 %1670
        %1672 = vadd.xlane.f32.xlu0 %v1641
        %v1673 = vpop.xlane.xlu0 %1672
        %1674 = vadd.xlane.f32.xlu0 %v1643
        %v1675 = vpop.xlane.xlu0 %1674
        %v1676 = vadd.f32 %v1645, 1e-15
        %v1677 = vadd.f32 %v1647, 1e-15
        %v1678 = vadd.f32 %v1649, 1e-15
        %v1679 = vadd.f32 %v1651, 1e-15
        %v1680 = vadd.f32 %v1653, 1e-15
        %v1681 = vadd.f32 %v1655, 1e-15
        %v1682 = vadd.f32 %v1657, 1e-15
        %v1683 = vadd.f32 %v1659, 1e-15
        %v1684 = vadd.f32 %v1661, 1e-15
        %v1685 = vadd.f32 %v1663, 1e-15
        %v1686 = vadd.f32 %v1665, 1e-15
        %v1687 = vadd.f32 %v1667, 1e-15
        %v1688 = vadd.f32 %v1669, 1e-15
        %v1689 = vadd.f32 %v1671, 1e-15
        %v1690 = vadd.f32 %v1673, 1e-15
        %v1691 = vadd.f32 %v1675, 1e-15
        %v1692 = vrcp.pop %v1676
        %v1693 = vmul.f32 1.0, %v1692
        %v1694 = vrcp.pop %v1677
        %v1695 = vmul.f32 1.0, %v1694
        %v1696 = vrcp.pop %v1678
        %v1697 = vmul.f32 1.0, %v1696
        %v1698 = vrcp.pop %v1679
        %v1699 = vmul.f32 1.0, %v1698
        %v1700 = vrcp.pop %v1680
        %v1701 = vmul.f32 1.0, %v1700
        %v1702 = vrcp.pop %v1681
        %v1703 = vmul.f32 1.0, %v1702
        %v1704 = vrcp.pop %v1682
        %v1705 = vmul.f32 1.0, %v1704
        %v1706 = vrcp.pop %v1683
        %v1707 = vmul.f32 1.0, %v1706
        %v1708 = vrcp.pop %v1684
        %v1709 = vmul.f32 1.0, %v1708
        %v1710 = vrcp.pop %v1685
        %v1711 = vmul.f32 1.0, %v1710
        %v1712 = vrcp.pop %v1686
        %v1713 = vmul.f32 1.0, %v1712
        %v1714 = vrcp.pop %v1687
        %v1715 = vmul.f32 1.0, %v1714
        %v1716 = vrcp.pop %v1688
        %v1717 = vmul.f32 1.0, %v1716
        %v1718 = vrcp.pop %v1689
        %v1719 = vmul.f32 1.0, %v1718
        %v1720 = vrcp.pop %v1690
        %v1721 = vmul.f32 1.0, %v1720
        %v1722 = vrcp.pop %v1691
        %v1723 = vmul.f32 1.0, %v1722
        %v1724 = vmul.f32 %v1613, %v1693
        %v1725 = vmul.f32 %v1615, %v1695
        %v1726 = vmul.f32 %v1617, %v1697
        %v1727 = vmul.f32 %v1619, %v1699
        %v1728 = vmul.f32 %v1621, %v1701
        %v1729 = vmul.f32 %v1623, %v1703
        %v1730 = vmul.f32 %v1625, %v1705
        %v1731 = vmul.f32 %v1627, %v1707
        %v1732 = vmul.f32 %v1629, %v1709
        %v1733 = vmul.f32 %v1631, %v1711
        %v1734 = vmul.f32 %v1633, %v1713
        %v1735 = vmul.f32 %v1635, %v1715
        %v1736 = vmul.f32 %v1637, %v1717
        %v1737 = vmul.f32 %v1639, %v1719
        %v1738 = vmul.f32 %v1641, %v1721
        %v1739 = vmul.f32 %v1643, %v1723
        %1741 = vrot.lane.b32.xlu0 %v1257, 64
        %v1742 = vpop.permute.xlu0 %1741
        %v1744 = vmul.f32 %v356, %v1742
        %v1745 = vmul.f32 %v361, %v1742
        %v1746 = vmul.f32 %v366, %v1742
        %v1747 = vmul.f32 %v371, %v1742
        %v1748 = vmul.f32 %v376, %v1742
        %v1749 = vmul.f32 %v381, %v1742
        %v1750 = vmul.f32 %v386, %v1742
        %v1751 = vmul.f32 %v391, %v1742
        %v1752 = vmul.f32 %v396, %v1742
        %v1753 = vmul.f32 %v401, %v1742
        %v1754 = vmul.f32 %v406, %v1742
        %v1755 = vmul.f32 %v411, %v1742
        %v1756 = vmul.f32 %v416, %v1742
        %v1757 = vmul.f32 %v421, %v1742
        %v1758 = vmul.f32 %v426, %v1742
        %v1759 = vmul.f32 %v431, %v1742
        %vm1760 = vcmp.ge.s32.totalorder %v452, 8
        %vm1761 = vcmp.lt.s32.totalorder %v452, 16
        %vm1762 = vmand %vm1760, %vm1761
        %v1763 = vsel %vm1762, 1, 0
        %v1764 = vcvt.s32.f32 %v1763
        %v1765 = vmul.f32 %v1237, %v1764
        %v1766 = vmul.f32 %v1238, %v1764
        %v1767 = vmul.f32 %v1239, %v1764
        %v1768 = vmul.f32 %v1240, %v1764
        %v1769 = vmul.f32 %v1241, %v1764
        %v1770 = vmul.f32 %v1242, %v1764
        %v1771 = vmul.f32 %v1243, %v1764
        %v1772 = vmul.f32 %v1244, %v1764
        %v1773 = vmul.f32 %v1245, %v1764
        %v1774 = vmul.f32 %v1246, %v1764
        %v1775 = vmul.f32 %v1247, %v1764
        %v1776 = vmul.f32 %v1248, %v1764
        %v1777 = vmul.f32 %v1249, %v1764
        %v1778 = vmul.f32 %v1250, %v1764
        %v1779 = vmul.f32 %v1251, %v1764
        %v1780 = vmul.f32 %v1252, %v1764
        %v1782 = vsel %vm1322, %v1765, 0
        %v1785 = vsel %vm1322, %v1766, 0
        %v1788 = vsel %vm1322, %v1767, 0
        %v1791 = vsel %vm1322, %v1768, 0
        %v1794 = vsel %vm1322, %v1769, 0
        %v1797 = vsel %vm1322, %v1770, 0
        %v1800 = vsel %vm1322, %v1771, 0
        %v1803 = vsel %vm1322, %v1772, 0
        %v1806 = vsel %vm1322, %v1773, 0
        %v1809 = vsel %vm1322, %v1774, 0
        %v1812 = vsel %vm1322, %v1775, 0
        %v1815 = vsel %vm1322, %v1776, 0
        %v1818 = vsel %vm1322, %v1777, 0
        %v1821 = vsel %vm1322, %v1778, 0
        %v1824 = vsel %vm1322, %v1779, 0
        %v1827 = vsel %vm1322, %v1780, 0
        %1829 = vmatprep.subr.mxu0 0.0
        %1830 = vmatpush1.xpose.msra.mxu0 %v1371
        %1831 = vmatprep.subr.mxu0 0.0
        %1832 = vmatpush1.xpose.msra.mxu0 %v1373
        %1833 = vmatprep.subr.mxu0 0.0
        %1834 = vmatpush1.xpose.msra.mxu0 %v1375
        %1835 = vmatprep.subr.mxu0 0.0
        %1836 = vmatpush1.xpose.msra.mxu0 %v1377
        %1837 = vmatprep.subr.mxu0 0.0
        %1838 = vmatpush1.xpose.msra.mxu0 %v1379
        %1839 = vmatprep.subr.mxu0 0.0
        %1840 = vmatpush1.xpose.msra.mxu0 %v1381
        %1841 = vmatprep.subr.mxu0 0.0
        %1842 = vmatpush1.xpose.msra.mxu0 %v1383
        %1843 = vmatprep.subr.mxu0 0.0
        %1844 = vmatpush1.xpose.msra.mxu0 %v1385
        %1845 = vmatprep.subr.mxu0 0.0
        %1846 = vmatpush1.xpose.msra.mxu0 %v1387
        %1847 = vmatprep.subr.mxu0 0.0
        %1848 = vmatpush1.xpose.msra.mxu0 %v1389
        %1849 = vmatprep.subr.mxu0 0.0
        %1850 = vmatpush1.xpose.msra.mxu0 %v1391
        %1851 = vmatprep.subr.mxu0 0.0
        %1852 = vmatpush1.xpose.msra.mxu0 %v1393
        %1853 = vmatprep.subr.mxu0 0.0
        %1854 = vmatpush1.xpose.msra.mxu0 %v1395
        %1855 = vmatprep.subr.mxu0 0.0
        %1856 = vmatpush1.xpose.msra.mxu0 %v1397
        %1857 = vmatprep.subr.mxu0 0.0
        %1858 = vmatpush1.xpose.msra.mxu0 %v1399
        %1859 = vmatprep.subr.mxu0 0.0
        %1860 = vmatpush1.xpose.msra.mxu0 %v1401
        %1861 = vmatprep.subr.mxu0 0.0
        %1862 = vmatpush1.xpose.msra.mxu0 0.0
        %1863 = vmatprep.subr.mxu0 0.0
        %1864 = vmatpush1.xpose.msra.mxu0 0.0
        %1865 = vmatprep.subr.mxu0 0.0
        %1866 = vmatpush1.xpose.msra.mxu0 0.0
        %1867 = vmatprep.subr.mxu0 0.0
        %1868 = vmatpush1.xpose.msra.mxu0 0.0
        %1869 = vmatprep.subr.mxu0 0.0
        %1870 = vmatpush1.xpose.msra.mxu0 0.0
        %1871 = vmatprep.subr.mxu0 0.0
        %1872 = vmatpush1.xpose.msra.mxu0 0.0
        %1873 = vmatprep.subr.mxu0 0.0
        %1874 = vmatpush1.xpose.msra.mxu0 0.0
        %1875 = vmatprep.subr.mxu0 0.0
        %1876 = vmatpush1.xpose.msra.mxu0 0.0
        %1877 = vmatprep.subr.mxu0 0.0
        %1878 = vmatpush1.xpose.msra.mxu0 0.0
        %1879 = vmatprep.subr.mxu0 0.0
        %1880 = vmatpush1.xpose.msra.mxu0 0.0
        %1881 = vmatprep.subr.mxu0 0.0
        %1882 = vmatpush1.xpose.msra.mxu0 0.0
        %1883 = vmatprep.subr.mxu0 0.0
        %1884 = vmatpush1.xpose.msra.mxu0 0.0
        %1885 = vmatprep.subr.mxu0 0.0
        %1886 = vmatpush1.xpose.msra.mxu0 0.0
        %1887 = vmatprep.subr.mxu0 0.0
        %1888 = vmatpush1.xpose.msra.mxu0 0.0
        %1889 = vmatprep.subr.mxu0 0.0
        %1890 = vmatpush1.xpose.msra.mxu0 0.0
        %1891 = vmatprep.subr.mxu0 0.0
        %1892 = vmatpush1.xpose.msra.mxu0 0.0
        %1893 = vmatprep.mubr.f32.mxu0 0.0
        %1894 = vmatmul.mubr.f32.gmra.mrb[0].mxu0 %v1782
        %v1895 = vpop.f32.mrb[0].mxu0
        %v1896 = vadd.f32 %v1189, %v1895
        %v1897 = vpop.f32.mrb[0].mxu0
        %1898 = vmatprep.mubr.f32.mxu0 0.0
        %1899 = vmatmul.mubr.f32.gmra.mrb[0].mxu0 %v1785
        %v1900 = vpop.f32.mrb[0].mxu0
        %v1901 = vadd.f32 %v1190, %v1900
        %v1902 = vpop.f32.mrb[0].mxu0
        %1903 = vmatprep.mubr.f32.mxu0 0.0
        %1904 = vmatmul.mubr.f32.gmra.mrb[0].mxu0 %v1788
        %v1905 = vpop.f32.mrb[0].mxu0
        %v1906 = vadd.f32 %v1191, %v1905
        %v1907 = vpop.f32.mrb[0].mxu0
        %1908 = vmatprep.mubr.f32.mxu0 0.0
        %1909 = vmatmul.mubr.f32.gmra.mrb[0].mxu0 %v1791
        %v1910 = vpop.f32.mrb[0].mxu0
        %v1911 = vadd.f32 %v1192, %v1910
        %v1912 = vpop.f32.mrb[0].mxu0
        %1913 = vmatprep.mubr.f32.mxu0 0.0
        %1914 = vmatmul.mubr.f32.gmra.mrb[0].mxu0 %v1794
        %v1915 = vpop.f32.mrb[0].mxu0
        %v1916 = vadd.f32 %v1193, %v1915
        %v1917 = vpop.f32.mrb[0].mxu0
        %1918 = vmatprep.mubr.f32.mxu0 0.0
        %1919 = vmatmul.mubr.f32.gmra.mrb[0].mxu0 %v1797
        %v1920 = vpop.f32.mrb[0].mxu0
        %v1921 = vadd.f32 %v1194, %v1920
        %v1922 = vpop.f32.mrb[0].mxu0
        %1923 = vmatprep.mubr.f32.mxu0 0.0
        %1924 = vmatmul.mubr.f32.gmra.mrb[0].mxu0 %v1800
        %v1925 = vpop.f32.mrb[0].mxu0
        %v1926 = vadd.f32 %v1195, %v1925
        %v1927 = vpop.f32.mrb[0].mxu0
        %1928 = vmatprep.mubr.f32.mxu0 0.0
        %1929 = vmatmul.mubr.f32.gmra.mrb[0].mxu0 %v1803
        %v1930 = vpop.f32.mrb[0].mxu0
        %v1931 = vadd.f32 %v1196, %v1930
        %v1932 = vpop.f32.mrb[0].mxu0
        %1933 = vmatprep.mubr.f32.mxu0 0.0
        %1934 = vmatmul.mubr.f32.gmra.mrb[0].mxu0 %v1806
        %v1935 = vpop.f32.mrb[0].mxu0
        %v1936 = vadd.f32 %v1197, %v1935
        %v1937 = vpop.f32.mrb[0].mxu0
        %1938 = vmatprep.mubr.f32.mxu0 0.0
        %1939 = vmatmul.mubr.f32.gmra.mrb[0].mxu0 %v1809
        %v1940 = vpop.f32.mrb[0].mxu0
        %v1941 = vadd.f32 %v1198, %v1940
        %v1942 = vpop.f32.mrb[0].mxu0
        %1943 = vmatprep.mubr.f32.mxu0 0.0
        %1944 = vmatmul.mubr.f32.gmra.mrb[0].mxu0 %v1812
        %v1945 = vpop.f32.mrb[0].mxu0
        %v1946 = vadd.f32 %v1199, %v1945
        %v1947 = vpop.f32.mrb[0].mxu0
        %1948 = vmatprep.mubr.f32.mxu0 0.0
        %1949 = vmatmul.mubr.f32.gmra.mrb[0].mxu0 %v1815
        %v1950 = vpop.f32.mrb[0].mxu0
        %v1951 = vadd.f32 %v1200, %v1950
        %v1952 = vpop.f32.mrb[0].mxu0
        %1953 = vmatprep.mubr.f32.mxu0 0.0
        %1954 = vmatmul.mubr.f32.gmra.mrb[0].mxu0 %v1818
        %v1955 = vpop.f32.mrb[0].mxu0
        %v1956 = vadd.f32 %v1201, %v1955
        %v1957 = vpop.f32.mrb[0].mxu0
        %1958 = vmatprep.mubr.f32.mxu0 0.0
        %1959 = vmatmul.mubr.f32.gmra.mrb[0].mxu0 %v1821
        %v1960 = vpop.f32.mrb[0].mxu0
        %v1961 = vadd.f32 %v1202, %v1960
        %v1962 = vpop.f32.mrb[0].mxu0
        %1963 = vmatprep.mubr.f32.mxu0 0.0
        %1964 = vmatmul.mubr.f32.gmra.mrb[0].mxu0 %v1824
        %v1965 = vpop.f32.mrb[0].mxu0
        %v1966 = vadd.f32 %v1203, %v1965
        %v1967 = vpop.f32.mrb[0].mxu0
        %1968 = vmatprep.mubr.f32.mxu0 0.0
        %1969 = vmatmul.mubr.f32.gmra.mrb[0].mxu0 %v1827
        %v1970 = vpop.f32.mrb[0].mxu0
        %v1971 = vadd.f32 %v1204, %v1970
        %v1972 = vpop.f32.mrb[0].mxu0
        %1973 = vdwg.mxu0
        %1974 = vmax.xlane.f32.xlu0 %v1896
        %v1975 = vpop.xlane.xlu0 %1974
        %1976 = vmax.xlane.f32.xlu0 %v1901
        %v1977 = vpop.xlane.xlu0 %1976
        %1978 = vmax.xlane.f32.xlu0 %v1906
        %v1979 = vpop.xlane.xlu0 %1978
        %1980 = vmax.xlane.f32.xlu0 %v1911
        %v1981 = vpop.xlane.xlu0 %1980
        %1982 = vmax.xlane.f32.xlu0 %v1916
        %v1983 = vpop.xlane.xlu0 %1982
        %1984 = vmax.xlane.f32.xlu0 %v1921
        %v1985 = vpop.xlane.xlu0 %1984
        %1986 = vmax.xlane.f32.xlu0 %v1926
        %v1987 = vpop.xlane.xlu0 %1986
        %1988 = vmax.xlane.f32.xlu0 %v1931
        %v1989 = vpop.xlane.xlu0 %1988
        %1990 = vmax.xlane.f32.xlu0 %v1936
        %v1991 = vpop.xlane.xlu0 %1990
        %1992 = vmax.xlane.f32.xlu0 %v1941
        %v1993 = vpop.xlane.xlu0 %1992
        %1994 = vmax.xlane.f32.xlu0 %v1946
        %v1995 = vpop.xlane.xlu0 %1994
        %1996 = vmax.xlane.f32.xlu0 %v1951
        %v1997 = vpop.xlane.xlu0 %1996
        %1998 = vmax.xlane.f32.xlu0 %v1956
        %v1999 = vpop.xlane.xlu0 %1998
        %2000 = vmax.xlane.f32.xlu0 %v1961
        %v2001 = vpop.xlane.xlu0 %2000
        %2002 = vmax.xlane.f32.xlu0 %v1966
        %v2003 = vpop.xlane.xlu0 %2002
        %2004 = vmax.xlane.f32.xlu0 %v1971
        %v2005 = vpop.xlane.xlu0 %2004
        %v2006 = vmax.f32 %v1975, 0.0
        %v2007 = vmax.f32 %v1977, 0.0
        %v2008 = vmax.f32 %v1979, 0.0
        %v2009 = vmax.f32 %v1981, 0.0
        %v2010 = vmax.f32 %v1983, 0.0
        %v2011 = vmax.f32 %v1985, 0.0
        %v2012 = vmax.f32 %v1987, 0.0
        %v2013 = vmax.f32 %v1989, 0.0
        %v2014 = vmax.f32 %v1991, 0.0
        %v2015 = vmax.f32 %v1993, 0.0
        %v2016 = vmax.f32 %v1995, 0.0
        %v2017 = vmax.f32 %v1997, 0.0
        %v2018 = vmax.f32 %v1999, 0.0
        %v2019 = vmax.f32 %v2001, 0.0
        %v2020 = vmax.f32 %v2003, 0.0
        %v2021 = vmax.f32 %v2005, 0.0
        %v2022 = vsub.f32 %v1896, %v2006
        %v2023 = vsub.f32 %v1901, %v2007
        %v2024 = vsub.f32 %v1906, %v2008
        %v2025 = vsub.f32 %v1911, %v2009
        %v2026 = vsub.f32 %v1916, %v2010
        %v2027 = vsub.f32 %v1921, %v2011
        %v2028 = vsub.f32 %v1926, %v2012
        %v2029 = vsub.f32 %v1931, %v2013
        %v2030 = vsub.f32 %v1936, %v2014
        %v2031 = vsub.f32 %v1941, %v2015
        %v2032 = vsub.f32 %v1946, %v2016
        %v2033 = vsub.f32 %v1951, %v2017
        %v2034 = vsub.f32 %v1956, %v2018
        %v2035 = vsub.f32 %v1961, %v2019
        %v2036 = vsub.f32 %v1966, %v2020
        %v2037 = vsub.f32 %v1971, %v2021
        %v2038 = vmul.f32 %v2022, 1.442695
        %v2039 = vpow.pop %v2038
        %v2040 = vmul.f32 %v2023, 1.442695
        %v2041 = vpow.pop %v2040
        %v2042 = vmul.f32 %v2024, 1.442695
        %v2043 = vpow.pop %v2042
        %v2044 = vmul.f32 %v2025, 1.442695
        %v2045 = vpow.pop %v2044
        %v2046 = vmul.f32 %v2026, 1.442695
        %v2047 = vpow.pop %v2046
        %v2048 = vmul.f32 %v2027, 1.442695
        %v2049 = vpow.pop %v2048
        %v2050 = vmul.f32 %v2028, 1.442695
        %v2051 = vpow.pop %v2050
        %v2052 = vmul.f32 %v2029, 1.442695
        %v2053 = vpow.pop %v2052
        %v2054 = vmul.f32 %v2030, 1.442695
        %v2055 = vpow.pop %v2054
        %v2056 = vmul.f32 %v2031, 1.442695
        %v2057 = vpow.pop %v2056
        %v2058 = vmul.f32 %v2032, 1.442695
        %v2059 = vpow.pop %v2058
        %v2060 = vmul.f32 %v2033, 1.442695
        %v2061 = vpow.pop %v2060
        %v2062 = vmul.f32 %v2034, 1.442695
        %v2063 = vpow.pop %v2062
        %v2064 = vmul.f32 %v2035, 1.442695
        %v2065 = vpow.pop %v2064
        %v2066 = vmul.f32 %v2036, 1.442695
        %v2067 = vpow.pop %v2066
        %v2068 = vmul.f32 %v2037, 1.442695
        %v2069 = vpow.pop %v2068
        %2070 = vadd.xlane.f32.xlu0 %v2039
        %v2071 = vpop.xlane.xlu0 %2070
        %2072 = vadd.xlane.f32.xlu0 %v2041
        %v2073 = vpop.xlane.xlu0 %2072
        %2074 = vadd.xlane.f32.xlu0 %v2043
        %v2075 = vpop.xlane.xlu0 %2074
        %2076 = vadd.xlane.f32.xlu0 %v2045
        %v2077 = vpop.xlane.xlu0 %2076
        %2078 = vadd.xlane.f32.xlu0 %v2047
        %v2079 = vpop.xlane.xlu0 %2078
        %2080 = vadd.xlane.f32.xlu0 %v2049
        %v2081 = vpop.xlane.xlu0 %2080
        %2082 = vadd.xlane.f32.xlu0 %v2051
        %v2083 = vpop.xlane.xlu0 %2082
        %2084 = vadd.xlane.f32.xlu0 %v2053
        %v2085 = vpop.xlane.xlu0 %2084
        %2086 = vadd.xlane.f32.xlu0 %v2055
        %v2087 = vpop.xlane.xlu0 %2086
        %2088 = vadd.xlane.f32.xlu0 %v2057
        %v2089 = vpop.xlane.xlu0 %2088
        %2090 = vadd.xlane.f32.xlu0 %v2059
        %v2091 = vpop.xlane.xlu0 %2090
        %2092 = vadd.xlane.f32.xlu0 %v2061
        %v2093 = vpop.xlane.xlu0 %2092
        %2094 = vadd.xlane.f32.xlu0 %v2063
        %v2095 = vpop.xlane.xlu0 %2094
        %2096 = vadd.xlane.f32.xlu0 %v2065
        %v2097 = vpop.xlane.xlu0 %2096
        %2098 = vadd.xlane.f32.xlu0 %v2067
        %v2099 = vpop.xlane.xlu0 %2098
        %2100 = vadd.xlane.f32.xlu0 %v2069
        %v2101 = vpop.xlane.xlu0 %2100
        %v2102 = vadd.f32 %v2071, 1e-15
        %v2103 = vadd.f32 %v2073, 1e-15
        %v2104 = vadd.f32 %v2075, 1e-15
        %v2105 = vadd.f32 %v2077, 1e-15
        %v2106 = vadd.f32 %v2079, 1e-15
        %v2107 = vadd.f32 %v2081, 1e-15
        %v2108 = vadd.f32 %v2083, 1e-15
        %v2109 = vadd.f32 %v2085, 1e-15
        %v2110 = vadd.f32 %v2087, 1e-15
        %v2111 = vadd.f32 %v2089, 1e-15
        %v2112 = vadd.f32 %v2091, 1e-15
        %v2113 = vadd.f32 %v2093, 1e-15
        %v2114 = vadd.f32 %v2095, 1e-15
        %v2115 = vadd.f32 %v2097, 1e-15
        %v2116 = vadd.f32 %v2099, 1e-15
        %v2117 = vadd.f32 %v2101, 1e-15
        %v2118 = vrcp.pop %v2102
        %v2119 = vmul.f32 1.0, %v2118
        %v2120 = vrcp.pop %v2103
        %v2121 = vmul.f32 1.0, %v2120
        %v2122 = vrcp.pop %v2104
        %v2123 = vmul.f32 1.0, %v2122
        %v2124 = vrcp.pop %v2105
        %v2125 = vmul.f32 1.0, %v2124
        %v2126 = vrcp.pop %v2106
        %v2127 = vmul.f32 1.0, %v2126
        %v2128 = vrcp.pop %v2107
        %v2129 = vmul.f32 1.0, %v2128
        %v2130 = vrcp.pop %v2108
        %v2131 = vmul.f32 1.0, %v2130
        %v2132 = vrcp.pop %v2109
        %v2133 = vmul.f32 1.0, %v2132
        %v2134 = vrcp.pop %v2110
        %v2135 = vmul.f32 1.0, %v2134
        %v2136 = vrcp.pop %v2111
        %v2137 = vmul.f32 1.0, %v2136
        %v2138 = vrcp.pop %v2112
        %v2139 = vmul.f32 1.0, %v2138
        %v2140 = vrcp.pop %v2113
        %v2141 = vmul.f32 1.0, %v2140
        %v2142 = vrcp.pop %v2114
        %v2143 = vmul.f32 1.0, %v2142
        %v2144 = vrcp.pop %v2115
        %v2145 = vmul.f32 1.0, %v2144
        %v2146 = vrcp.pop %v2116
        %v2147 = vmul.f32 1.0, %v2146
        %v2148 = vrcp.pop %v2117
        %v2149 = vmul.f32 1.0, %v2148
        %v2150 = vmul.f32 %v2039, %v2119
        %v2151 = vmul.f32 %v2041, %v2121
        %v2152 = vmul.f32 %v2043, %v2123
        %v2153 = vmul.f32 %v2045, %v2125
        %v2154 = vmul.f32 %v2047, %v2127
        %v2155 = vmul.f32 %v2049, %v2129
        %v2156 = vmul.f32 %v2051, %v2131
        %v2157 = vmul.f32 %v2053, %v2133
        %v2158 = vmul.f32 %v2055, %v2135
        %v2159 = vmul.f32 %v2057, %v2137
        %v2160 = vmul.f32 %v2059, %v2139
        %v2161 = vmul.f32 %v2061, %v2141
        %v2162 = vmul.f32 %v2063, %v2143
        %v2163 = vmul.f32 %v2065, %v2145
        %v2164 = vmul.f32 %v2067, %v2147
        %v2165 = vmul.f32 %v2069, %v2149
        %2167 = vrot.lane.b32.xlu0 %v1764, 64
        %v2168 = vpop.permute.xlu0 %2167
        %v2170 = vmul.f32 %v356, %v2168
        %v2171 = vmul.f32 %v361, %v2168
        %v2172 = vmul.f32 %v366, %v2168
        %v2173 = vmul.f32 %v371, %v2168
        %v2174 = vmul.f32 %v376, %v2168
        %v2175 = vmul.f32 %v381, %v2168
        %v2176 = vmul.f32 %v386, %v2168
        %v2177 = vmul.f32 %v391, %v2168
        %v2178 = vmul.f32 %v396, %v2168
        %v2179 = vmul.f32 %v401, %v2168
        %v2180 = vmul.f32 %v406, %v2168
        %v2181 = vmul.f32 %v411, %v2168
        %v2182 = vmul.f32 %v416, %v2168
        %v2183 = vmul.f32 %v421, %v2168
        %v2184 = vmul.f32 %v426, %v2168
        %v2185 = vmul.f32 %v431, %v2168
        %2202 = vrot.lane.b32.xlu0 %v2170, 64
        %v2203 = vpop.permute.xlu0 %2202
        %2204 = vrot.lane.b32.xlu0 %v2171, 64
        %v2205 = vpop.permute.xlu0 %2204
        %2206 = vrot.lane.b32.xlu0 %v2172, 64
        %v2207 = vpop.permute.xlu0 %2206
        %2208 = vrot.lane.b32.xlu0 %v2173, 64
        %v2209 = vpop.permute.xlu0 %2208
        %2210 = vrot.lane.b32.xlu0 %v2174, 64
        %v2211 = vpop.permute.xlu0 %2210
        %2212 = vrot.lane.b32.xlu0 %v2175, 64
        %v2213 = vpop.permute.xlu0 %2212
        %2214 = vrot.lane.b32.xlu0 %v2176, 64
        %v2215 = vpop.permute.xlu0 %2214
        %2216 = vrot.lane.b32.xlu0 %v2177, 64
        %v2217 = vpop.permute.xlu0 %2216
        %2218 = vrot.lane.b32.xlu0 %v2178, 64
        %v2219 = vpop.permute.xlu0 %2218
        %2220 = vrot.lane.b32.xlu0 %v2179, 64
        %v2221 = vpop.permute.xlu0 %2220
        %2222 = vrot.lane.b32.xlu0 %v2180, 64
        %v2223 = vpop.permute.xlu0 %2222
        %2224 = vrot.lane.b32.xlu0 %v2181, 64
        %v2225 = vpop.permute.xlu0 %2224
        %2226 = vrot.lane.b32.xlu0 %v2182, 64
        %v2227 = vpop.permute.xlu0 %2226
        %2228 = vrot.lane.b32.xlu0 %v2183, 64
        %v2229 = vpop.permute.xlu0 %2228
        %2230 = vrot.lane.b32.xlu0 %v2184, 64
        %v2231 = vpop.permute.xlu0 %2230
        %2232 = vrot.lane.b32.xlu0 %v2185, 64
        %v2233 = vpop.permute.xlu0 %2232
        %2250 = vmatprep.subr.mxu0 0.0
        %2251 = vmatpush1.msra.mxu0 %v2203
        %2252 = vmatprep.subr.mxu0 0.0
        %2253 = vmatpush1.msra.mxu0 %v2205
        %2254 = vmatprep.subr.mxu0 0.0
        %2255 = vmatpush1.msra.mxu0 %v2207
        %2256 = vmatprep.subr.mxu0 0.0
        %2257 = vmatpush1.msra.mxu0 %v2209
        %2258 = vmatprep.subr.mxu0 0.0
        %2259 = vmatpush1.msra.mxu0 %v2211
        %2260 = vmatprep.subr.mxu0 0.0
        %2261 = vmatpush1.msra.mxu0 %v2213
        %2262 = vmatprep.subr.mxu0 0.0
        %2263 = vmatpush1.msra.mxu0 %v2215
        %2264 = vmatprep.subr.mxu0 0.0
        %2265 = vmatpush1.msra.mxu0 %v2217
        %2266 = vmatprep.subr.mxu0 0.0
        %2267 = vmatpush1.msra.mxu0 %v2219
        %2268 = vmatprep.subr.mxu0 0.0
        %2269 = vmatpush1.msra.mxu0 %v2221
        %2270 = vmatprep.subr.mxu0 0.0
        %2271 = vmatpush1.msra.mxu0 %v2223
        %2272 = vmatprep.subr.mxu0 0.0
        %2273 = vmatpush1.msra.mxu0 %v2225
        %2274 = vmatprep.subr.mxu0 0.0
        %2275 = vmatpush1.msra.mxu0 %v2227
        %2276 = vmatprep.subr.mxu0 0.0
        %2277 = vmatpush1.msra.mxu0 %v2229
        %2278 = vmatprep.subr.mxu0 0.0
        %2279 = vmatpush1.msra.mxu0 %v2231
        %2280 = vmatprep.subr.mxu0 0.0
        %2281 = vmatpush1.msra.mxu0 %v2233
        %2282 = vmatprep.subr.mxu0 0.0
        %2283 = vmatpush1.msra.mxu0 0.0
        %2284 = vmatprep.subr.mxu0 0.0
        %2285 = vmatpush1.msra.mxu0 0.0
        %2286 = vmatprep.subr.mxu0 0.0
        %2287 = vmatpush1.msra.mxu0 0.0
        %2288 = vmatprep.subr.mxu0 0.0
        %2289 = vmatpush1.msra.mxu0 0.0
        %2290 = vmatprep.subr.mxu0 0.0
        %2291 = vmatpush1.msra.mxu0 0.0
        %2292 = vmatprep.subr.mxu0 0.0
        %2293 = vmatpush1.msra.mxu0 0.0
        %2294 = vmatprep.subr.mxu0 0.0
        %2295 = vmatpush1.msra.mxu0 0.0
        %2296 = vmatprep.subr.mxu0 0.0
        %2297 = vmatpush1.msra.mxu0 0.0
        %2298 = vmatprep.subr.mxu0 0.0
        %2299 = vmatpush1.msra.mxu0 0.0
        %2300 = vmatprep.subr.mxu0 0.0
        %2301 = vmatpush1.msra.mxu0 0.0
        %2302 = vmatprep.subr.mxu0 0.0
        %2303 = vmatpush1.msra.mxu0 0.0
        %2304 = vmatprep.subr.mxu0 0.0
        %2305 = vmatpush1.msra.mxu0 0.0
        %2306 = vmatprep.subr.mxu0 0.0
        %2307 = vmatpush1.msra.mxu0 0.0
        %2308 = vmatprep.subr.mxu0 0.0
        %2309 = vmatpush1.msra.mxu0 0.0
        %2310 = vmatprep.subr.mxu0 0.0
        %2311 = vmatpush1.msra.mxu0 0.0
        %2312 = vmatprep.subr.mxu0 0.0
        %2313 = vmatpush1.msra.mxu0 0.0
        %2314 = vmatprep.mubr.f32.mxu0 0.0
        %2315 = vmatmul.mubr.f32.gmra.mrb[0].mxu0 %v2150
        %v2316 = vpop.f32.mrb[0].mxu0
        %v2317 = vadd.f32 0.0, %v2316
        %v2318 = vpop.f32.mrb[0].mxu0
        %2319 = vmatprep.mubr.f32.mxu0 0.0
        %2320 = vmatmul.mubr.f32.gmra.mrb[0].mxu0 %v2151
        %v2321 = vpop.f32.mrb[0].mxu0
        %v2322 = vadd.f32 0.0, %v2321
        %v2323 = vpop.f32.mrb[0].mxu0
        %2324 = vmatprep.mubr.f32.mxu0 0.0
        %2325 = vmatmul.mubr.f32.gmra.mrb[0].mxu0 %v2152
        %v2326 = vpop.f32.mrb[0].mxu0
        %v2327 = vadd.f32 0.0, %v2326
        %v2328 = vpop.f32.mrb[0].mxu0
        %2329 = vmatprep.mubr.f32.mxu0 0.0
        %2330 = vmatmul.mubr.f32.gmra.mrb[0].mxu0 %v2153
        %v2331 = vpop.f32.mrb[0].mxu0
        %v2332 = vadd.f32 0.0, %v2331
        %v2333 = vpop.f32.mrb[0].mxu0
        %2334 = vmatprep.mubr.f32.mxu0 0.0
        %2335 = vmatmul.mubr.f32.gmra.mrb[0].mxu0 %v2154
        %v2336 = vpop.f32.mrb[0].mxu0
        %v2337 = vadd.f32 0.0, %v2336
        %v2338 = vpop.f32.mrb[0].mxu0
        %2339 = vmatprep.mubr.f32.mxu0 0.0
        %2340 = vmatmul.mubr.f32.gmra.mrb[0].mxu0 %v2155
        %v2341 = vpop.f32.mrb[0].mxu0
        %v2342 = vadd.f32 0.0, %v2341
        %v2343 = vpop.f32.mrb[0].mxu0
        %2344 = vmatprep.mubr.f32.mxu0 0.0
        %2345 = vmatmul.mubr.f32.gmra.mrb[0].mxu0 %v2156
        %v2346 = vpop.f32.mrb[0].mxu0
        %v2347 = vadd.f32 0.0, %v2346
        %v2348 = vpop.f32.mrb[0].mxu0
        %2349 = vmatprep.mubr.f32.mxu0 0.0
        %2350 = vmatmul.mubr.f32.gmra.mrb[0].mxu0 %v2157
        %v2351 = vpop.f32.mrb[0].mxu0
        %v2352 = vadd.f32 0.0, %v2351
        %v2353 = vpop.f32.mrb[0].mxu0
        %2354 = vmatprep.mubr.f32.mxu0 0.0
        %2355 = vmatmul.mubr.f32.gmra.mrb[0].mxu0 %v2158
        %v2356 = vpop.f32.mrb[0].mxu0
        %v2357 = vadd.f32 0.0, %v2356
        %v2358 = vpop.f32.mrb[0].mxu0
        %2359 = vmatprep.mubr.f32.mxu0 0.0
        %2360 = vmatmul.mubr.f32.gmra.mrb[0].mxu0 %v2159
        %v2361 = vpop.f32.mrb[0].mxu0
        %v2362 = vadd.f32 0.0, %v2361
        %v2363 = vpop.f32.mrb[0].mxu0
        %2364 = vmatprep.mubr.f32.mxu0 0.0
        %2365 = vmatmul.mubr.f32.gmra.mrb[0].mxu0 %v2160
        %v2366 = vpop.f32.mrb[0].mxu0
        %v2367 = vadd.f32 0.0, %v2366
        %v2368 = vpop.f32.mrb[0].mxu0
        %2369 = vmatprep.mubr.f32.mxu0 0.0
        %2370 = vmatmul.mubr.f32.gmra.mrb[0].mxu0 %v2161
        %v2371 = vpop.f32.mrb[0].mxu0
        %v2372 = vadd.f32 0.0, %v2371
        %v2373 = vpop.f32.mrb[0].mxu0
        %2374 = vmatprep.mubr.f32.mxu0 0.0
        %2375 = vmatmul.mubr.f32.gmra.mrb[0].mxu0 %v2162
        %v2376 = vpop.f32.mrb[0].mxu0
        %v2377 = vadd.f32 0.0, %v2376
        %v2378 = vpop.f32.mrb[0].mxu0
        %2379 = vmatprep.mubr.f32.mxu0 0.0
        %2380 = vmatmul.mubr.f32.gmra.mrb[0].mxu0 %v2163
        %v2381 = vpop.f32.mrb[0].mxu0
        %v2382 = vadd.f32 0.0, %v2381
        %v2383 = vpop.f32.mrb[0].mxu0
        %2384 = vmatprep.mubr.f32.mxu0 0.0
        %2385 = vmatmul.mubr.f32.gmra.mrb[0].mxu0 %v2164
        %v2386 = vpop.f32.mrb[0].mxu0
        %v2387 = vadd.f32 0.0, %v2386
        %v2388 = vpop.f32.mrb[0].mxu0
        %2389 = vmatprep.mubr.f32.mxu0 0.0
        %2390 = vmatmul.mubr.f32.gmra.mrb[0].mxu0 %v2165
        %v2391 = vpop.f32.mrb[0].mxu0
        %v2392 = vadd.f32 0.0, %v2391
        %v2393 = vpop.f32.mrb[0].mxu0
        %2394 = vdwg.mxu0
        %2411 = vrot.lane.b32.xlu0 %v1744, 64
        %v2412 = vpop.permute.xlu0 %2411
        %2413 = vrot.lane.b32.xlu0 %v1745, 64
        %v2414 = vpop.permute.xlu0 %2413
        %2415 = vrot.lane.b32.xlu0 %v1746, 64
        %v2416 = vpop.permute.xlu0 %2415
        %2417 = vrot.lane.b32.xlu0 %v1747, 64
        %v2418 = vpop.permute.xlu0 %2417
        %2419 = vrot.lane.b32.xlu0 %v1748, 64
        %v2420 = vpop.permute.xlu0 %2419
        %2421 = vrot.lane.b32.xlu0 %v1749, 64
        %v2422 = vpop.permute.xlu0 %2421
        %2423 = vrot.lane.b32.xlu0 %v1750, 64
        %v2424 = vpop.permute.xlu0 %2423
        %2425 = vrot.lane.b32.xlu0 %v1751, 64
        %v2426 = vpop.permute.xlu0 %2425
        %2427 = vrot.lane.b32.xlu0 %v1752, 64
        %v2428 = vpop.permute.xlu0 %2427
        %2429 = vrot.lane.b32.xlu0 %v1753, 64
        %v2430 = vpop.permute.xlu0 %2429
        %2431 = vrot.lane.b32.xlu0 %v1754, 64
        %v2432 = vpop.permute.xlu0 %2431
        %2433 = vrot.lane.b32.xlu0 %v1755, 64
        %v2434 = vpop.permute.xlu0 %2433
        %2435 = vrot.lane.b32.xlu0 %v1756, 64
        %v2436 = vpop.permute.xlu0 %2435
        %2437 = vrot.lane.b32.xlu0 %v1757, 64
        %v2438 = vpop.permute.xlu0 %2437
        %2439 = vrot.lane.b32.xlu0 %v1758, 64
        %v2440 = vpop.permute.xlu0 %2439
        %2441 = vrot.lane.b32.xlu0 %v1759, 64
        %v2442 = vpop.permute.xlu0 %2441
        %2459 = vmatprep.subr.mxu0 0.0
        %2460 = vmatpush1.msra.mxu0 %v2412
        %2461 = vmatprep.subr.mxu0 0.0
        %2462 = vmatpush1.msra.mxu0 %v2414
        %2463 = vmatprep.subr.mxu0 0.0
        %2464 = vmatpush1.msra.mxu0 %v2416
        %2465 = vmatprep.subr.mxu0 0.0
        %2466 = vmatpush1.msra.mxu0 %v2418
        %2467 = vmatprep.subr.mxu0 0.0
        %2468 = vmatpush1.msra.mxu0 %v2420
        %2469 = vmatprep.subr.mxu0 0.0
        %2470 = vmatpush1.msra.mxu0 %v2422
        %2471 = vmatprep.subr.mxu0 0.0
        %2472 = vmatpush1.msra.mxu0 %v2424
        %2473 = vmatprep.subr.mxu0 0.0
        %2474 = vmatpush1.msra.mxu0 %v2426
        %2475 = vmatprep.subr.mxu0 0.0
        %2476 = vmatpush1.msra.mxu0 %v2428
        %2477 = vmatprep.subr.mxu0 0.0
        %2478 = vmatpush1.msra.mxu0 %v2430
        %2479 = vmatprep.subr.mxu0 0.0
        %2480 = vmatpush1.msra.mxu0 %v2432
        %2481 = vmatprep.subr.mxu0 0.0
        %2482 = vmatpush1.msra.mxu0 %v2434
        %2483 = vmatprep.subr.mxu0 0.0
        %2484 = vmatpush1.msra.mxu0 %v2436
        %2485 = vmatprep.subr.mxu0 0.0
        %2486 = vmatpush1.msra.mxu0 %v2438
        %2487 = vmatprep.subr.mxu0 0.0
        %2488 = vmatpush1.msra.mxu0 %v2440
        %2489 = vmatprep.subr.mxu0 0.0
        %2490 = vmatpush1.msra.mxu0 %v2442
        %2491 = vmatprep.subr.mxu0 0.0
        %2492 = vmatpush1.msra.mxu0 0.0
        %2493 = vmatprep.subr.mxu0 0.0
        %2494 = vmatpush1.msra.mxu0 0.0
        %2495 = vmatprep.subr.mxu0 0.0
        %2496 = vmatpush1.msra.mxu0 0.0
        %2497 = vmatprep.subr.mxu0 0.0
        %2498 = vmatpush1.msra.mxu0 0.0
        %2499 = vmatprep.subr.mxu0 0.0
        %2500 = vmatpush1.msra.mxu0 0.0
        %2501 = vmatprep.subr.mxu0 0.0
        %2502 = vmatpush1.msra.mxu0 0.0
        %2503 = vmatprep.subr.mxu0 0.0
        %2504 = vmatpush1.msra.mxu0 0.0
        %2505 = vmatprep.subr.mxu0 0.0
        %2506 = vmatpush1.msra.mxu0 0.0
        %2507 = vmatprep.subr.mxu0 0.0
        %2508 = vmatpush1.msra.mxu0 0.0
        %2509 = vmatprep.subr.mxu0 0.0
        %2510 = vmatpush1.msra.mxu0 0.0
        %2511 = vmatprep.subr.mxu0 0.0
        %2512 = vmatpush1.msra.mxu0 0.0
        %2513 = vmatprep.subr.mxu0 0.0
        %2514 = vmatpush1.msra.mxu0 0.0
        %2515 = vmatprep.subr.mxu0 0.0
        %2516 = vmatpush1.msra.mxu0 0.0
        %2517 = vmatprep.subr.mxu0 0.0
        %2518 = vmatpush1.msra.mxu0 0.0
        %2519 = vmatprep.subr.mxu0 0.0
        %2520 = vmatpush1.msra.mxu0 0.0
        %2521 = vmatprep.subr.mxu0 0.0
        %2522 = vmatpush1.msra.mxu0 0.0
        %2523 = vmatprep.mubr.f32.mxu0 0.0
        %2524 = vmatmul.mubr.f32.gmra.mrb[0].mxu0 %v1724
        %v2525 = vpop.f32.mrb[0].mxu0
        %v2526 = vadd.f32 %v2317, %v2525
        %v2527 = vpop.f32.mrb[0].mxu0
        %2528 = vmatprep.mubr.f32.mxu0 0.0
        %2529 = vmatmul.mubr.f32.gmra.mrb[0].mxu0 %v1725
        %v2530 = vpop.f32.mrb[0].mxu0
        %v2531 = vadd.f32 %v2322, %v2530
        %v2532 = vpop.f32.mrb[0].mxu0
        %2533 = vmatprep.mubr.f32.mxu0 0.0
        %2534 = vmatmul.mubr.f32.gmra.mrb[0].mxu0 %v1726
        %v2535 = vpop.f32.mrb[0].mxu0
        %v2536 = vadd.f32 %v2327, %v2535
        %v2537 = vpop.f32.mrb[0].mxu0
        %2538 = vmatprep.mubr.f32.mxu0 0.0
        %2539 = vmatmul.mubr.f32.gmra.mrb[0].mxu0 %v1727
        %v2540 = vpop.f32.mrb[0].mxu0
        %v2541 = vadd.f32 %v2332, %v2540
        %v2542 = vpop.f32.mrb[0].mxu0
        %2543 = vmatprep.mubr.f32.mxu0 0.0
        %2544 = vmatmul.mubr.f32.gmra.mrb[0].mxu0 %v1728
        %v2545 = vpop.f32.mrb[0].mxu0
        %v2546 = vadd.f32 %v2337, %v2545
        %v2547 = vpop.f32.mrb[0].mxu0
        %2548 = vmatprep.mubr.f32.mxu0 0.0
        %2549 = vmatmul.mubr.f32.gmra.mrb[0].mxu0 %v1729
        %v2550 = vpop.f32.mrb[0].mxu0
        %v2551 = vadd.f32 %v2342, %v2550
        %v2552 = vpop.f32.mrb[0].mxu0
        %2553 = vmatprep.mubr.f32.mxu0 0.0
        %2554 = vmatmul.mubr.f32.gmra.mrb[0].mxu0 %v1730
        %v2555 = vpop.f32.mrb[0].mxu0
        %v2556 = vadd.f32 %v2347, %v2555
        %v2557 = vpop.f32.mrb[0].mxu0
        %2558 = vmatprep.mubr.f32.mxu0 0.0
        %2559 = vmatmul.mubr.f32.gmra.mrb[0].mxu0 %v1731
        %v2560 = vpop.f32.mrb[0].mxu0
        %v2561 = vadd.f32 %v2352, %v2560
        %v2562 = vpop.f32.mrb[0].mxu0
        %2563 = vmatprep.mubr.f32.mxu0 0.0
        %2564 = vmatmul.mubr.f32.gmra.mrb[0].mxu0 %v1732
        %v2565 = vpop.f32.mrb[0].mxu0
        %v2566 = vadd.f32 %v2357, %v2565
        %v2567 = vpop.f32.mrb[0].mxu0
        %2568 = vmatprep.mubr.f32.mxu0 0.0
        %2569 = vmatmul.mubr.f32.gmra.mrb[0].mxu0 %v1733
        %v2570 = vpop.f32.mrb[0].mxu0
        %v2571 = vadd.f32 %v2362, %v2570
        %v2572 = vpop.f32.mrb[0].mxu0
        %2573 = vmatprep.mubr.f32.mxu0 0.0
        %2574 = vmatmul.mubr.f32.gmra.mrb[0].mxu0 %v1734
        %v2575 = vpop.f32.mrb[0].mxu0
        %v2576 = vadd.f32 %v2367, %v2575
        %v2577 = vpop.f32.mrb[0].mxu0
        %2578 = vmatprep.mubr.f32.mxu0 0.0
        %2579 = vmatmul.mubr.f32.gmra.mrb[0].mxu0 %v1735
        %v2580 = vpop.f32.mrb[0].mxu0
        %v2581 = vadd.f32 %v2372, %v2580
        %v2582 = vpop.f32.mrb[0].mxu0
        %2583 = vmatprep.mubr.f32.mxu0 0.0
        %2584 = vmatmul.mubr.f32.gmra.mrb[0].mxu0 %v1736
        %v2585 = vpop.f32.mrb[0].mxu0
        %v2586 = vadd.f32 %v2377, %v2585
        %v2587 = vpop.f32.mrb[0].mxu0
        %2588 = vmatprep.mubr.f32.mxu0 0.0
        %2589 = vmatmul.mubr.f32.gmra.mrb[0].mxu0 %v1737
        %v2590 = vpop.f32.mrb[0].mxu0
        %v2591 = vadd.f32 %v2382, %v2590
        %v2592 = vpop.f32.mrb[0].mxu0
        %2593 = vmatprep.mubr.f32.mxu0 0.0
        %2594 = vmatmul.mubr.f32.gmra.mrb[0].mxu0 %v1738
        %v2595 = vpop.f32.mrb[0].mxu0
        %v2596 = vadd.f32 %v2387, %v2595
        %v2597 = vpop.f32.mrb[0].mxu0
        %2598 = vmatprep.mubr.f32.mxu0 0.0
        %2599 = vmatmul.mubr.f32.gmra.mrb[0].mxu0 %v1739
        %v2600 = vpop.f32.mrb[0].mxu0
        %v2601 = vadd.f32 %v2392, %v2600
        %v2602 = vpop.f32.mrb[0].mxu0
        %2603 = vdwg.mxu0
        %vm2604 = vcmp.ge.s32.totalorder %v452, 16
        %vm2605 = vcmp.lt.s32.totalorder %v452, 24
        %vm2606 = vmand %vm2604, %vm2605
        %v2607 = vsel %vm2606, 1, 0
        %v2608 = vcvt.s32.f32 %v2607
        %v2609 = vmul.f32 %v1237, %v2608
        %v2610 = vmul.f32 %v1238, %v2608
        %v2611 = vmul.f32 %v1239, %v2608
        %v2612 = vmul.f32 %v1240, %v2608
        %v2613 = vmul.f32 %v1241, %v2608
        %v2614 = vmul.f32 %v1242, %v2608
        %v2615 = vmul.f32 %v1243, %v2608
        %v2616 = vmul.f32 %v1244, %v2608
        %v2617 = vmul.f32 %v1245, %v2608
        %v2618 = vmul.f32 %v1246, %v2608
        %v2619 = vmul.f32 %v1247, %v2608
        %v2620 = vmul.f32 %v1248, %v2608
        %v2621 = vmul.f32 %v1249, %v2608
        %v2622 = vmul.f32 %v1250, %v2608
        %v2623 = vmul.f32 %v1251, %v2608
        %v2624 = vmul.f32 %v1252, %v2608
        %v2626 = vsel %vm1322, %v2609, 0
        %v2629 = vsel %vm1322, %v2610, 0
        %v2632 = vsel %vm1322, %v2611, 0
        %v2635 = vsel %vm1322, %v2612, 0
        %v2638 = vsel %vm1322, %v2613, 0
        %v2641 = vsel %vm1322, %v2614, 0
        %v2644 = vsel %vm1322, %v2615, 0
        %v2647 = vsel %vm1322, %v2616, 0
        %v2650 = vsel %vm1322, %v2617, 0
        %v2653 = vsel %vm1322, %v2618, 0
        %v2656 = vsel %vm1322, %v2619, 0
        %v2659 = vsel %vm1322, %v2620, 0
        %v2662 = vsel %vm1322, %v2621, 0
        %v2665 = vsel %vm1322, %v2622, 0
        %v2668 = vsel %vm1322, %v2623, 0
        %v2671 = vsel %vm1322, %v2624, 0
        %2673 = vmatprep.subr.mxu0 0.0
        %2674 = vmatpush1.xpose.msra.mxu0 %v1371
        %2675 = vmatprep.subr.mxu0 0.0
        %2676 = vmatpush1.xpose.msra.mxu0 %v1373
        %2677 = vmatprep.subr.mxu0 0.0
        %2678 = vmatpush1.xpose.msra.mxu0 %v1375
        %2679 = vmatprep.subr.mxu0 0.0
        %2680 = vmatpush1.xpose.msra.mxu0 %v1377
        %2681 = vmatprep.subr.mxu0 0.0
        %2682 = vmatpush1.xpose.msra.mxu0 %v1379
        %2683 = vmatprep.subr.mxu0 0.0
        %2684 = vmatpush1.xpose.msra.mxu0 %v1381
        %2685 = vmatprep.subr.mxu0 0.0
        %2686 = vmatpush1.xpose.msra.mxu0 %v1383
        %2687 = vmatprep.subr.mxu0 0.0
        %2688 = vmatpush1.xpose.msra.mxu0 %v1385
        %2689 = vmatprep.subr.mxu0 0.0
        %2690 = vmatpush1.xpose.msra.mxu0 %v1387
        %2691 = vmatprep.subr.mxu0 0.0
        %2692 = vmatpush1.xpose.msra.mxu0 %v1389
        %2693 = vmatprep.subr.mxu0 0.0
        %2694 = vmatpush1.xpose.msra.mxu0 %v1391
        %2695 = vmatprep.subr.mxu0 0.0
        %2696 = vmatpush1.xpose.msra.mxu0 %v1393
        %2697 = vmatprep.subr.mxu0 0.0
        %2698 = vmatpush1.xpose.msra.mxu0 %v1395
        %2699 = vmatprep.subr.mxu0 0.0
        %2700 = vmatpush1.xpose.msra.mxu0 %v1397
        %2701 = vmatprep.subr.mxu0 0.0
        %2702 = vmatpush1.xpose.msra.mxu0 %v1399
        %2703 = vmatprep.subr.mxu0 0.0
        %2704 = vmatpush1.xpose.msra.mxu0 %v1401
        %2705 = vmatprep.subr.mxu0 0.0
        %2706 = vmatpush1.xpose.msra.mxu0 0.0
        %2707 = vmatprep.subr.mxu0 0.0
        %2708 = vmatpush1.xpose.msra.mxu0 0.0
        %2709 = vmatprep.subr.mxu0 0.0
        %2710 = vmatpush1.xpose.msra.mxu0 0.0
        %2711 = vmatprep.subr.mxu0 0.0
        %2712 = vmatpush1.xpose.msra.mxu0 0.0
        %2713 = vmatprep.subr.mxu0 0.0
        %2714 = vmatpush1.xpose.msra.mxu0 0.0
        %2715 = vmatprep.subr.mxu0 0.0
        %2716 = vmatpush1.xpose.msra.mxu0 0.0
        %2717 = vmatprep.subr.mxu0 0.0
        %2718 = vmatpush1.xpose.msra.mxu0 0.0
        %2719 = vmatprep.subr.mxu0 0.0
        %2720 = vmatpush1.xpose.msra.mxu0 0.0
        %2721 = vmatprep.subr.mxu0 0.0
        %2722 = vmatpush1.xpose.msra.mxu0 0.0
        %2723 = vmatprep.subr.mxu0 0.0
        %2724 = vmatpush1.xpose.msra.mxu0 0.0
        %2725 = vmatprep.subr.mxu0 0.0
        %2726 = vmatpush1.xpose.msra.mxu0 0.0
        %2727 = vmatprep.subr.mxu0 0.0
        %2728 = vmatpush1.xpose.msra.mxu0 0.0
        %2729 = vmatprep.subr.mxu0 0.0
        %2730 = vmatpush1.xpose.msra.mxu0 0.0
        %2731 = vmatprep.subr.mxu0 0.0
        %2732 = vmatpush1.xpose.msra.mxu0 0.0
        %2733 = vmatprep.subr.mxu0 0.0
        %2734 = vmatpush1.xpose.msra.mxu0 0.0
        %2735 = vmatprep.subr.mxu0 0.0
        %2736 = vmatpush1.xpose.msra.mxu0 0.0
        %2737 = vmatprep.mubr.f32.mxu0 0.0
        %2738 = vmatmul.mubr.f32.gmra.mrb[0].mxu0 %v2626
        %v2739 = vpop.f32.mrb[0].mxu0
        %v2740 = vadd.f32 %v1189, %v2739
        %v2741 = vpop.f32.mrb[0].mxu0
        %2742 = vmatprep.mubr.f32.mxu0 0.0
        %2743 = vmatmul.mubr.f32.gmra.mrb[0].mxu0 %v2629
        %v2744 = vpop.f32.mrb[0].mxu0
        %v2745 = vadd.f32 %v1190, %v2744
        %v2746 = vpop.f32.mrb[0].mxu0
        %2747 = vmatprep.mubr.f32.mxu0 0.0
        %2748 = vmatmul.mubr.f32.gmra.mrb[0].mxu0 %v2632
        %v2749 = vpop.f32.mrb[0].mxu0
        %v2750 = vadd.f32 %v1191, %v2749
        %v2751 = vpop.f32.mrb[0].mxu0
        %2752 = vmatprep.mubr.f32.mxu0 0.0
        %2753 = vmatmul.mubr.f32.gmra.mrb[0].mxu0 %v2635
        %v2754 = vpop.f32.mrb[0].mxu0
        %v2755 = vadd.f32 %v1192, %v2754
        %v2756 = vpop.f32.mrb[0].mxu0
        %2757 = vmatprep.mubr.f32.mxu0 0.0
        %2758 = vmatmul.mubr.f32.gmra.mrb[0].mxu0 %v2638
        %v2759 = vpop.f32.mrb[0].mxu0
        %v2760 = vadd.f32 %v1193, %v2759
        %v2761 = vpop.f32.mrb[0].mxu0
        %2762 = vmatprep.mubr.f32.mxu0 0.0
        %2763 = vmatmul.mubr.f32.gmra.mrb[0].mxu0 %v2641
        %v2764 = vpop.f32.mrb[0].mxu0
        %v2765 = vadd.f32 %v1194, %v2764
        %v2766 = vpop.f32.mrb[0].mxu0
        %2767 = vmatprep.mubr.f32.mxu0 0.0
        %2768 = vmatmul.mubr.f32.gmra.mrb[0].mxu0 %v2644
        %v2769 = vpop.f32.mrb[0].mxu0
        %v2770 = vadd.f32 %v1195, %v2769
        %v2771 = vpop.f32.mrb[0].mxu0
        %2772 = vmatprep.mubr.f32.mxu0 0.0
        %2773 = vmatmul.mubr.f32.gmra.mrb[0].mxu0 %v2647
        %v2774 = vpop.f32.mrb[0].mxu0
        %v2775 = vadd.f32 %v1196, %v2774
        %v2776 = vpop.f32.mrb[0].mxu0
        %2777 = vmatprep.mubr.f32.mxu0 0.0
        %2778 = vmatmul.mubr.f32.gmra.mrb[0].mxu0 %v2650
        %v2779 = vpop.f32.mrb[0].mxu0
        %v2780 = vadd.f32 %v1197, %v2779
        %v2781 = vpop.f32.mrb[0].mxu0
        %2782 = vmatprep.mubr.f32.mxu0 0.0
        %2783 = vmatmul.mubr.f32.gmra.mrb[0].mxu0 %v2653
        %v2784 = vpop.f32.mrb[0].mxu0
        %v2785 = vadd.f32 %v1198, %v2784
        %v2786 = vpop.f32.mrb[0].mxu0
        %2787 = vmatprep.mubr.f32.mxu0 0.0
        %2788 = vmatmul.mubr.f32.gmra.mrb[0].mxu0 %v2656
        %v2789 = vpop.f32.mrb[0].mxu0
        %v2790 = vadd.f32 %v1199, %v2789
        %v2791 = vpop.f32.mrb[0].mxu0
        %2792 = vmatprep.mubr.f32.mxu0 0.0
        %2793 = vmatmul.mubr.f32.gmra.mrb[0].mxu0 %v2659
        %v2794 = vpop.f32.mrb[0].mxu0
        %v2795 = vadd.f32 %v1200, %v2794
        %v2796 = vpop.f32.mrb[0].mxu0
        %2797 = vmatprep.mubr.f32.mxu0 0.0
        %2798 = vmatmul.mubr.f32.gmra.mrb[0].mxu0 %v2662
        %v2799 = vpop.f32.mrb[0].mxu0
        %v2800 = vadd.f32 %v1201, %v2799
        %v2801 = vpop.f32.mrb[0].mxu0
        %2802 = vmatprep.mubr.f32.mxu0 0.0
        %2803 = vmatmul.mubr.f32.gmra.mrb[0].mxu0 %v2665
        %v2804 = vpop.f32.mrb[0].mxu0
        %v2805 = vadd.f32 %v1202, %v2804
        %v2806 = vpop.f32.mrb[0].mxu0
        %2807 = vmatprep.mubr.f32.mxu0 0.0
        %2808 = vmatmul.mubr.f32.gmra.mrb[0].mxu0 %v2668
        %v2809 = vpop.f32.mrb[0].mxu0
        %v2810 = vadd.f32 %v1203, %v2809
        %v2811 = vpop.f32.mrb[0].mxu0
        %2812 = vmatprep.mubr.f32.mxu0 0.0
        %2813 = vmatmul.mubr.f32.gmra.mrb[0].mxu0 %v2671
        %v2814 = vpop.f32.mrb[0].mxu0
        %v2815 = vadd.f32 %v1204, %v2814
        %v2816 = vpop.f32.mrb[0].mxu0
        %2817 = vdwg.mxu0
        %2818 = vmax.xlane.f32.xlu0 %v2740
        %v2819 = vpop.xlane.xlu0 %2818
        %2820 = vmax.xlane.f32.xlu0 %v2745
        %v2821 = vpop.xlane.xlu0 %2820
        %2822 = vmax.xlane.f32.xlu0 %v2750
        %v2823 = vpop.xlane.xlu0 %2822
        %2824 = vmax.xlane.f32.xlu0 %v2755
        %v2825 = vpop.xlane.xlu0 %2824
        %2826 = vmax.xlane.f32.xlu0 %v2760
        %v2827 = vpop.xlane.xlu0 %2826
        %2828 = vmax.xlane.f32.xlu0 %v2765
        %v2829 = vpop.xlane.xlu0 %2828
        %2830 = vmax.xlane.f32.xlu0 %v2770
        %v2831 = vpop.xlane.xlu0 %2830
        %2832 = vmax.xlane.f32.xlu0 %v2775
        %v2833 = vpop.xlane.xlu0 %2832
        %2834 = vmax.xlane.f32.xlu0 %v2780
        %v2835 = vpop.xlane.xlu0 %2834
        %2836 = vmax.xlane.f32.xlu0 %v2785
        %v2837 = vpop.xlane.xlu0 %2836
        %2838 = vmax.xlane.f32.xlu0 %v2790
        %v2839 = vpop.xlane.xlu0 %2838
        %2840 = vmax.xlane.f32.xlu0 %v2795
        %v2841 = vpop.xlane.xlu0 %2840
        %2842 = vmax.xlane.f32.xlu0 %v2800
        %v2843 = vpop.xlane.xlu0 %2842
        %2844 = vmax.xlane.f32.xlu0 %v2805
        %v2845 = vpop.xlane.xlu0 %2844
        %2846 = vmax.xlane.f32.xlu0 %v2810
        %v2847 = vpop.xlane.xlu0 %2846
        %2848 = vmax.xlane.f32.xlu0 %v2815
        %v2849 = vpop.xlane.xlu0 %2848
        %v2850 = vmax.f32 %v2819, 0.0
        %v2851 = vmax.f32 %v2821, 0.0
        %v2852 = vmax.f32 %v2823, 0.0
        %v2853 = vmax.f32 %v2825, 0.0
        %v2854 = vmax.f32 %v2827, 0.0
        %v2855 = vmax.f32 %v2829, 0.0
        %v2856 = vmax.f32 %v2831, 0.0
        %v2857 = vmax.f32 %v2833, 0.0
        %v2858 = vmax.f32 %v2835, 0.0
        %v2859 = vmax.f32 %v2837, 0.0
        %v2860 = vmax.f32 %v2839, 0.0
        %v2861 = vmax.f32 %v2841, 0.0
        %v2862 = vmax.f32 %v2843, 0.0
        %v2863 = vmax.f32 %v2845, 0.0
        %v2864 = vmax.f32 %v2847, 0.0
        %v2865 = vmax.f32 %v2849, 0.0
        %v2866 = vsub.f32 %v2740, %v2850
        %v2867 = vsub.f32 %v2745, %v2851
        %v2868 = vsub.f32 %v2750, %v2852
        %v2869 = vsub.f32 %v2755, %v2853
        %v2870 = vsub.f32 %v2760, %v2854
        %v2871 = vsub.f32 %v2765, %v2855
        %v2872 = vsub.f32 %v2770, %v2856
        %v2873 = vsub.f32 %v2775, %v2857
        %v2874 = vsub.f32 %v2780, %v2858
        %v2875 = vsub.f32 %v2785, %v2859
        %v2876 = vsub.f32 %v2790, %v2860
        %v2877 = vsub.f32 %v2795, %v2861
        %v2878 = vsub.f32 %v2800, %v2862
        %v2879 = vsub.f32 %v2805, %v2863
        %v2880 = vsub.f32 %v2810, %v2864
        %v2881 = vsub.f32 %v2815, %v2865
        %v2882 = vmul.f32 %v2866, 1.442695
        %v2883 = vpow.pop %v2882
        %v2884 = vmul.f32 %v2867, 1.442695
        %v2885 = vpow.pop %v2884
        %v2886 = vmul.f32 %v2868, 1.442695
        %v2887 = vpow.pop %v2886
        %v2888 = vmul.f32 %v2869, 1.442695
        %v2889 = vpow.pop %v2888
        %v2890 = vmul.f32 %v2870, 1.442695
        %v2891 = vpow.pop %v2890
        %v2892 = vmul.f32 %v2871, 1.442695
        %v2893 = vpow.pop %v2892
        %v2894 = vmul.f32 %v2872, 1.442695
        %v2895 = vpow.pop %v2894
        %v2896 = vmul.f32 %v2873, 1.442695
        %v2897 = vpow.pop %v2896
        %v2898 = vmul.f32 %v2874, 1.442695
        %v2899 = vpow.pop %v2898
        %v2900 = vmul.f32 %v2875, 1.442695
        %v2901 = vpow.pop %v2900
        %v2902 = vmul.f32 %v2876, 1.442695
        %v2903 = vpow.pop %v2902
        %v2904 = vmul.f32 %v2877, 1.442695
        %v2905 = vpow.pop %v2904
        %v2906 = vmul.f32 %v2878, 1.442695
        %v2907 = vpow.pop %v2906
        %v2908 = vmul.f32 %v2879, 1.442695
        %v2909 = vpow.pop %v2908
        %v2910 = vmul.f32 %v2880, 1.442695
        %v2911 = vpow.pop %v2910
        %v2912 = vmul.f32 %v2881, 1.442695
        %v2913 = vpow.pop %v2912
        %2914 = vadd.xlane.f32.xlu0 %v2883
        %v2915 = vpop.xlane.xlu0 %2914
        %2916 = vadd.xlane.f32.xlu0 %v2885
        %v2917 = vpop.xlane.xlu0 %2916
        %2918 = vadd.xlane.f32.xlu0 %v2887
        %v2919 = vpop.xlane.xlu0 %2918
        %2920 = vadd.xlane.f32.xlu0 %v2889
        %v2921 = vpop.xlane.xlu0 %2920
        %2922 = vadd.xlane.f32.xlu0 %v2891
        %v2923 = vpop.xlane.xlu0 %2922
        %2924 = vadd.xlane.f32.xlu0 %v2893
        %v2925 = vpop.xlane.xlu0 %2924
        %2926 = vadd.xlane.f32.xlu0 %v2895
        %v2927 = vpop.xlane.xlu0 %2926
        %2928 = vadd.xlane.f32.xlu0 %v2897
        %v2929 = vpop.xlane.xlu0 %2928
        %2930 = vadd.xlane.f32.xlu0 %v2899
        %v2931 = vpop.xlane.xlu0 %2930
        %2932 = vadd.xlane.f32.xlu0 %v2901
        %v2933 = vpop.xlane.xlu0 %2932
        %2934 = vadd.xlane.f32.xlu0 %v2903
        %v2935 = vpop.xlane.xlu0 %2934
        %2936 = vadd.xlane.f32.xlu0 %v2905
        %v2937 = vpop.xlane.xlu0 %2936
        %2938 = vadd.xlane.f32.xlu0 %v2907
        %v2939 = vpop.xlane.xlu0 %2938
        %2940 = vadd.xlane.f32.xlu0 %v2909
        %v2941 = vpop.xlane.xlu0 %2940
        %2942 = vadd.xlane.f32.xlu0 %v2911
        %v2943 = vpop.xlane.xlu0 %2942
        %2944 = vadd.xlane.f32.xlu0 %v2913
        %v2945 = vpop.xlane.xlu0 %2944
        %v2946 = vadd.f32 %v2915, 1e-15
        %v2947 = vadd.f32 %v2917, 1e-15
        %v2948 = vadd.f32 %v2919, 1e-15
        %v2949 = vadd.f32 %v2921, 1e-15
        %v2950 = vadd.f32 %v2923, 1e-15
        %v2951 = vadd.f32 %v2925, 1e-15
        %v2952 = vadd.f32 %v2927, 1e-15
        %v2953 = vadd.f32 %v2929, 1e-15
        %v2954 = vadd.f32 %v2931, 1e-15
        %v2955 = vadd.f32 %v2933, 1e-15
        %v2956 = vadd.f32 %v2935, 1e-15
        %v2957 = vadd.f32 %v2937, 1e-15
        %v2958 = vadd.f32 %v2939, 1e-15
        %v2959 = vadd.f32 %v2941, 1e-15
        %v2960 = vadd.f32 %v2943, 1e-15
        %v2961 = vadd.f32 %v2945, 1e-15
        %v2962 = vrcp.pop %v2946
        %v2963 = vmul.f32 1.0, %v2962
        %v2964 = vrcp.pop %v2947
        %v2965 = vmul.f32 1.0, %v2964
        %v2966 = vrcp.pop %v2948
        %v2967 = vmul.f32 1.0, %v2966
        %v2968 = vrcp.pop %v2949
        %v2969 = vmul.f32 1.0, %v2968
        %v2970 = vrcp.pop %v2950
        %v2971 = vmul.f32 1.0, %v2970
        %v2972 = vrcp.pop %v2951
        %v2973 = vmul.f32 1.0, %v2972
        %v2974 = vrcp.pop %v2952
        %v2975 = vmul.f32 1.0, %v2974
        %v2976 = vrcp.pop %v2953
        %v2977 = vmul.f32 1.0, %v2976
        %v2978 = vrcp.pop %v2954
        %v2979 = vmul.f32 1.0, %v2978
        %v2980 = vrcp.pop %v2955
        %v2981 = vmul.f32 1.0, %v2980
        %v2982 = vrcp.pop %v2956
        %v2983 = vmul.f32 1.0, %v2982
        %v2984 = vrcp.pop %v2957
        %v2985 = vmul.f32 1.0, %v2984
        %v2986 = vrcp.pop %v2958
        %v2987 = vmul.f32 1.0, %v2986
        %v2988 = vrcp.pop %v2959
        %v2989 = vmul.f32 1.0, %v2988
        %v2990 = vrcp.pop %v2960
        %v2991 = vmul.f32 1.0, %v2990
        %v2992 = vrcp.pop %v2961
        %v2993 = vmul.f32 1.0, %v2992
        %v2994 = vmul.f32 %v2883, %v2963
        %v2995 = vmul.f32 %v2885, %v2965
        %v2996 = vmul.f32 %v2887, %v2967
        %v2997 = vmul.f32 %v2889, %v2969
        %v2998 = vmul.f32 %v2891, %v2971
        %v2999 = vmul.f32 %v2893, %v2973
        %v3000 = vmul.f32 %v2895, %v2975
        %v3001 = vmul.f32 %v2897, %v2977
        %v3002 = vmul.f32 %v2899, %v2979
        %v3003 = vmul.f32 %v2901, %v2981
        %v3004 = vmul.f32 %v2903, %v2983
        %v3005 = vmul.f32 %v2905, %v2985
        %v3006 = vmul.f32 %v2907, %v2987
        %v3007 = vmul.f32 %v2909, %v2989
        %v3008 = vmul.f32 %v2911, %v2991
        %v3009 = vmul.f32 %v2913, %v2993
        %3011 = vrot.lane.b32.xlu0 %v2608, 64
        %v3012 = vpop.permute.xlu0 %3011
        %v3014 = vmul.f32 %v356, %v3012
        %v3015 = vmul.f32 %v361, %v3012
        %v3016 = vmul.f32 %v366, %v3012
        %v3017 = vmul.f32 %v371, %v3012
        %v3018 = vmul.f32 %v376, %v3012
        %v3019 = vmul.f32 %v381, %v3012
        %v3020 = vmul.f32 %v386, %v3012
        %v3021 = vmul.f32 %v391, %v3012
        %v3022 = vmul.f32 %v396, %v3012
        %v3023 = vmul.f32 %v401, %v3012
        %v3024 = vmul.f32 %v406, %v3012
        %v3025 = vmul.f32 %v411, %v3012
        %v3026 = vmul.f32 %v416, %v3012
        %v3027 = vmul.f32 %v421, %v3012
        %v3028 = vmul.f32 %v426, %v3012
        %v3029 = vmul.f32 %v431, %v3012
        %3046 = vrot.lane.b32.xlu0 %v3014, 64
        %v3047 = vpop.permute.xlu0 %3046
        %3048 = vrot.lane.b32.xlu0 %v3015, 64
        %v3049 = vpop.permute.xlu0 %3048
        %3050 = vrot.lane.b32.xlu0 %v3016, 64
        %v3051 = vpop.permute.xlu0 %3050
        %3052 = vrot.lane.b32.xlu0 %v3017, 64
        %v3053 = vpop.permute.xlu0 %3052
        %3054 = vrot.lane.b32.xlu0 %v3018, 64
        %v3055 = vpop.permute.xlu0 %3054
        %3056 = vrot.lane.b32.xlu0 %v3019, 64
        %v3057 = vpop.permute.xlu0 %3056
        %3058 = vrot.lane.b32.xlu0 %v3020, 64
        %v3059 = vpop.permute.xlu0 %3058
        %3060 = vrot.lane.b32.xlu0 %v3021, 64
        %v3061 = vpop.permute.xlu0 %3060
        %3062 = vrot.lane.b32.xlu0 %v3022, 64
        %v3063 = vpop.permute.xlu0 %3062
        %3064 = vrot.lane.b32.xlu0 %v3023, 64
        %v3065 = vpop.permute.xlu0 %3064
        %3066 = vrot.lane.b32.xlu0 %v3024, 64
        %v3067 = vpop.permute.xlu0 %3066
        %3068 = vrot.lane.b32.xlu0 %v3025, 64
        %v3069 = vpop.permute.xlu0 %3068
        %3070 = vrot.lane.b32.xlu0 %v3026, 64
        %v3071 = vpop.permute.xlu0 %3070
        %3072 = vrot.lane.b32.xlu0 %v3027, 64
        %v3073 = vpop.permute.xlu0 %3072
        %3074 = vrot.lane.b32.xlu0 %v3028, 64
        %v3075 = vpop.permute.xlu0 %3074
        %3076 = vrot.lane.b32.xlu0 %v3029, 64
        %v3077 = vpop.permute.xlu0 %3076
        %3094 = vmatprep.subr.mxu0 0.0
        %3095 = vmatpush1.msra.mxu0 %v3047
        %3096 = vmatprep.subr.mxu0 0.0
        %3097 = vmatpush1.msra.mxu0 %v3049
        %3098 = vmatprep.subr.mxu0 0.0
        %3099 = vmatpush1.msra.mxu0 %v3051
        %3100 = vmatprep.subr.mxu0 0.0
        %3101 = vmatpush1.msra.mxu0 %v3053
        %3102 = vmatprep.subr.mxu0 0.0
        %3103 = vmatpush1.msra.mxu0 %v3055
        %3104 = vmatprep.subr.mxu0 0.0
        %3105 = vmatpush1.msra.mxu0 %v3057
        %3106 = vmatprep.subr.mxu0 0.0
        %3107 = vmatpush1.msra.mxu0 %v3059
        %3108 = vmatprep.subr.mxu0 0.0
        %3109 = vmatpush1.msra.mxu0 %v3061
        %3110 = vmatprep.subr.mxu0 0.0
        %3111 = vmatpush1.msra.mxu0 %v3063
        %3112 = vmatprep.subr.mxu0 0.0
        %3113 = vmatpush1.msra.mxu0 %v3065
        %3114 = vmatprep.subr.mxu0 0.0
        %3115 = vmatpush1.msra.mxu0 %v3067
        %3116 = vmatprep.subr.mxu0 0.0
        %3117 = vmatpush1.msra.mxu0 %v3069
        %3118 = vmatprep.subr.mxu0 0.0
        %3119 = vmatpush1.msra.mxu0 %v3071
        %3120 = vmatprep.subr.mxu0 0.0
        %3121 = vmatpush1.msra.mxu0 %v3073
        %3122 = vmatprep.subr.mxu0 0.0
        %3123 = vmatpush1.msra.mxu0 %v3075
        %3124 = vmatprep.subr.mxu0 0.0
        %3125 = vmatpush1.msra.mxu0 %v3077
        %3126 = vmatprep.subr.mxu0 0.0
        %3127 = vmatpush1.msra.mxu0 0.0
        %3128 = vmatprep.subr.mxu0 0.0
        %3129 = vmatpush1.msra.mxu0 0.0
        %3130 = vmatprep.subr.mxu0 0.0
        %3131 = vmatpush1.msra.mxu0 0.0
        %3132 = vmatprep.subr.mxu0 0.0
        %3133 = vmatpush1.msra.mxu0 0.0
        %3134 = vmatprep.subr.mxu0 0.0
        %3135 = vmatpush1.msra.mxu0 0.0
        %3136 = vmatprep.subr.mxu0 0.0
        %3137 = vmatpush1.msra.mxu0 0.0
        %3138 = vmatprep.subr.mxu0 0.0
        %3139 = vmatpush1.msra.mxu0 0.0
        %3140 = vmatprep.subr.mxu0 0.0
        %3141 = vmatpush1.msra.mxu0 0.0
        %3142 = vmatprep.subr.mxu0 0.0
        %3143 = vmatpush1.msra.mxu0 0.0
        %3144 = vmatprep.subr.mxu0 0.0
        %3145 = vmatpush1.msra.mxu0 0.0
        %3146 = vmatprep.subr.mxu0 0.0
        %3147 = vmatpush1.msra.mxu0 0.0
        %3148 = vmatprep.subr.mxu0 0.0
        %3149 = vmatpush1.msra.mxu0 0.0
        %3150 = vmatprep.subr.mxu0 0.0
        %3151 = vmatpush1.msra.mxu0 0.0
        %3152 = vmatprep.subr.mxu0 0.0
        %3153 = vmatpush1.msra.mxu0 0.0
        %3154 = vmatprep.subr.mxu0 0.0
        %3155 = vmatpush1.msra.mxu0 0.0
        %3156 = vmatprep.subr.mxu0 0.0
        %3157 = vmatpush1.msra.mxu0 0.0
        %3158 = vmatprep.mubr.f32.mxu0 0.0
        %3159 = vmatmul.mubr.f32.gmra.mrb[0].mxu0 %v2994
        %v3160 = vpop.f32.mrb[0].mxu0
        %v3161 = vadd.f32 0.0, %v3160
        %v3162 = vpop.f32.mrb[0].mxu0
        %3163 = vmatprep.mubr.f32.mxu0 0.0
        %3164 = vmatmul.mubr.f32.gmra.mrb[0].mxu0 %v2995
        %v3165 = vpop.f32.mrb[0].mxu0
        %v3166 = vadd.f32 0.0, %v3165
        %v3167 = vpop.f32.mrb[0].mxu0
        %3168 = vmatprep.mubr.f32.mxu0 0.0
        %3169 = vmatmul.mubr.f32.gmra.mrb[0].mxu0 %v2996
        %v3170 = vpop.f32.mrb[0].mxu0
        %v3171 = vadd.f32 0.0, %v3170
        %v3172 = vpop.f32.mrb[0].mxu0
        %3173 = vmatprep.mubr.f32.mxu0 0.0
        %3174 = vmatmul.mubr.f32.gmra.mrb[0].mxu0 %v2997
        %v3175 = vpop.f32.mrb[0].mxu0
        %v3176 = vadd.f32 0.0, %v3175
        %v3177 = vpop.f32.mrb[0].mxu0
        %3178 = vmatprep.mubr.f32.mxu0 0.0
        %3179 = vmatmul.mubr.f32.gmra.mrb[0].mxu0 %v2998
        %v3180 = vpop.f32.mrb[0].mxu0
        %v3181 = vadd.f32 0.0, %v3180
        %v3182 = vpop.f32.mrb[0].mxu0
        %3183 = vmatprep.mubr.f32.mxu0 0.0
        %3184 = vmatmul.mubr.f32.gmra.mrb[0].mxu0 %v2999
        %v3185 = vpop.f32.mrb[0].mxu0
        %v3186 = vadd.f32 0.0, %v3185
        %v3187 = vpop.f32.mrb[0].mxu0
        %3188 = vmatprep.mubr.f32.mxu0 0.0
        %3189 = vmatmul.mubr.f32.gmra.mrb[0].mxu0 %v3000
        %v3190 = vpop.f32.mrb[0].mxu0
        %v3191 = vadd.f32 0.0, %v3190
        %v3192 = vpop.f32.mrb[0].mxu0
        %3193 = vmatprep.mubr.f32.mxu0 0.0
        %3194 = vmatmul.mubr.f32.gmra.mrb[0].mxu0 %v3001
        %v3195 = vpop.f32.mrb[0].mxu0
        %v3196 = vadd.f32 0.0, %v3195
        %v3197 = vpop.f32.mrb[0].mxu0
        %3198 = vmatprep.mubr.f32.mxu0 0.0
        %3199 = vmatmul.mubr.f32.gmra.mrb[0].mxu0 %v3002
        %v3200 = vpop.f32.mrb[0].mxu0
        %v3201 = vadd.f32 0.0, %v3200
        %v3202 = vpop.f32.mrb[0].mxu0
        %3203 = vmatprep.mubr.f32.mxu0 0.0
        %3204 = vmatmul.mubr.f32.gmra.mrb[0].mxu0 %v3003
        %v3205 = vpop.f32.mrb[0].mxu0
        %v3206 = vadd.f32 0.0, %v3205
        %v3207 = vpop.f32.mrb[0].mxu0
        %3208 = vmatprep.mubr.f32.mxu0 0.0
        %3209 = vmatmul.mubr.f32.gmra.mrb[0].mxu0 %v3004
        %v3210 = vpop.f32.mrb[0].mxu0
        %v3211 = vadd.f32 0.0, %v3210
        %v3212 = vpop.f32.mrb[0].mxu0
        %3213 = vmatprep.mubr.f32.mxu0 0.0
        %3214 = vmatmul.mubr.f32.gmra.mrb[0].mxu0 %v3005
        %v3215 = vpop.f32.mrb[0].mxu0
        %v3216 = vadd.f32 0.0, %v3215
        %v3217 = vpop.f32.mrb[0].mxu0
        %3218 = vmatprep.mubr.f32.mxu0 0.0
        %3219 = vmatmul.mubr.f32.gmra.mrb[0].mxu0 %v3006
        %v3220 = vpop.f32.mrb[0].mxu0
        %v3221 = vadd.f32 0.0, %v3220
        %v3222 = vpop.f32.mrb[0].mxu0
        %3223 = vmatprep.mubr.f32.mxu0 0.0
        %3224 = vmatmul.mubr.f32.gmra.mrb[0].mxu0 %v3007
        %v3225 = vpop.f32.mrb[0].mxu0
        %v3226 = vadd.f32 0.0, %v3225
        %v3227 = vpop.f32.mrb[0].mxu0
        %3228 = vmatprep.mubr.f32.mxu0 0.0
        %3229 = vmatmul.mubr.f32.gmra.mrb[0].mxu0 %v3008
        %v3230 = vpop.f32.mrb[0].mxu0
        %v3231 = vadd.f32 0.0, %v3230
        %v3232 = vpop.f32.mrb[0].mxu0
        %3233 = vmatprep.mubr.f32.mxu0 0.0
        %3234 = vmatmul.mubr.f32.gmra.mrb[0].mxu0 %v3009
        %v3235 = vpop.f32.mrb[0].mxu0
        %v3236 = vadd.f32 0.0, %v3235
        %v3237 = vpop.f32.mrb[0].mxu0
        %3238 = vdwg.mxu0
        %v3239 = vadd.f32 %v2526, %v3161
        %v3240 = vadd.f32 %v2531, %v3166
        %v3241 = vadd.f32 %v2536, %v3171
        %v3242 = vadd.f32 %v2541, %v3176
        %v3243 = vadd.f32 %v2546, %v3181
        %v3244 = vadd.f32 %v2551, %v3186
        %v3245 = vadd.f32 %v2556, %v3191
        %v3246 = vadd.f32 %v2561, %v3196
        %v3247 = vadd.f32 %v2566, %v3201
        %v3248 = vadd.f32 %v2571, %v3206
        %v3249 = vadd.f32 %v2576, %v3211
        %v3250 = vadd.f32 %v2581, %v3216
        %v3251 = vadd.f32 %v2586, %v3221
        %v3252 = vadd.f32 %v2591, %v3226
        %v3253 = vadd.f32 %v2596, %v3231
        %v3254 = vadd.f32 %v2601, %v3236
        %vm3255 = vcmp.ge.s32.totalorder %v452, 24
        %vm3256 = vcmp.lt.s32.totalorder %v452, 32
        %vm3257 = vmand %vm3255, %vm3256
        %v3258 = vsel %vm3257, 1, 0
        %v3259 = vcvt.s32.f32 %v3258
        %v3260 = vmul.f32 %v1237, %v3259
        %v3261 = vmul.f32 %v1238, %v3259
        %v3262 = vmul.f32 %v1239, %v3259
        %v3263 = vmul.f32 %v1240, %v3259
        %v3264 = vmul.f32 %v1241, %v3259
        %v3265 = vmul.f32 %v1242, %v3259
        %v3266 = vmul.f32 %v1243, %v3259
        %v3267 = vmul.f32 %v1244, %v3259
        %v3268 = vmul.f32 %v1245, %v3259
        %v3269 = vmul.f32 %v1246, %v3259
        %v3270 = vmul.f32 %v1247, %v3259
        %v3271 = vmul.f32 %v1248, %v3259
        %v3272 = vmul.f32 %v1249, %v3259
        %v3273 = vmul.f32 %v1250, %v3259
        %v3274 = vmul.f32 %v1251, %v3259
        %v3275 = vmul.f32 %v1252, %v3259
        %v3277 = vsel %vm1322, %v3260, 0
        %v3280 = vsel %vm1322, %v3261, 0
        %v3283 = vsel %vm1322, %v3262, 0
        %v3286 = vsel %vm1322, %v3263, 0
        %v3289 = vsel %vm1322, %v3264, 0
        %v3292 = vsel %vm1322, %v3265, 0
        %v3295 = vsel %vm1322, %v3266, 0
        %v3298 = vsel %vm1322, %v3267, 0
        %v3301 = vsel %vm1322, %v3268, 0
        %v3304 = vsel %vm1322, %v3269, 0
        %v3307 = vsel %vm1322, %v3270, 0
        %v3310 = vsel %vm1322, %v3271, 0
        %v3313 = vsel %vm1322, %v3272, 0
        %v3316 = vsel %vm1322, %v3273, 0
        %v3319 = vsel %vm1322, %v3274, 0
        %v3322 = vsel %vm1322, %v3275, 0
        %3324 = vmatprep.subr.mxu0 0.0
        %3325 = vmatpush1.xpose.msra.mxu0 %v1371
        %3326 = vmatprep.subr.mxu0 0.0
        %3327 = vmatpush1.xpose.msra.mxu0 %v1373
        %3328 = vmatprep.subr.mxu0 0.0
        %3329 = vmatpush1.xpose.msra.mxu0 %v1375
        %3330 = vmatprep.subr.mxu0 0.0
        %3331 = vmatpush1.xpose.msra.mxu0 %v1377
        %3332 = vmatprep.subr.mxu0 0.0
        %3333 = vmatpush1.xpose.msra.mxu0 %v1379
        %3334 = vmatprep.subr.mxu0 0.0
        %3335 = vmatpush1.xpose.msra.mxu0 %v1381
        %3336 = vmatprep.subr.mxu0 0.0
        %3337 = vmatpush1.xpose.msra.mxu0 %v1383
        %3338 = vmatprep.subr.mxu0 0.0
        %3339 = vmatpush1.xpose.msra.mxu0 %v1385
        %3340 = vmatprep.subr.mxu0 0.0
        %3341 = vmatpush1.xpose.msra.mxu0 %v1387
        %3342 = vmatprep.subr.mxu0 0.0
        %3343 = vmatpush1.xpose.msra.mxu0 %v1389
        %3344 = vmatprep.subr.mxu0 0.0
        %3345 = vmatpush1.xpose.msra.mxu0 %v1391
        %3346 = vmatprep.subr.mxu0 0.0
        %3347 = vmatpush1.xpose.msra.mxu0 %v1393
        %3348 = vmatprep.subr.mxu0 0.0
        %3349 = vmatpush1.xpose.msra.mxu0 %v1395
        %3350 = vmatprep.subr.mxu0 0.0
        %3351 = vmatpush1.xpose.msra.mxu0 %v1397
        %3352 = vmatprep.subr.mxu0 0.0
        %3353 = vmatpush1.xpose.msra.mxu0 %v1399
        %3354 = vmatprep.subr.mxu0 0.0
        %3355 = vmatpush1.xpose.msra.mxu0 %v1401
        %3356 = vmatprep.subr.mxu0 0.0
        %3357 = vmatpush1.xpose.msra.mxu0 0.0
        %3358 = vmatprep.subr.mxu0 0.0
        %3359 = vmatpush1.xpose.msra.mxu0 0.0
        %3360 = vmatprep.subr.mxu0 0.0
        %3361 = vmatpush1.xpose.msra.mxu0 0.0
        %3362 = vmatprep.subr.mxu0 0.0
        %3363 = vmatpush1.xpose.msra.mxu0 0.0
        %3364 = vmatprep.subr.mxu0 0.0
        %3365 = vmatpush1.xpose.msra.mxu0 0.0
        %3366 = vmatprep.subr.mxu0 0.0
        %3367 = vmatpush1.xpose.msra.mxu0 0.0
        %3368 = vmatprep.subr.mxu0 0.0
        %3369 = vmatpush1.xpose.msra.mxu0 0.0
        %3370 = vmatprep.subr.mxu0 0.0
        %3371 = vmatpush1.xpose.msra.mxu0 0.0
        %3372 = vmatprep.subr.mxu0 0.0
        %3373 = vmatpush1.xpose.msra.mxu0 0.0
        %3374 = vmatprep.subr.mxu0 0.0
        %3375 = vmatpush1.xpose.msra.mxu0 0.0
        %3376 = vmatprep.subr.mxu0 0.0
        %3377 = vmatpush1.xpose.msra.mxu0 0.0
        %3378 = vmatprep.subr.mxu0 0.0
        %3379 = vmatpush1.xpose.msra.mxu0 0.0
        %3380 = vmatprep.subr.mxu0 0.0
        %3381 = vmatpush1.xpose.msra.mxu0 0.0
        %3382 = vmatprep.subr.mxu0 0.0
        %3383 = vmatpush1.xpose.msra.mxu0 0.0
        %3384 = vmatprep.subr.mxu0 0.0
        %3385 = vmatpush1.xpose.msra.mxu0 0.0
        %3386 = vmatprep.subr.mxu0 0.0
        %3387 = vmatpush1.xpose.msra.mxu0 0.0
        %3388 = vmatprep.mubr.f32.mxu0 0.0
        %3389 = vmatmul.mubr.f32.gmra.mrb[0].mxu0 %v3277
        %v3390 = vpop.f32.mrb[0].mxu0
        %v3391 = vadd.f32 %v1189, %v3390
        %v3392 = vpop.f32.mrb[0].mxu0
        %3393 = vmatprep.mubr.f32.mxu0 0.0
        %3394 = vmatmul.mubr.f32.gmra.mrb[0].mxu0 %v3280
        %v3395 = vpop.f32.mrb[0].mxu0
        %v3396 = vadd.f32 %v1190, %v3395
        %v3397 = vpop.f32.mrb[0].mxu0
        %3398 = vmatprep.mubr.f32.mxu0 0.0
        %3399 = vmatmul.mubr.f32.gmra.mrb[0].mxu0 %v3283
        %v3400 = vpop.f32.mrb[0].mxu0
        %v3401 = vadd.f32 %v1191, %v3400
        %v3402 = vpop.f32.mrb[0].mxu0
        %3403 = vmatprep.mubr.f32.mxu0 0.0
        %3404 = vmatmul.mubr.f32.gmra.mrb[0].mxu0 %v3286
        %v3405 = vpop.f32.mrb[0].mxu0
        %v3406 = vadd.f32 %v1192, %v3405
        %v3407 = vpop.f32.mrb[0].mxu0
        %3408 = vmatprep.mubr.f32.mxu0 0.0
        %3409 = vmatmul.mubr.f32.gmra.mrb[0].mxu0 %v3289
        %v3410 = vpop.f32.mrb[0].mxu0
        %v3411 = vadd.f32 %v1193, %v3410
        %v3412 = vpop.f32.mrb[0].mxu0
        %3413 = vmatprep.mubr.f32.mxu0 0.0
        %3414 = vmatmul.mubr.f32.gmra.mrb[0].mxu0 %v3292
        %v3415 = vpop.f32.mrb[0].mxu0
        %v3416 = vadd.f32 %v1194, %v3415
        %v3417 = vpop.f32.mrb[0].mxu0
        %3418 = vmatprep.mubr.f32.mxu0 0.0
        %3419 = vmatmul.mubr.f32.gmra.mrb[0].mxu0 %v3295
        %v3420 = vpop.f32.mrb[0].mxu0
        %v3421 = vadd.f32 %v1195, %v3420
        %v3422 = vpop.f32.mrb[0].mxu0
        %3423 = vmatprep.mubr.f32.mxu0 0.0
        %3424 = vmatmul.mubr.f32.gmra.mrb[0].mxu0 %v3298
        %v3425 = vpop.f32.mrb[0].mxu0
        %v3426 = vadd.f32 %v1196, %v3425
        %v3427 = vpop.f32.mrb[0].mxu0
        %3428 = vmatprep.mubr.f32.mxu0 0.0
        %3429 = vmatmul.mubr.f32.gmra.mrb[0].mxu0 %v3301
        %v3430 = vpop.f32.mrb[0].mxu0
        %v3431 = vadd.f32 %v1197, %v3430
        %v3432 = vpop.f32.mrb[0].mxu0
        %3433 = vmatprep.mubr.f32.mxu0 0.0
        %3434 = vmatmul.mubr.f32.gmra.mrb[0].mxu0 %v3304
        %v3435 = vpop.f32.mrb[0].mxu0
        %v3436 = vadd.f32 %v1198, %v3435
        %v3437 = vpop.f32.mrb[0].mxu0
        %3438 = vmatprep.mubr.f32.mxu0 0.0
        %3439 = vmatmul.mubr.f32.gmra.mrb[0].mxu0 %v3307
        %v3440 = vpop.f32.mrb[0].mxu0
        %v3441 = vadd.f32 %v1199, %v3440
        %v3442 = vpop.f32.mrb[0].mxu0
        %3443 = vmatprep.mubr.f32.mxu0 0.0
        %3444 = vmatmul.mubr.f32.gmra.mrb[0].mxu0 %v3310
        %v3445 = vpop.f32.mrb[0].mxu0
        %v3446 = vadd.f32 %v1200, %v3445
        %v3447 = vpop.f32.mrb[0].mxu0
        %3448 = vmatprep.mubr.f32.mxu0 0.0
        %3449 = vmatmul.mubr.f32.gmra.mrb[0].mxu0 %v3313
        %v3450 = vpop.f32.mrb[0].mxu0
        %v3451 = vadd.f32 %v1201, %v3450
        %v3452 = vpop.f32.mrb[0].mxu0
        %3453 = vmatprep.mubr.f32.mxu0 0.0
        %3454 = vmatmul.mubr.f32.gmra.mrb[0].mxu0 %v3316
        %v3455 = vpop.f32.mrb[0].mxu0
        %v3456 = vadd.f32 %v1202, %v3455
        %v3457 = vpop.f32.mrb[0].mxu0
        %3458 = vmatprep.mubr.f32.mxu0 0.0
        %3459 = vmatmul.mubr.f32.gmra.mrb[0].mxu0 %v3319
        %v3460 = vpop.f32.mrb[0].mxu0
        %v3461 = vadd.f32 %v1203, %v3460
        %v3462 = vpop.f32.mrb[0].mxu0
        %3463 = vmatprep.mubr.f32.mxu0 0.0
        %3464 = vmatmul.mubr.f32.gmra.mrb[0].mxu0 %v3322
        %v3465 = vpop.f32.mrb[0].mxu0
        %v3466 = vadd.f32 %v1204, %v3465
        %v3467 = vpop.f32.mrb[0].mxu0
        %3468 = vdwg.mxu0
        %3469 = vmax.xlane.f32.xlu0 %v3391
        %v3470 = vpop.xlane.xlu0 %3469
        %3471 = vmax.xlane.f32.xlu0 %v3396
        %v3472 = vpop.xlane.xlu0 %3471
        %3473 = vmax.xlane.f32.xlu0 %v3401
        %v3474 = vpop.xlane.xlu0 %3473
        %3475 = vmax.xlane.f32.xlu0 %v3406
        %v3476 = vpop.xlane.xlu0 %3475
        %3477 = vmax.xlane.f32.xlu0 %v3411
        %v3478 = vpop.xlane.xlu0 %3477
        %3479 = vmax.xlane.f32.xlu0 %v3416
        %v3480 = vpop.xlane.xlu0 %3479
        %3481 = vmax.xlane.f32.xlu0 %v3421
        %v3482 = vpop.xlane.xlu0 %3481
        %3483 = vmax.xlane.f32.xlu0 %v3426
        %v3484 = vpop.xlane.xlu0 %3483
        %3485 = vmax.xlane.f32.xlu0 %v3431
        %v3486 = vpop.xlane.xlu0 %3485
        %3487 = vmax.xlane.f32.xlu0 %v3436
        %v3488 = vpop.xlane.xlu0 %3487
        %3489 = vmax.xlane.f32.xlu0 %v3441
        %v3490 = vpop.xlane.xlu0 %3489
        %3491 = vmax.xlane.f32.xlu0 %v3446
        %v3492 = vpop.xlane.xlu0 %3491
        %3493 = vmax.xlane.f32.xlu0 %v3451
        %v3494 = vpop.xlane.xlu0 %3493
        %3495 = vmax.xlane.f32.xlu0 %v3456
        %v3496 = vpop.xlane.xlu0 %3495
        %3497 = vmax.xlane.f32.xlu0 %v3461
        %v3498 = vpop.xlane.xlu0 %3497
        %3499 = vmax.xlane.f32.xlu0 %v3466
        %v3500 = vpop.xlane.xlu0 %3499
        %v3501 = vmax.f32 %v3470, 0.0
        %v3502 = vmax.f32 %v3472, 0.0
        %v3503 = vmax.f32 %v3474, 0.0
        %v3504 = vmax.f32 %v3476, 0.0
        %v3505 = vmax.f32 %v3478, 0.0
        %v3506 = vmax.f32 %v3480, 0.0
        %v3507 = vmax.f32 %v3482, 0.0
        %v3508 = vmax.f32 %v3484, 0.0
        %v3509 = vmax.f32 %v3486, 0.0
        %v3510 = vmax.f32 %v3488, 0.0
        %v3511 = vmax.f32 %v3490, 0.0
        %v3512 = vmax.f32 %v3492, 0.0
        %v3513 = vmax.f32 %v3494, 0.0
        %v3514 = vmax.f32 %v3496, 0.0
        %v3515 = vmax.f32 %v3498, 0.0
        %v3516 = vmax.f32 %v3500, 0.0
        %v3517 = vsub.f32 %v3391, %v3501
        %v3518 = vsub.f32 %v3396, %v3502
        %v3519 = vsub.f32 %v3401, %v3503
        %v3520 = vsub.f32 %v3406, %v3504
        %v3521 = vsub.f32 %v3411, %v3505
        %v3522 = vsub.f32 %v3416, %v3506
        %v3523 = vsub.f32 %v3421, %v3507
        %v3524 = vsub.f32 %v3426, %v3508
        %v3525 = vsub.f32 %v3431, %v3509
        %v3526 = vsub.f32 %v3436, %v3510
        %v3527 = vsub.f32 %v3441, %v3511
        %v3528 = vsub.f32 %v3446, %v3512
        %v3529 = vsub.f32 %v3451, %v3513
        %v3530 = vsub.f32 %v3456, %v3514
        %v3531 = vsub.f32 %v3461, %v3515
        %v3532 = vsub.f32 %v3466, %v3516
        %v3533 = vmul.f32 %v3517, 1.442695
        %v3534 = vpow.pop %v3533
        %v3535 = vmul.f32 %v3518, 1.442695
        %v3536 = vpow.pop %v3535
        %v3537 = vmul.f32 %v3519, 1.442695
        %v3538 = vpow.pop %v3537
        %v3539 = vmul.f32 %v3520, 1.442695
        %v3540 = vpow.pop %v3539
        %v3541 = vmul.f32 %v3521, 1.442695
        %v3542 = vpow.pop %v3541
        %v3543 = vmul.f32 %v3522, 1.442695
        %v3544 = vpow.pop %v3543
        %v3545 = vmul.f32 %v3523, 1.442695
        %v3546 = vpow.pop %v3545
        %v3547 = vmul.f32 %v3524, 1.442695
        %v3548 = vpow.pop %v3547
        %v3549 = vmul.f32 %v3525, 1.442695
        %v3550 = vpow.pop %v3549
        %v3551 = vmul.f32 %v3526, 1.442695
        %v3552 = vpow.pop %v3551
        %v3553 = vmul.f32 %v3527, 1.442695
        %v3554 = vpow.pop %v3553
        %v3555 = vmul.f32 %v3528, 1.442695
        %v3556 = vpow.pop %v3555
        %v3557 = vmul.f32 %v3529, 1.442695
        %v3558 = vpow.pop %v3557
        %v3559 = vmul.f32 %v3530, 1.442695
        %v3560 = vpow.pop %v3559
        %v3561 = vmul.f32 %v3531, 1.442695
        %v3562 = vpow.pop %v3561
        %v3563 = vmul.f32 %v3532, 1.442695
        %v3564 = vpow.pop %v3563
        %3565 = vadd.xlane.f32.xlu0 %v3534
        %v3566 = vpop.xlane.xlu0 %3565
        %3567 = vadd.xlane.f32.xlu0 %v3536
        %v3568 = vpop.xlane.xlu0 %3567
        %3569 = vadd.xlane.f32.xlu0 %v3538
        %v3570 = vpop.xlane.xlu0 %3569
        %3571 = vadd.xlane.f32.xlu0 %v3540
        %v3572 = vpop.xlane.xlu0 %3571
        %3573 = vadd.xlane.f32.xlu0 %v3542
        %v3574 = vpop.xlane.xlu0 %3573
        %3575 = vadd.xlane.f32.xlu0 %v3544
        %v3576 = vpop.xlane.xlu0 %3575
        %3577 = vadd.xlane.f32.xlu0 %v3546
        %v3578 = vpop.xlane.xlu0 %3577
        %3579 = vadd.xlane.f32.xlu0 %v3548
        %v3580 = vpop.xlane.xlu0 %3579
        %3581 = vadd.xlane.f32.xlu0 %v3550
        %v3582 = vpop.xlane.xlu0 %3581
        %3583 = vadd.xlane.f32.xlu0 %v3552
        %v3584 = vpop.xlane.xlu0 %3583
        %3585 = vadd.xlane.f32.xlu0 %v3554
        %v3586 = vpop.xlane.xlu0 %3585
        %3587 = vadd.xlane.f32.xlu0 %v3556
        %v3588 = vpop.xlane.xlu0 %3587
        %3589 = vadd.xlane.f32.xlu0 %v3558
        %v3590 = vpop.xlane.xlu0 %3589
        %3591 = vadd.xlane.f32.xlu0 %v3560
        %v3592 = vpop.xlane.xlu0 %3591
        %3593 = vadd.xlane.f32.xlu0 %v3562
        %v3594 = vpop.xlane.xlu0 %3593
        %3595 = vadd.xlane.f32.xlu0 %v3564
        %v3596 = vpop.xlane.xlu0 %3595
        %v3597 = vadd.f32 %v3566, 1e-15
        %v3598 = vadd.f32 %v3568, 1e-15
        %v3599 = vadd.f32 %v3570, 1e-15
        %v3600 = vadd.f32 %v3572, 1e-15
        %v3601 = vadd.f32 %v3574, 1e-15
        %v3602 = vadd.f32 %v3576, 1e-15
        %v3603 = vadd.f32 %v3578, 1e-15
        %v3604 = vadd.f32 %v3580, 1e-15
        %v3605 = vadd.f32 %v3582, 1e-15
        %v3606 = vadd.f32 %v3584, 1e-15
        %v3607 = vadd.f32 %v3586, 1e-15
        %v3608 = vadd.f32 %v3588, 1e-15
        %v3609 = vadd.f32 %v3590, 1e-15
        %v3610 = vadd.f32 %v3592, 1e-15
        %v3611 = vadd.f32 %v3594, 1e-15
        %v3612 = vadd.f32 %v3596, 1e-15
        %v3613 = vrcp.pop %v3597
        %v3614 = vmul.f32 1.0, %v3613
        %v3615 = vrcp.pop %v3598
        %v3616 = vmul.f32 1.0, %v3615
        %v3617 = vrcp.pop %v3599
        %v3618 = vmul.f32 1.0, %v3617
        %v3619 = vrcp.pop %v3600
        %v3620 = vmul.f32 1.0, %v3619
        %v3621 = vrcp.pop %v3601
        %v3622 = vmul.f32 1.0, %v3621
        %v3623 = vrcp.pop %v3602
        %v3624 = vmul.f32 1.0, %v3623
        %v3625 = vrcp.pop %v3603
        %v3626 = vmul.f32 1.0, %v3625
        %v3627 = vrcp.pop %v3604
        %v3628 = vmul.f32 1.0, %v3627
        %v3629 = vrcp.pop %v3605
        %v3630 = vmul.f32 1.0, %v3629
        %v3631 = vrcp.pop %v3606
        %v3632 = vmul.f32 1.0, %v3631
        %v3633 = vrcp.pop %v3607
        %v3634 = vmul.f32 1.0, %v3633
        %v3635 = vrcp.pop %v3608
        %v3636 = vmul.f32 1.0, %v3635
        %v3637 = vrcp.pop %v3609
        %v3638 = vmul.f32 1.0, %v3637
        %v3639 = vrcp.pop %v3610
        %v3640 = vmul.f32 1.0, %v3639
        %v3641 = vrcp.pop %v3611
        %v3642 = vmul.f32 1.0, %v3641
        %v3643 = vrcp.pop %v3612
        %v3644 = vmul.f32 1.0, %v3643
        %v3645 = vmul.f32 %v3534, %v3614
        %v3646 = vmul.f32 %v3536, %v3616
        %v3647 = vmul.f32 %v3538, %v3618
        %v3648 = vmul.f32 %v3540, %v3620
        %v3649 = vmul.f32 %v3542, %v3622
        %v3650 = vmul.f32 %v3544, %v3624
        %v3651 = vmul.f32 %v3546, %v3626
        %v3652 = vmul.f32 %v3548, %v3628
        %v3653 = vmul.f32 %v3550, %v3630
        %v3654 = vmul.f32 %v3552, %v3632
        %v3655 = vmul.f32 %v3554, %v3634
        %v3656 = vmul.f32 %v3556, %v3636
        %v3657 = vmul.f32 %v3558, %v3638
        %v3658 = vmul.f32 %v3560, %v3640
        %v3659 = vmul.f32 %v3562, %v3642
        %v3660 = vmul.f32 %v3564, %v3644
        %3662 = vrot.lane.b32.xlu0 %v3259, 64
        %v3663 = vpop.permute.xlu0 %3662
        %v3665 = vmul.f32 %v356, %v3663
        %v3666 = vmul.f32 %v361, %v3663
        %v3667 = vmul.f32 %v366, %v3663
        %v3668 = vmul.f32 %v371, %v3663
        %v3669 = vmul.f32 %v376, %v3663
        %v3670 = vmul.f32 %v381, %v3663
        %v3671 = vmul.f32 %v386, %v3663
        %v3672 = vmul.f32 %v391, %v3663
        %v3673 = vmul.f32 %v396, %v3663
        %v3674 = vmul.f32 %v401, %v3663
        %v3675 = vmul.f32 %v406, %v3663
        %v3676 = vmul.f32 %v411, %v3663
        %v3677 = vmul.f32 %v416, %v3663
        %v3678 = vmul.f32 %v421, %v3663
        %v3679 = vmul.f32 %v426, %v3663
        %v3680 = vmul.f32 %v431, %v3663
        %3697 = vrot.lane.b32.xlu0 %v3665, 64
        %v3698 = vpop.permute.xlu0 %3697
        %3699 = vrot.lane.b32.xlu0 %v3666, 64
        %v3700 = vpop.permute.xlu0 %3699
        %3701 = vrot.lane.b32.xlu0 %v3667, 64
        %v3702 = vpop.permute.xlu0 %3701
        %3703 = vrot.lane.b32.xlu0 %v3668, 64
        %v3704 = vpop.permute.xlu0 %3703
        %3705 = vrot.lane.b32.xlu0 %v3669, 64
        %v3706 = vpop.permute.xlu0 %3705
        %3707 = vrot.lane.b32.xlu0 %v3670, 64
        %v3708 = vpop.permute.xlu0 %3707
        %3709 = vrot.lane.b32.xlu0 %v3671, 64
        %v3710 = vpop.permute.xlu0 %3709
        %3711 = vrot.lane.b32.xlu0 %v3672, 64
        %v3712 = vpop.permute.xlu0 %3711
        %3713 = vrot.lane.b32.xlu0 %v3673, 64
        %v3714 = vpop.permute.xlu0 %3713
        %3715 = vrot.lane.b32.xlu0 %v3674, 64
        %v3716 = vpop.permute.xlu0 %3715
        %3717 = vrot.lane.b32.xlu0 %v3675, 64
        %v3718 = vpop.permute.xlu0 %3717
        %3719 = vrot.lane.b32.xlu0 %v3676, 64
        %v3720 = vpop.permute.xlu0 %3719
        %3721 = vrot.lane.b32.xlu0 %v3677, 64
        %v3722 = vpop.permute.xlu0 %3721
        %3723 = vrot.lane.b32.xlu0 %v3678, 64
        %v3724 = vpop.permute.xlu0 %3723
        %3725 = vrot.lane.b32.xlu0 %v3679, 64
        %v3726 = vpop.permute.xlu0 %3725
        %3727 = vrot.lane.b32.xlu0 %v3680, 64
        %v3728 = vpop.permute.xlu0 %3727
        %3745 = vmatprep.subr.mxu0 0.0
        %3746 = vmatpush1.msra.mxu0 %v3698
        %3747 = vmatprep.subr.mxu0 0.0
        %3748 = vmatpush1.msra.mxu0 %v3700
        %3749 = vmatprep.subr.mxu0 0.0
        %3750 = vmatpush1.msra.mxu0 %v3702
        %3751 = vmatprep.subr.mxu0 0.0
        %3752 = vmatpush1.msra.mxu0 %v3704
        %3753 = vmatprep.subr.mxu0 0.0
        %3754 = vmatpush1.msra.mxu0 %v3706
        %3755 = vmatprep.subr.mxu0 0.0
        %3756 = vmatpush1.msra.mxu0 %v3708
        %3757 = vmatprep.subr.mxu0 0.0
        %3758 = vmatpush1.msra.mxu0 %v3710
        %3759 = vmatprep.subr.mxu0 0.0
        %3760 = vmatpush1.msra.mxu0 %v3712
        %3761 = vmatprep.subr.mxu0 0.0
        %3762 = vmatpush1.msra.mxu0 %v3714
        %3763 = vmatprep.subr.mxu0 0.0
        %3764 = vmatpush1.msra.mxu0 %v3716
        %3765 = vmatprep.subr.mxu0 0.0
        %3766 = vmatpush1.msra.mxu0 %v3718
        %3767 = vmatprep.subr.mxu0 0.0
        %3768 = vmatpush1.msra.mxu0 %v3720
        %3769 = vmatprep.subr.mxu0 0.0
        %3770 = vmatpush1.msra.mxu0 %v3722
        %3771 = vmatprep.subr.mxu0 0.0
        %3772 = vmatpush1.msra.mxu0 %v3724
        %3773 = vmatprep.subr.mxu0 0.0
        %3774 = vmatpush1.msra.mxu0 %v3726
        %3775 = vmatprep.subr.mxu0 0.0
        %3776 = vmatpush1.msra.mxu0 %v3728
        %3777 = vmatprep.subr.mxu0 0.0
        %3778 = vmatpush1.msra.mxu0 0.0
        %3779 = vmatprep.subr.mxu0 0.0
        %3780 = vmatpush1.msra.mxu0 0.0
        %3781 = vmatprep.subr.mxu0 0.0
        %3782 = vmatpush1.msra.mxu0 0.0
        %3783 = vmatprep.subr.mxu0 0.0
        %3784 = vmatpush1.msra.mxu0 0.0
        %3785 = vmatprep.subr.mxu0 0.0
        %3786 = vmatpush1.msra.mxu0 0.0
        %3787 = vmatprep.subr.mxu0 0.0
        %3788 = vmatpush1.msra.mxu0 0.0
        %3789 = vmatprep.subr.mxu0 0.0
        %3790 = vmatpush1.msra.mxu0 0.0
        %3791 = vmatprep.subr.mxu0 0.0
        %3792 = vmatpush1.msra.mxu0 0.0
        %3793 = vmatprep.subr.mxu0 0.0
        %3794 = vmatpush1.msra.mxu0 0.0
        %3795 = vmatprep.subr.mxu0 0.0
        %3796 = vmatpush1.msra.mxu0 0.0
        %3797 = vmatprep.subr.mxu0 0.0
        %3798 = vmatpush1.msra.mxu0 0.0
        %3799 = vmatprep.subr.mxu0 0.0
        %3800 = vmatpush1.msra.mxu0 0.0
        %3801 = vmatprep.subr.mxu0 0.0
        %3802 = vmatpush1.msra.mxu0 0.0
        %3803 = vmatprep.subr.mxu0 0.0
        %3804 = vmatpush1.msra.mxu0 0.0
        %3805 = vmatprep.subr.mxu0 0.0
        %3806 = vmatpush1.msra.mxu0 0.0
        %3807 = vmatprep.subr.mxu0 0.0
        %3808 = vmatpush1.msra.mxu0 0.0
        %3809 = vmatprep.mubr.f32.mxu0 0.0
        %3810 = vmatmul.mubr.f32.gmra.mrb[0].mxu0 %v3645
        %v3811 = vpop.f32.mrb[0].mxu0
        %v3812 = vadd.f32 0.0, %v3811
        %v3813 = vpop.f32.mrb[0].mxu0
        %3814 = vmatprep.mubr.f32.mxu0 0.0
        %3815 = vmatmul.mubr.f32.gmra.mrb[0].mxu0 %v3646
        %v3816 = vpop.f32.mrb[0].mxu0
        %v3817 = vadd.f32 0.0, %v3816
        %v3818 = vpop.f32.mrb[0].mxu0
        %3819 = vmatprep.mubr.f32.mxu0 0.0
        %3820 = vmatmul.mubr.f32.gmra.mrb[0].mxu0 %v3647
        %v3821 = vpop.f32.mrb[0].mxu0
        %v3822 = vadd.f32 0.0, %v3821
        %v3823 = vpop.f32.mrb[0].mxu0
        %3824 = vmatprep.mubr.f32.mxu0 0.0
        %3825 = vmatmul.mubr.f32.gmra.mrb[0].mxu0 %v3648
        %v3826 = vpop.f32.mrb[0].mxu0
        %v3827 = vadd.f32 0.0, %v3826
        %v3828 = vpop.f32.mrb[0].mxu0
        %3829 = vmatprep.mubr.f32.mxu0 0.0
        %3830 = vmatmul.mubr.f32.gmra.mrb[0].mxu0 %v3649
        %v3831 = vpop.f32.mrb[0].mxu0
        %v3832 = vadd.f32 0.0, %v3831
        %v3833 = vpop.f32.mrb[0].mxu0
        %3834 = vmatprep.mubr.f32.mxu0 0.0
        %3835 = vmatmul.mubr.f32.gmra.mrb[0].mxu0 %v3650
        %v3836 = vpop.f32.mrb[0].mxu0
        %v3837 = vadd.f32 0.0, %v3836
        %v3838 = vpop.f32.mrb[0].mxu0
        %3839 = vmatprep.mubr.f32.mxu0 0.0
        %3840 = vmatmul.mubr.f32.gmra.mrb[0].mxu0 %v3651
        %v3841 = vpop.f32.mrb[0].mxu0
        %v3842 = vadd.f32 0.0, %v3841
        %v3843 = vpop.f32.mrb[0].mxu0
        %3844 = vmatprep.mubr.f32.mxu0 0.0
        %3845 = vmatmul.mubr.f32.gmra.mrb[0].mxu0 %v3652
        %v3846 = vpop.f32.mrb[0].mxu0
        %v3847 = vadd.f32 0.0, %v3846
        %v3848 = vpop.f32.mrb[0].mxu0
        %3849 = vmatprep.mubr.f32.mxu0 0.0
        %3850 = vmatmul.mubr.f32.gmra.mrb[0].mxu0 %v3653
        %v3851 = vpop.f32.mrb[0].mxu0
        %v3852 = vadd.f32 0.0, %v3851
        %v3853 = vpop.f32.mrb[0].mxu0
        %3854 = vmatprep.mubr.f32.mxu0 0.0
        %3855 = vmatmul.mubr.f32.gmra.mrb[0].mxu0 %v3654
        %v3856 = vpop.f32.mrb[0].mxu0
        %v3857 = vadd.f32 0.0, %v3856
        %v3858 = vpop.f32.mrb[0].mxu0
        %3859 = vmatprep.mubr.f32.mxu0 0.0
        %3860 = vmatmul.mubr.f32.gmra.mrb[0].mxu0 %v3655
        %v3861 = vpop.f32.mrb[0].mxu0
        %v3862 = vadd.f32 0.0, %v3861
        %v3863 = vpop.f32.mrb[0].mxu0
        %3864 = vmatprep.mubr.f32.mxu0 0.0
        %3865 = vmatmul.mubr.f32.gmra.mrb[0].mxu0 %v3656
        %v3866 = vpop.f32.mrb[0].mxu0
        %v3867 = vadd.f32 0.0, %v3866
        %v3868 = vpop.f32.mrb[0].mxu0
        %3869 = vmatprep.mubr.f32.mxu0 0.0
        %3870 = vmatmul.mubr.f32.gmra.mrb[0].mxu0 %v3657
        %v3871 = vpop.f32.mrb[0].mxu0
        %v3872 = vadd.f32 0.0, %v3871
        %v3873 = vpop.f32.mrb[0].mxu0
        %3874 = vmatprep.mubr.f32.mxu0 0.0
        %3875 = vmatmul.mubr.f32.gmra.mrb[0].mxu0 %v3658
        %v3876 = vpop.f32.mrb[0].mxu0
        %v3877 = vadd.f32 0.0, %v3876
        %v3878 = vpop.f32.mrb[0].mxu0
        %3879 = vmatprep.mubr.f32.mxu0 0.0
        %3880 = vmatmul.mubr.f32.gmra.mrb[0].mxu0 %v3659
        %v3881 = vpop.f32.mrb[0].mxu0
        %v3882 = vadd.f32 0.0, %v3881
        %v3883 = vpop.f32.mrb[0].mxu0
        %3884 = vmatprep.mubr.f32.mxu0 0.0
        %3885 = vmatmul.mubr.f32.gmra.mrb[0].mxu0 %v3660
        %v3886 = vpop.f32.mrb[0].mxu0
        %v3887 = vadd.f32 0.0, %v3886
        %v3888 = vpop.f32.mrb[0].mxu0
        %3889 = vdwg.mxu0
        %v3890 = vadd.f32 %v3239, %v3812
        %v3891 = vadd.f32 %v3240, %v3817
        %v3892 = vadd.f32 %v3241, %v3822
        %v3893 = vadd.f32 %v3242, %v3827
        %v3894 = vadd.f32 %v3243, %v3832
        %v3895 = vadd.f32 %v3244, %v3837
        %v3896 = vadd.f32 %v3245, %v3842
        %v3897 = vadd.f32 %v3246, %v3847
        %v3898 = vadd.f32 %v3247, %v3852
        %v3899 = vadd.f32 %v3248, %v3857
        %v3900 = vadd.f32 %v3249, %v3862
        %v3901 = vadd.f32 %v3250, %v3867
        %v3902 = vadd.f32 %v3251, %v3872
        %v3903 = vadd.f32 %v3252, %v3877
        %v3904 = vadd.f32 %v3253, %v3882
        %v3905 = vadd.f32 %v3254, %v3887
        %v3906 = vadd.f32 %v1221, %v3890
        %v3907 = vadd.f32 %v1222, %v3891
        %v3908 = vadd.f32 %v1223, %v3892
        %v3909 = vadd.f32 %v1224, %v3893
        %v3910 = vadd.f32 %v1225, %v3894
        %v3911 = vadd.f32 %v1226, %v3895
        %v3912 = vadd.f32 %v1227, %v3896
        %v3913 = vadd.f32 %v1228, %v3897
        %v3914 = vadd.f32 %v1229, %v3898
        %v3915 = vadd.f32 %v1230, %v3899
        %v3916 = vadd.f32 %v1231, %v3900
        %v3917 = vadd.f32 %v1232, %v3901
        %v3918 = vadd.f32 %v1233, %v3902
        %v3919 = vadd.f32 %v1234, %v3903
        %v3920 = vadd.f32 %v1235, %v3904
        %v3921 = vadd.f32 %v1236, %v3905
        %v3922 = vsel %vm1322, %v3906, 0.0
        %3923 = vadd.xlane.f32.xlu0 %v3922
        %v3924 = vpop.xlane.xlu0 %3923
        %v3925 = vsel %vm1322, %v3907, 0.0
        %3926 = vadd.xlane.f32.xlu0 %v3925
        %v3927 = vpop.xlane.xlu0 %3926
        %v3928 = vsel %vm1322, %v3908, 0.0
        %3929 = vadd.xlane.f32.xlu0 %v3928
        %v3930 = vpop.xlane.xlu0 %3929
        %v3931 = vsel %vm1322, %v3909, 0.0
        %3932 = vadd.xlane.f32.xlu0 %v3931
        %v3933 = vpop.xlane.xlu0 %3932
        %v3934 = vsel %vm1322, %v3910, 0.0
        %3935 = vadd.xlane.f32.xlu0 %v3934
        %v3936 = vpop.xlane.xlu0 %3935
        %v3937 = vsel %vm1322, %v3911, 0.0
        %3938 = vadd.xlane.f32.xlu0 %v3937
        %v3939 = vpop.xlane.xlu0 %3938
        %v3940 = vsel %vm1322, %v3912, 0.0
        %3941 = vadd.xlane.f32.xlu0 %v3940
        %v3942 = vpop.xlane.xlu0 %3941
        %v3943 = vsel %vm1322, %v3913, 0.0
        %3944 = vadd.xlane.f32.xlu0 %v3943
        %v3945 = vpop.xlane.xlu0 %3944
        %v3946 = vsel %vm1322, %v3914, 0.0
        %3947 = vadd.xlane.f32.xlu0 %v3946
        %v3948 = vpop.xlane.xlu0 %3947
        %v3949 = vsel %vm1322, %v3915, 0.0
        %3950 = vadd.xlane.f32.xlu0 %v3949
        %v3951 = vpop.xlane.xlu0 %3950
        %v3952 = vsel %vm1322, %v3916, 0.0
        %3953 = vadd.xlane.f32.xlu0 %v3952
        %v3954 = vpop.xlane.xlu0 %3953
        %v3955 = vsel %vm1322, %v3917, 0.0
        %3956 = vadd.xlane.f32.xlu0 %v3955
        %v3957 = vpop.xlane.xlu0 %3956
        %v3958 = vsel %vm1322, %v3918, 0.0
        %3959 = vadd.xlane.f32.xlu0 %v3958
        %v3960 = vpop.xlane.xlu0 %3959
        %v3961 = vsel %vm1322, %v3919, 0.0
        %3962 = vadd.xlane.f32.xlu0 %v3961
        %v3963 = vpop.xlane.xlu0 %3962
        %v3964 = vsel %vm1322, %v3920, 0.0
        %3965 = vadd.xlane.f32.xlu0 %v3964
        %v3966 = vpop.xlane.xlu0 %3965
        %v3967 = vsel %vm1322, %v3921, 0.0
        %3968 = vadd.xlane.f32.xlu0 %v3967
        %v3969 = vpop.xlane.xlu0 %3968
        %v3970 = vrcp.pop 32.0
        %v3971 = vmul.f32 %v3924, %v3970
        %v3972 = vmul.f32 %v3927, %v3970
        %v3973 = vmul.f32 %v3930, %v3970
        %v3974 = vmul.f32 %v3933, %v3970
        %v3975 = vmul.f32 %v3936, %v3970
        %v3976 = vmul.f32 %v3939, %v3970
        %v3977 = vmul.f32 %v3942, %v3970
        %v3978 = vmul.f32 %v3945, %v3970
        %v3979 = vmul.f32 %v3948, %v3970
        %v3980 = vmul.f32 %v3951, %v3970
        %v3981 = vmul.f32 %v3954, %v3970
        %v3982 = vmul.f32 %v3957, %v3970
        %v3983 = vmul.f32 %v3960, %v3970
        %v3984 = vmul.f32 %v3963, %v3970
        %v3985 = vmul.f32 %v3966, %v3970
        %v3986 = vmul.f32 %v3969, %v3970
        %v3987 = vsub.f32 %v3906, %v3971
        %v3988 = vsub.f32 %v3907, %v3972
        %v3989 = vsub.f32 %v3908, %v3973
        %v3990 = vsub.f32 %v3909, %v3974
        %v3991 = vsub.f32 %v3910, %v3975
        %v3992 = vsub.f32 %v3911, %v3976
        %v3993 = vsub.f32 %v3912, %v3977
        %v3994 = vsub.f32 %v3913, %v3978
        %v3995 = vsub.f32 %v3914, %v3979
        %v3996 = vsub.f32 %v3915, %v3980
        %v3997 = vsub.f32 %v3916, %v3981
        %v3998 = vsub.f32 %v3917, %v3982
        %v3999 = vsub.f32 %v3918, %v3983
        %v4000 = vsub.f32 %v3919, %v3984
        %v4001 = vsub.f32 %v3920, %v3985
        %v4002 = vsub.f32 %v3921, %v3986
        %v4003 = vmul.f32 %v3987, %v3987
        %v4004 = vmul.f32 %v3988, %v3988
        %v4005 = vmul.f32 %v3989, %v3989
        %v4006 = vmul.f32 %v3990, %v3990
        %v4007 = vmul.f32 %v3991, %v3991
        %v4008 = vmul.f32 %v3992, %v3992
        %v4009 = vmul.f32 %v3993, %v3993
        %v4010 = vmul.f32 %v3994, %v3994
        %v4011 = vmul.f32 %v3995, %v3995
        %v4012 = vmul.f32 %v3996, %v3996
        %v4013 = vmul.f32 %v3997, %v3997
        %v4014 = vmul.f32 %v3998, %v3998
        %v4015 = vmul.f32 %v3999, %v3999
        %v4016 = vmul.f32 %v4000, %v4000
        %v4017 = vmul.f32 %v4001, %v4001
        %v4018 = vmul.f32 %v4002, %v4002
        %v4019 = vsel %vm1322, %v4003, 0.0
        %4020 = vadd.xlane.f32.xlu0 %v4019
        %v4021 = vpop.xlane.xlu0 %4020
        %v4022 = vsel %vm1322, %v4004, 0.0
        %4023 = vadd.xlane.f32.xlu0 %v4022
        %v4024 = vpop.xlane.xlu0 %4023
        %v4025 = vsel %vm1322, %v4005, 0.0
        %4026 = vadd.xlane.f32.xlu0 %v4025
        %v4027 = vpop.xlane.xlu0 %4026
        %v4028 = vsel %vm1322, %v4006, 0.0
        %4029 = vadd.xlane.f32.xlu0 %v4028
        %v4030 = vpop.xlane.xlu0 %4029
        %v4031 = vsel %vm1322, %v4007, 0.0
        %4032 = vadd.xlane.f32.xlu0 %v4031
        %v4033 = vpop.xlane.xlu0 %4032
        %v4034 = vsel %vm1322, %v4008, 0.0
        %4035 = vadd.xlane.f32.xlu0 %v4034
        %v4036 = vpop.xlane.xlu0 %4035
        %v4037 = vsel %vm1322, %v4009, 0.0
        %4038 = vadd.xlane.f32.xlu0 %v4037
        %v4039 = vpop.xlane.xlu0 %4038
        %v4040 = vsel %vm1322, %v4010, 0.0
        %4041 = vadd.xlane.f32.xlu0 %v4040
        %v4042 = vpop.xlane.xlu0 %4041
        %v4043 = vsel %vm1322, %v4011, 0.0
        %4044 = vadd.xlane.f32.xlu0 %v4043
        %v4045 = vpop.xlane.xlu0 %4044
        %v4046 = vsel %vm1322, %v4012, 0.0
        %4047 = vadd.xlane.f32.xlu0 %v4046
        %v4048 = vpop.xlane.xlu0 %4047
        %v4049 = vsel %vm1322, %v4013, 0.0
        %4050 = vadd.xlane.f32.xlu0 %v4049
        %v4051 = vpop.xlane.xlu0 %4050
        %v4052 = vsel %vm1322, %v4014, 0.0
        %4053 = vadd.xlane.f32.xlu0 %v4052
        %v4054 = vpop.xlane.xlu0 %4053
        %v4055 = vsel %vm1322, %v4015, 0.0
        %4056 = vadd.xlane.f32.xlu0 %v4055
        %v4057 = vpop.xlane.xlu0 %4056
        %v4058 = vsel %vm1322, %v4016, 0.0
        %4059 = vadd.xlane.f32.xlu0 %v4058
        %v4060 = vpop.xlane.xlu0 %4059
        %v4061 = vsel %vm1322, %v4017, 0.0
        %4062 = vadd.xlane.f32.xlu0 %v4061
        %v4063 = vpop.xlane.xlu0 %4062
        %v4064 = vsel %vm1322, %v4018, 0.0
        %4065 = vadd.xlane.f32.xlu0 %v4064
        %v4066 = vpop.xlane.xlu0 %4065
        %v4067 = vmul.f32 %v4021, %v3970
        %v4068 = vmul.f32 %v4024, %v3970
        %v4069 = vmul.f32 %v4027, %v3970
        %v4070 = vmul.f32 %v4030, %v3970
        %v4071 = vmul.f32 %v4033, %v3970
        %v4072 = vmul.f32 %v4036, %v3970
        %v4073 = vmul.f32 %v4039, %v3970
        %v4074 = vmul.f32 %v4042, %v3970
        %v4075 = vmul.f32 %v4045, %v3970
        %v4076 = vmul.f32 %v4048, %v3970
        %v4077 = vmul.f32 %v4051, %v3970
        %v4078 = vmul.f32 %v4054, %v3970
        %v4079 = vmul.f32 %v4057, %v3970
        %v4080 = vmul.f32 %v4060, %v3970
        %v4081 = vmul.f32 %v4063, %v3970
        %v4082 = vmul.f32 %v4066, %v3970
        %v4083 = vadd.f32 %v4067, 1e-05
        %v4084 = vadd.f32 %v4068, 1e-05
        %v4085 = vadd.f32 %v4069, 1e-05
        %v4086 = vadd.f32 %v4070, 1e-05
        %v4087 = vadd.f32 %v4071, 1e-05
        %v4088 = vadd.f32 %v4072, 1e-05
        %v4089 = vadd.f32 %v4073, 1e-05
        %v4090 = vadd.f32 %v4074, 1e-05
        %v4091 = vadd.f32 %v4075, 1e-05
        %v4092 = vadd.f32 %v4076, 1e-05
        %v4093 = vadd.f32 %v4077, 1e-05
        %v4094 = vadd.f32 %v4078, 1e-05
        %v4095 = vadd.f32 %v4079, 1e-05
        %v4096 = vadd.f32 %v4080, 1e-05
        %v4097 = vadd.f32 %v4081, 1e-05
        %v4098 = vadd.f32 %v4082, 1e-05
        %v4099 = vrsqrt.pop %v4083
        %v4100 = vrsqrt.pop %v4084
        %v4101 = vrsqrt.pop %v4085
        %v4102 = vrsqrt.pop %v4086
        %v4103 = vrsqrt.pop %v4087
        %v4104 = vrsqrt.pop %v4088
        %v4105 = vrsqrt.pop %v4089
        %v4106 = vrsqrt.pop %v4090
        %v4107 = vrsqrt.pop %v4091
        %v4108 = vrsqrt.pop %v4092
        %v4109 = vrsqrt.pop %v4093
        %v4110 = vrsqrt.pop %v4094
        %v4111 = vrsqrt.pop %v4095
        %v4112 = vrsqrt.pop %v4096
        %v4113 = vrsqrt.pop %v4097
        %v4114 = vrsqrt.pop %v4098
        %v4115 = vmul.f32 %v3987, %v4099
        %v4116 = vmul.f32 %v3988, %v4100
        %v4117 = vmul.f32 %v3989, %v4101
        %v4118 = vmul.f32 %v3990, %v4102
        %v4119 = vmul.f32 %v3991, %v4103
        %v4120 = vmul.f32 %v3992, %v4104
        %v4121 = vmul.f32 %v3993, %v4105
        %v4122 = vmul.f32 %v3994, %v4106
        %v4123 = vmul.f32 %v3995, %v4107
        %v4124 = vmul.f32 %v3996, %v4108
        %v4125 = vmul.f32 %v3997, %v4109
        %v4126 = vmul.f32 %v3998, %v4110
        %v4127 = vmul.f32 %v3999, %v4111
        %v4128 = vmul.f32 %v4000, %v4112
        %v4129 = vmul.f32 %v4001, %v4113
        %v4130 = vmul.f32 %v4002, %v4114
        %v4131 = vlaneseq
        %v4132 = vshrl.u32 %v4131, 7
        %v4133 = vsub.s32 0, %v4132
        %v4134 = vrot.slane %v208, %v4133
        %v4135 = vmul.f32 %v4115, %v4134
        %v4136 = vmul.f32 %v4116, %v4134
        %v4137 = vmul.f32 %v4117, %v4134
        %v4138 = vmul.f32 %v4118, %v4134
        %v4139 = vmul.f32 %v4119, %v4134
        %v4140 = vmul.f32 %v4120, %v4134
        %v4141 = vmul.f32 %v4121, %v4134
        %v4142 = vmul.f32 %v4122, %v4134
        %v4143 = vmul.f32 %v4123, %v4134
        %v4144 = vmul.f32 %v4124, %v4134
        %v4145 = vmul.f32 %v4125, %v4134
        %v4146 = vmul.f32 %v4126, %v4134
        %v4147 = vmul.f32 %v4127, %v4134
        %v4148 = vmul.f32 %v4128, %v4134
        %v4149 = vmul.f32 %v4129, %v4134
        %v4150 = vmul.f32 %v4130, %v4134
        %v4151 = vlaneseq
        %v4152 = vshrl.u32 %v4151, 7
        %v4153 = vsub.s32 0, %v4152
        %v4154 = vrot.slane %v209, %v4153
        %v4155 = vadd.f32 %v4135, %v4154
        %v4156 = vadd.f32 %v4136, %v4154
        %v4157 = vadd.f32 %v4137, %v4154
        %v4158 = vadd.f32 %v4138, %v4154
        %v4159 = vadd.f32 %v4139, %v4154
        %v4160 = vadd.f32 %v4140, %v4154
        %v4161 = vadd.f32 %v4141, %v4154
        %v4162 = vadd.f32 %v4142, %v4154
        %v4163 = vadd.f32 %v4143, %v4154
        %v4164 = vadd.f32 %v4144, %v4154
        %v4165 = vadd.f32 %v4145, %v4154
        %v4166 = vadd.f32 %v4146, %v4154
        %v4167 = vadd.f32 %v4147, %v4154
        %v4168 = vadd.f32 %v4148, %v4154
        %v4169 = vadd.f32 %v4149, %v4154
        %v4170 = vadd.f32 %v4150, %v4154
        %v4171 = vld [vmem:[%s3] sm:$0xff]
        %v4172 = vld [vmem:[%s3 + $0x8] sm:$0xff]
        %v4173 = vld [vmem:[%s3 + $0x10] sm:$0xff]
        %v4174 = vld [vmem:[%s3 + $0x18] sm:$0xff]
        %v4175 = vlaneseq
        %v4176 = vshrl.u32 %v4175, 7
        %v4177 = vsub.s32 0, %v4176
        %v4178 = vrot.slane %v207, %v4177
        %v4180 = vsel %vm1322, %v4155, 0
        %v4183 = vsel %vm1322, %v4156, 0
        %v4186 = vsel %vm1322, %v4157, 0
        %v4189 = vsel %vm1322, %v4158, 0
        %v4192 = vsel %vm1322, %v4159, 0
        %v4195 = vsel %vm1322, %v4160, 0
        %v4198 = vsel %vm1322, %v4161, 0
        %v4201 = vsel %vm1322, %v4162, 0
        %v4204 = vsel %vm1322, %v4163, 0
        %v4207 = vsel %vm1322, %v4164, 0
        %v4210 = vsel %vm1322, %v4165, 0
        %v4213 = vsel %vm1322, %v4166, 0
        %v4216 = vsel %vm1322, %v4167, 0
        %v4219 = vsel %vm1322, %v4168, 0
        %v4222 = vsel %vm1322, %v4169, 0
        %v4225 = vsel %vm1322, %v4170, 0
        %4227 = vmatprep.subr.mxu0 0.0
        %4228 = vmatpush1.msra.mxu0 %v4171
        %4229 = vmatprep.subr.mxu0 0.0
        %4230 = vmatpush1.msra.mxu0 %v4172
        %4231 = vmatprep.subr.mxu0 0.0
        %4232 = vmatpush1.msra.mxu0 %v4173
        %4233 = vmatprep.subr.mxu0 0.0
        %4234 = vmatpush1.msra.mxu0 %v4174
        %4235 = vmatprep.subr.mxu0 0.0
        %4236 = vmatpush1.msra.mxu0 0.0
        %4237 = vmatprep.subr.mxu0 0.0
        %4238 = vmatpush1.msra.mxu0 0.0
        %4239 = vmatprep.subr.mxu0 0.0
        %4240 = vmatpush1.msra.mxu0 0.0
        %4241 = vmatprep.subr.mxu0 0.0
        %4242 = vmatpush1.msra.mxu0 0.0
        %4243 = vmatprep.subr.mxu0 0.0
        %4244 = vmatpush1.msra.mxu0 0.0
        %4245 = vmatprep.subr.mxu0 0.0
        %4246 = vmatpush1.msra.mxu0 0.0
        %4247 = vmatprep.subr.mxu0 0.0
        %4248 = vmatpush1.msra.mxu0 0.0
        %4249 = vmatprep.subr.mxu0 0.0
        %4250 = vmatpush1.msra.mxu0 0.0
        %4251 = vmatprep.subr.mxu0 0.0
        %4252 = vmatpush1.msra.mxu0 0.0
        %4253 = vmatprep.subr.mxu0 0.0
        %4254 = vmatpush1.msra.mxu0 0.0
        %4255 = vmatprep.subr.mxu0 0.0
        %4256 = vmatpush1.msra.mxu0 0.0
        %4257 = vmatprep.subr.mxu0 0.0
        %4258 = vmatpush1.msra.mxu0 0.0
        %4259 = vmatprep.subr.mxu0 0.0
        %4260 = vmatpush1.msra.mxu0 0.0
        %4261 = vmatprep.subr.mxu0 0.0
        %4262 = vmatpush1.msra.mxu0 0.0
        %4263 = vmatprep.subr.mxu0 0.0
        %4264 = vmatpush1.msra.mxu0 0.0
        %4265 = vmatprep.subr.mxu0 0.0
        %4266 = vmatpush1.msra.mxu0 0.0
        %4267 = vmatprep.subr.mxu0 0.0
        %4268 = vmatpush1.msra.mxu0 0.0
        %4269 = vmatprep.subr.mxu0 0.0
        %4270 = vmatpush1.msra.mxu0 0.0
        %4271 = vmatprep.subr.mxu0 0.0
        %4272 = vmatpush1.msra.mxu0 0.0
        %4273 = vmatprep.subr.mxu0 0.0
        %4274 = vmatpush1.msra.mxu0 0.0
        %4275 = vmatprep.subr.mxu0 0.0
        %4276 = vmatpush1.msra.mxu0 0.0
        %4277 = vmatprep.subr.mxu0 0.0
        %4278 = vmatpush1.msra.mxu0 0.0
        %4279 = vmatprep.subr.mxu0 0.0
        %4280 = vmatpush1.msra.mxu0 0.0
        %4281 = vmatprep.subr.mxu0 0.0
        %4282 = vmatpush1.msra.mxu0 0.0
        %4283 = vmatprep.subr.mxu0 0.0
        %4284 = vmatpush1.msra.mxu0 0.0
        %4285 = vmatprep.subr.mxu0 0.0
        %4286 = vmatpush1.msra.mxu0 0.0
        %4287 = vmatprep.subr.mxu0 0.0
        %4288 = vmatpush1.msra.mxu0 0.0
        %4289 = vmatprep.subr.mxu0 0.0
        %4290 = vmatpush1.msra.mxu0 0.0
        %4291 = vmatprep.mubr.f32.mxu0 0.0
        %4292 = vmatmul.mubr.f32.gmra.mrb[0].mxu0 %v4180
        %v4293 = vpop.f32.mrb[0].mxu0
        %v4294 = vadd.f32 %v4178, %v4293
        %v4295 = vpop.f32.mrb[0].mxu0
        %4296 = vmatprep.mubr.f32.mxu0 0.0
        %4297 = vmatmul.mubr.f32.gmra.mrb[0].mxu0 %v4183
        %v4298 = vpop.f32.mrb[0].mxu0
        %v4299 = vadd.f32 %v4178, %v4298
        %v4300 = vpop.f32.mrb[0].mxu0
        %4301 = vmatprep.mubr.f32.mxu0 0.0
        %4302 = vmatmul.mubr.f32.gmra.mrb[0].mxu0 %v4186
        %v4303 = vpop.f32.mrb[0].mxu0
        %v4304 = vadd.f32 %v4178, %v4303
        %v4305 = vpop.f32.mrb[0].mxu0
        %4306 = vmatprep.mubr.f32.mxu0 0.0
        %4307 = vmatmul.mubr.f32.gmra.mrb[0].mxu0 %v4189
        %v4308 = vpop.f32.mrb[0].mxu0
        %v4309 = vadd.f32 %v4178, %v4308
        %v4310 = vpop.f32.mrb[0].mxu0
        %4311 = vmatprep.mubr.f32.mxu0 0.0
        %4312 = vmatmul.mubr.f32.gmra.mrb[0].mxu0 %v4192
        %v4313 = vpop.f32.mrb[0].mxu0
        %v4314 = vadd.f32 %v4178, %v4313
        %v4315 = vpop.f32.mrb[0].mxu0
        %4316 = vmatprep.mubr.f32.mxu0 0.0
        %4317 = vmatmul.mubr.f32.gmra.mrb[0].mxu0 %v4195
        %v4318 = vpop.f32.mrb[0].mxu0
        %v4319 = vadd.f32 %v4178, %v4318
        %v4320 = vpop.f32.mrb[0].mxu0
        %4321 = vmatprep.mubr.f32.mxu0 0.0
        %4322 = vmatmul.mubr.f32.gmra.mrb[0].mxu0 %v4198
        %v4323 = vpop.f32.mrb[0].mxu0
        %v4324 = vadd.f32 %v4178, %v4323
        %v4325 = vpop.f32.mrb[0].mxu0
        %4326 = vmatprep.mubr.f32.mxu0 0.0
        %4327 = vmatmul.mubr.f32.gmra.mrb[0].mxu0 %v4201
        %v4328 = vpop.f32.mrb[0].mxu0
        %v4329 = vadd.f32 %v4178, %v4328
        %v4330 = vpop.f32.mrb[0].mxu0
        %4331 = vmatprep.mubr.f32.mxu0 0.0
        %4332 = vmatmul.mubr.f32.gmra.mrb[0].mxu0 %v4204
        %v4333 = vpop.f32.mrb[0].mxu0
        %v4334 = vadd.f32 %v4178, %v4333
        %v4335 = vpop.f32.mrb[0].mxu0
        %4336 = vmatprep.mubr.f32.mxu0 0.0
        %4337 = vmatmul.mubr.f32.gmra.mrb[0].mxu0 %v4207
        %v4338 = vpop.f32.mrb[0].mxu0
        %v4339 = vadd.f32 %v4178, %v4338
        %v4340 = vpop.f32.mrb[0].mxu0
        %4341 = vmatprep.mubr.f32.mxu0 0.0
        %4342 = vmatmul.mubr.f32.gmra.mrb[0].mxu0 %v4210
        %v4343 = vpop.f32.mrb[0].mxu0
        %v4344 = vadd.f32 %v4178, %v4343
        %v4345 = vpop.f32.mrb[0].mxu0
        %4346 = vmatprep.mubr.f32.mxu0 0.0
        %4347 = vmatmul.mubr.f32.gmra.mrb[0].mxu0 %v4213
        %v4348 = vpop.f32.mrb[0].mxu0
        %v4349 = vadd.f32 %v4178, %v4348
        %v4350 = vpop.f32.mrb[0].mxu0
        %4351 = vmatprep.mubr.f32.mxu0 0.0
        %4352 = vmatmul.mubr.f32.gmra.mrb[0].mxu0 %v4216
        %v4353 = vpop.f32.mrb[0].mxu0
        %v4354 = vadd.f32 %v4178, %v4353
        %v4355 = vpop.f32.mrb[0].mxu0
        %4356 = vmatprep.mubr.f32.mxu0 0.0
        %4357 = vmatmul.mubr.f32.gmra.mrb[0].mxu0 %v4219
        %v4358 = vpop.f32.mrb[0].mxu0
        %v4359 = vadd.f32 %v4178, %v4358
        %v4360 = vpop.f32.mrb[0].mxu0
        %4361 = vmatprep.mubr.f32.mxu0 0.0
        %4362 = vmatmul.mubr.f32.gmra.mrb[0].mxu0 %v4222
        %v4363 = vpop.f32.mrb[0].mxu0
        %v4364 = vadd.f32 %v4178, %v4363
        %v4365 = vpop.f32.mrb[0].mxu0
        %4366 = vmatprep.mubr.f32.mxu0 0.0
        %4367 = vmatmul.mubr.f32.gmra.mrb[0].mxu0 %v4225
        %v4368 = vpop.f32.mrb[0].mxu0
        %v4369 = vadd.f32 %v4178, %v4368
        %v4370 = vpop.f32.mrb[0].mxu0
        %4371 = vdwg.mxu0
        %v4372 = vmax.f32 %v4294, 0.0
        %v4373 = vmax.f32 %v4299, 0.0
        %v4374 = vmax.f32 %v4304, 0.0
        %v4375 = vmax.f32 %v4309, 0.0
        %v4376 = vmax.f32 %v4314, 0.0
        %v4377 = vmax.f32 %v4319, 0.0
        %v4378 = vmax.f32 %v4324, 0.0
        %v4379 = vmax.f32 %v4329, 0.0
        %v4380 = vmax.f32 %v4334, 0.0
        %v4381 = vmax.f32 %v4339, 0.0
        %v4382 = vmax.f32 %v4344, 0.0
        %v4383 = vmax.f32 %v4349, 0.0
        %v4384 = vmax.f32 %v4354, 0.0
        %v4385 = vmax.f32 %v4359, 0.0
        %v4386 = vmax.f32 %v4364, 0.0
        %v4387 = vmax.f32 %v4369, 0.0
        %v4388 = vadd.f32 %v4155, %v4372
        %v4389 = vadd.f32 %v4156, %v4373
        %v4390 = vadd.f32 %v4157, %v4374
        %v4391 = vadd.f32 %v4158, %v4375
        %v4392 = vadd.f32 %v4159, %v4376
        %v4393 = vadd.f32 %v4160, %v4377
        %v4394 = vadd.f32 %v4161, %v4378
        %v4395 = vadd.f32 %v4162, %v4379
        %v4396 = vadd.f32 %v4163, %v4380
        %v4397 = vadd.f32 %v4164, %v4381
        %v4398 = vadd.f32 %v4165, %v4382
        %v4399 = vadd.f32 %v4166, %v4383
        %v4400 = vadd.f32 %v4167, %v4384
        %v4401 = vadd.f32 %v4168, %v4385
        %v4402 = vadd.f32 %v4169, %v4386
        %v4403 = vadd.f32 %v4170, %v4387
        %v4404 = vsel %vm1322, %v4388, 0.0
        %4405 = vadd.xlane.f32.xlu0 %v4404
        %v4406 = vpop.xlane.xlu0 %4405
        %v4407 = vsel %vm1322, %v4389, 0.0
        %4408 = vadd.xlane.f32.xlu0 %v4407
        %v4409 = vpop.xlane.xlu0 %4408
        %v4410 = vsel %vm1322, %v4390, 0.0
        %4411 = vadd.xlane.f32.xlu0 %v4410
        %v4412 = vpop.xlane.xlu0 %4411
        %v4413 = vsel %vm1322, %v4391, 0.0
        %4414 = vadd.xlane.f32.xlu0 %v4413
        %v4415 = vpop.xlane.xlu0 %4414
        %v4416 = vsel %vm1322, %v4392, 0.0
        %4417 = vadd.xlane.f32.xlu0 %v4416
        %v4418 = vpop.xlane.xlu0 %4417
        %v4419 = vsel %vm1322, %v4393, 0.0
        %4420 = vadd.xlane.f32.xlu0 %v4419
        %v4421 = vpop.xlane.xlu0 %4420
        %v4422 = vsel %vm1322, %v4394, 0.0
        %4423 = vadd.xlane.f32.xlu0 %v4422
        %v4424 = vpop.xlane.xlu0 %4423
        %v4425 = vsel %vm1322, %v4395, 0.0
        %4426 = vadd.xlane.f32.xlu0 %v4425
        %v4427 = vpop.xlane.xlu0 %4426
        %v4428 = vsel %vm1322, %v4396, 0.0
        %4429 = vadd.xlane.f32.xlu0 %v4428
        %v4430 = vpop.xlane.xlu0 %4429
        %v4431 = vsel %vm1322, %v4397, 0.0
        %4432 = vadd.xlane.f32.xlu0 %v4431
        %v4433 = vpop.xlane.xlu0 %4432
        %v4434 = vsel %vm1322, %v4398, 0.0
        %4435 = vadd.xlane.f32.xlu0 %v4434
        %v4436 = vpop.xlane.xlu0 %4435
        %v4437 = vsel %vm1322, %v4399, 0.0
        %4438 = vadd.xlane.f32.xlu0 %v4437
        %v4439 = vpop.xlane.xlu0 %4438
        %v4440 = vsel %vm1322, %v4400, 0.0
        %4441 = vadd.xlane.f32.xlu0 %v4440
        %v4442 = vpop.xlane.xlu0 %4441
        %v4443 = vsel %vm1322, %v4401, 0.0
        %4444 = vadd.xlane.f32.xlu0 %v4443
        %v4445 = vpop.xlane.xlu0 %4444
        %v4446 = vsel %vm1322, %v4402, 0.0
        %4447 = vadd.xlane.f32.xlu0 %v4446
        %v4448 = vpop.xlane.xlu0 %4447
        %v4449 = vsel %vm1322, %v4403, 0.0
        %4450 = vadd.xlane.f32.xlu0 %v4449
        %v4451 = vpop.xlane.xlu0 %4450
        %v4452 = vmul.f32 %v4406, %v3970
        %v4453 = vmul.f32 %v4409, %v3970
        %v4454 = vmul.f32 %v4412, %v3970
        %v4455 = vmul.f32 %v4415, %v3970
        %v4456 = vmul.f32 %v4418, %v3970
        %v4457 = vmul.f32 %v4421, %v3970
        %v4458 = vmul.f32 %v4424, %v3970
        %v4459 = vmul.f32 %v4427, %v3970
        %v4460 = vmul.f32 %v4430, %v3970
        %v4461 = vmul.f32 %v4433, %v3970
        %v4462 = vmul.f32 %v4436, %v3970
        %v4463 = vmul.f32 %v4439, %v3970
        %v4464 = vmul.f32 %v4442, %v3970
        %v4465 = vmul.f32 %v4445, %v3970
        %v4466 = vmul.f32 %v4448, %v3970
        %v4467 = vmul.f32 %v4451, %v3970
        %v4468 = vsub.f32 %v4388, %v4452
        %v4469 = vsub.f32 %v4389, %v4453
        %v4470 = vsub.f32 %v4390, %v4454
        %v4471 = vsub.f32 %v4391, %v4455
        %v4472 = vsub.f32 %v4392, %v4456
        %v4473 = vsub.f32 %v4393, %v4457
        %v4474 = vsub.f32 %v4394, %v4458
        %v4475 = vsub.f32 %v4395, %v4459
        %v4476 = vsub.f32 %v4396, %v4460
        %v4477 = vsub.f32 %v4397, %v4461
        %v4478 = vsub.f32 %v4398, %v4462
        %v4479 = vsub.f32 %v4399, %v4463
        %v4480 = vsub.f32 %v4400, %v4464
        %v4481 = vsub.f32 %v4401, %v4465
        %v4482 = vsub.f32 %v4402, %v4466
        %v4483 = vsub.f32 %v4403, %v4467
        %v4484 = vmul.f32 %v4468, %v4468
        %v4485 = vmul.f32 %v4469, %v4469
        %v4486 = vmul.f32 %v4470, %v4470
        %v4487 = vmul.f32 %v4471, %v4471
        %v4488 = vmul.f32 %v4472, %v4472
        %v4489 = vmul.f32 %v4473, %v4473
        %v4490 = vmul.f32 %v4474, %v4474
        %v4491 = vmul.f32 %v4475, %v4475
        %v4492 = vmul.f32 %v4476, %v4476
        %v4493 = vmul.f32 %v4477, %v4477
        %v4494 = vmul.f32 %v4478, %v4478
        %v4495 = vmul.f32 %v4479, %v4479
        %v4496 = vmul.f32 %v4480, %v4480
        %v4497 = vmul.f32 %v4481, %v4481
        %v4498 = vmul.f32 %v4482, %v4482
        %v4499 = vmul.f32 %v4483, %v4483
        %v4500 = vsel %vm1322, %v4484, 0.0
        %4501 = vadd.xlane.f32.xlu0 %v4500
        %v4502 = vpop.xlane.xlu0 %4501
        %v4503 = vsel %vm1322, %v4485, 0.0
        %4504 = vadd.xlane.f32.xlu0 %v4503
        %v4505 = vpop.xlane.xlu0 %4504
        %v4506 = vsel %vm1322, %v4486, 0.0
        %4507 = vadd.xlane.f32.xlu0 %v4506
        %v4508 = vpop.xlane.xlu0 %4507
        %v4509 = vsel %vm1322, %v4487, 0.0
        %4510 = vadd.xlane.f32.xlu0 %v4509
        %v4511 = vpop.xlane.xlu0 %4510
        %v4512 = vsel %vm1322, %v4488, 0.0
        %4513 = vadd.xlane.f32.xlu0 %v4512
        %v4514 = vpop.xlane.xlu0 %4513
        %v4515 = vsel %vm1322, %v4489, 0.0
        %4516 = vadd.xlane.f32.xlu0 %v4515
        %v4517 = vpop.xlane.xlu0 %4516
        %v4518 = vsel %vm1322, %v4490, 0.0
        %4519 = vadd.xlane.f32.xlu0 %v4518
        %v4520 = vpop.xlane.xlu0 %4519
        %v4521 = vsel %vm1322, %v4491, 0.0
        %4522 = vadd.xlane.f32.xlu0 %v4521
        %v4523 = vpop.xlane.xlu0 %4522
        %v4524 = vsel %vm1322, %v4492, 0.0
        %4525 = vadd.xlane.f32.xlu0 %v4524
        %v4526 = vpop.xlane.xlu0 %4525
        %v4527 = vsel %vm1322, %v4493, 0.0
        %4528 = vadd.xlane.f32.xlu0 %v4527
        %v4529 = vpop.xlane.xlu0 %4528
        %v4530 = vsel %vm1322, %v4494, 0.0
        %4531 = vadd.xlane.f32.xlu0 %v4530
        %v4532 = vpop.xlane.xlu0 %4531
        %v4533 = vsel %vm1322, %v4495, 0.0
        %4534 = vadd.xlane.f32.xlu0 %v4533
        %v4535 = vpop.xlane.xlu0 %4534
        %v4536 = vsel %vm1322, %v4496, 0.0
        %4537 = vadd.xlane.f32.xlu0 %v4536
        %v4538 = vpop.xlane.xlu0 %4537
        %v4539 = vsel %vm1322, %v4497, 0.0
        %4540 = vadd.xlane.f32.xlu0 %v4539
        %v4541 = vpop.xlane.xlu0 %4540
        %v4542 = vsel %vm1322, %v4498, 0.0
        %4543 = vadd.xlane.f32.xlu0 %v4542
        %v4544 = vpop.xlane.xlu0 %4543
        %v4545 = vsel %vm1322, %v4499, 0.0
        %4546 = vadd.xlane.f32.xlu0 %v4545
        %v4547 = vpop.xlane.xlu0 %4546
        %v4548 = vmul.f32 %v4502, %v3970
        %v4549 = vmul.f32 %v4505, %v3970
        %v4550 = vmul.f32 %v4508, %v3970
        %v4551 = vmul.f32 %v4511, %v3970
        %v4552 = vmul.f32 %v4514, %v3970
        %v4553 = vmul.f32 %v4517, %v3970
        %v4554 = vmul.f32 %v4520, %v3970
        %v4555 = vmul.f32 %v4523, %v3970
        %v4556 = vmul.f32 %v4526, %v3970
        %v4557 = vmul.f32 %v4529, %v3970
        %v4558 = vmul.f32 %v4532, %v3970
        %v4559 = vmul.f32 %v4535, %v3970
        %v4560 = vmul.f32 %v4538, %v3970
        %v4561 = vmul.f32 %v4541, %v3970
        %v4562 = vmul.f32 %v4544, %v3970
        %v4563 = vmul.f32 %v4547, %v3970
        %v4564 = vadd.f32 %v4548, 1e-05
        %v4565 = vadd.f32 %v4549, 1e-05
        %v4566 = vadd.f32 %v4550, 1e-05
        %v4567 = vadd.f32 %v4551, 1e-05
        %v4568 = vadd.f32 %v4552, 1e-05
        %v4569 = vadd.f32 %v4553, 1e-05
        %v4570 = vadd.f32 %v4554, 1e-05
        %v4571 = vadd.f32 %v4555, 1e-05
        %v4572 = vadd.f32 %v4556, 1e-05
        %v4573 = vadd.f32 %v4557, 1e-05
        %v4574 = vadd.f32 %v4558, 1e-05
        %v4575 = vadd.f32 %v4559, 1e-05
        %v4576 = vadd.f32 %v4560, 1e-05
        %v4577 = vadd.f32 %v4561, 1e-05
        %v4578 = vadd.f32 %v4562, 1e-05
        %v4579 = vadd.f32 %v4563, 1e-05
        %v4580 = vrsqrt.pop %v4564
        %v4581 = vrsqrt.pop %v4565
        %v4582 = vrsqrt.pop %v4566
        %v4583 = vrsqrt.pop %v4567
        %v4584 = vrsqrt.pop %v4568
        %v4585 = vrsqrt.pop %v4569
        %v4586 = vrsqrt.pop %v4570
        %v4587 = vrsqrt.pop %v4571
        %v4588 = vrsqrt.pop %v4572
        %v4589 = vrsqrt.pop %v4573
        %v4590 = vrsqrt.pop %v4574
        %v4591 = vrsqrt.pop %v4575
        %v4592 = vrsqrt.pop %v4576
        %v4593 = vrsqrt.pop %v4577
        %v4594 = vrsqrt.pop %v4578
        %v4595 = vrsqrt.pop %v4579
        %v4596 = vmul.f32 %v4468, %v4580
        %v4597 = vmul.f32 %v4469, %v4581
        %v4598 = vmul.f32 %v4470, %v4582
        %v4599 = vmul.f32 %v4471, %v4583
        %v4600 = vmul.f32 %v4472, %v4584
        %v4601 = vmul.f32 %v4473, %v4585
        %v4602 = vmul.f32 %v4474, %v4586
        %v4603 = vmul.f32 %v4475, %v4587
        %v4604 = vmul.f32 %v4476, %v4588
        %v4605 = vmul.f32 %v4477, %v4589
        %v4606 = vmul.f32 %v4478, %v4590
        %v4607 = vmul.f32 %v4479, %v4591
        %v4608 = vmul.f32 %v4480, %v4592
        %v4609 = vmul.f32 %v4481, %v4593
        %v4610 = vmul.f32 %v4482, %v4594
        %v4611 = vmul.f32 %v4483, %v4595
        %v4612 = vlaneseq
        %v4613 = vshrl.u32 %v4612, 7
        %v4614 = vsub.s32 0, %v4613
        %v4615 = vrot.slane %v210, %v4614
        %v4616 = vmul.f32 %v4596, %v4615
        %v4617 = vmul.f32 %v4597, %v4615
        %v4618 = vmul.f32 %v4598, %v4615
        %v4619 = vmul.f32 %v4599, %v4615
        %v4620 = vmul.f32 %v4600, %v4615
        %v4621 = vmul.f32 %v4601, %v4615
        %v4622 = vmul.f32 %v4602, %v4615
        %v4623 = vmul.f32 %v4603, %v4615
        %v4624 = vmul.f32 %v4604, %v4615
        %v4625 = vmul.f32 %v4605, %v4615
        %v4626 = vmul.f32 %v4606, %v4615
        %v4627 = vmul.f32 %v4607, %v4615
        %v4628 = vmul.f32 %v4608, %v4615
        %v4629 = vmul.f32 %v4609, %v4615
        %v4630 = vmul.f32 %v4610, %v4615
        %v4631 = vmul.f32 %v4611, %v4615
        %v4632 = vlaneseq
        %v4633 = vshrl.u32 %v4632, 7
        %v4634 = vsub.s32 0, %v4633
        %v4635 = vrot.slane %v211, %v4634
        %v4636 = vadd.f32 %v4616, %v4635
        %v4637 = vadd.f32 %v4617, %v4635
        %v4638 = vadd.f32 %v4618, %v4635
        %v4639 = vadd.f32 %v4619, %v4635
        %v4640 = vadd.f32 %v4620, %v4635
        %v4641 = vadd.f32 %v4621, %v4635
        %v4642 = vadd.f32 %v4622, %v4635
        %v4643 = vadd.f32 %v4623, %v4635
        %v4644 = vadd.f32 %v4624, %v4635
        %v4645 = vadd.f32 %v4625, %v4635
        %v4646 = vadd.f32 %v4626, %v4635
        %v4647 = vadd.f32 %v4627, %v4635
        %v4648 = vadd.f32 %v4628, %v4635
        %v4649 = vadd.f32 %v4629, %v4635
        %v4650 = vadd.f32 %v4630, %v4635
        %v4651 = vadd.f32 %v4631, %v4635
        %v4652 = vsel %vm1322, %v4636, 0.0
        %v4653 = vsel %vm1322, %v4637, 0.0
        %v4654 = vsel %vm1322, %v4638, 0.0
        %v4655 = vsel %vm1322, %v4639, 0.0
        %v4656 = vsel %vm1322, %v4640, 0.0
        %v4657 = vsel %vm1322, %v4641, 0.0
        %v4658 = vsel %vm1322, %v4642, 0.0
        %v4659 = vsel %vm1322, %v4643, 0.0
        %v4660 = vsel %vm1322, %v4644, 0.0
        %v4661 = vsel %vm1322, %v4645, 0.0
        %v4662 = vsel %vm1322, %v4646, 0.0
        %v4663 = vsel %vm1322, %v4647, 0.0
        %v4664 = vsel %vm1322, %v4648, 0.0
        %v4665 = vsel %vm1322, %v4649, 0.0
        %v4666 = vsel %vm1322, %v4650, 0.0
        %v4667 = vsel %vm1322, %v4651, 0.0
        %4668 = vst [vmem:[%s198] sm:$0xff] %v4652
        %4669 = vst [vmem:[%s198 + $0x8] sm:$0xff] %v4653
        %4670 = vst [vmem:[%s198 + $0x10] sm:$0xff] %v4654
        %4671 = vst [vmem:[%s198 + $0x18] sm:$0xff] %v4655
        %4672 = vst [vmem:[%s198 + $0x20] sm:$0xff] %v4656
        %4673 = vst [vmem:[%s198 + $0x28] sm:$0xff] %v4657
        %4674 = vst [vmem:[%s198 + $0x30] sm:$0xff] %v4658
        %4675 = vst [vmem:[%s198 + $0x38] sm:$0xff] %v4659
        %4676 = vst [vmem:[%s198 + $0x40] sm:$0xff] %v4660
        %4677 = vst [vmem:[%s198 + $0x48] sm:$0xff] %v4661
        %4678 = vst [vmem:[%s198 + $0x50] sm:$0xff] %v4662
        %4679 = vst [vmem:[%s198 + $0x58] sm:$0xff] %v4663
        %4680 = vst [vmem:[%s198 + $0x60] sm:$0xff] %v4664
        %4681 = vst [vmem:[%s198 + $0x68] sm:$0xff] %v4665
        %4682 = vst [vmem:[%s198 + $0x70] sm:$0xff] %v4666
        %4683 = vst [vmem:[%s198 + $0x78] sm:$0xff] %v4667
        %s4684 = sand.u32 %s122, 1
        %s4685 = scalar_lea.sflag [#allocation5], %s4684
        %s4686 = sand.u32 %s122, 1
        %s4687 = smul.addr %s4686, 128
        %s4688 = scalar_lea.vmem [#allocation4], %s4687
        // Predicated region
        $region37: #{tpu_custom_call.1} parent=35 // pred_check
          %p4689 = pneg %p132
        $region38: #{tpu_custom_call.1} parent=35 // pred_check_branch
          %4691 = sbr.rel (%p4689) target = $region40
        $region39: #{tpu_custom_call.1} parent=35 // pred_region
          %s4692 = smul.u32 16, %s25
          %s4694 = ssub.s32 2048, 2048
          %4695 = vsyncadd %s4685, %s4694
          %s4696 = smul.addr %s4692, 128
          %s4697 = scalar_lea.hbm %s5, %s4696
          %s4698 = sshll.u32 %s4688, 4
          %s4699 = int_to_ptr.vmem [resolvable:$true] %s4698
          %4704 = dma.vmem_to_hbm [thread:$0]  %s4699, 2048, %s4697, %s4685, 128, 128, 8
        $region40: #{tpu_custom_call.1} parent=35 // pred_fallthru
          _
      $region36: #{tpu_custom_call.1} parent=5 // pred_fallthru
        _
      %p4705 = scmp.le.s32.totalorder 2, %s20
      // Predicated region
      $region41: #{tpu_custom_call.1} parent=5 // pred_check
        %p4706 = pneg %p4705
      $region42: #{tpu_custom_call.1} parent=5 // pred_check_branch
        %4708 = sbr.rel (%p4706) target = $region44
      $region43: #{tpu_custom_call.1} parent=5 // pred_region
        %s4709 = ssub.s32 %s20, 2
        // Predicated region
        $region45: #{tpu_custom_call.1} parent=43 // pred_check
          %p4710 = pneg %p138
        $region46: #{tpu_custom_call.1} parent=43 // pred_check_branch
          %4712 = sbr.rel (%p4710) target = $region48
        $region47: #{tpu_custom_call.1} parent=43 // pred_region
          %s4713 = sand.u32 %s123, 1
          %s4714 = scalar_lea.sflag [#allocation5], %s4713
          %s4715 = sand.u32 %s123, 1
          %s4716 = smul.addr %s4715, 128
          %s4717 = scalar_lea.vmem [#allocation4], %s4716
          %4718 = dma.done %s4714, 2048
        $region48: #{tpu_custom_call.1} parent=43 // pred_fallthru
          _
      $region44: #{tpu_custom_call.1} parent=5 // pred_fallthru
        _
    $region6: #{tpu_custom_call.1} parent=1 // loop_footer
      %s24 = sadd.s32 1, %s20
    $region7: #{tpu_custom_call.1} parent=1 // loop_footer_branch
      %19 = sbr.rel target = $region3
    $region8: #{tpu_custom_call.1} parent=1 // loop_exit
      _
    %4719 = vsyncpa [#allocation5], 1
    %s4720 = scalar_lea.sflag [#allocation5], 1
    %4721 = vsyncpa %s4720, 1

</llo_original>
